<compile_context>
chip_gen: v6e
topology: v6e:2x2x1
jax: 0.10.0
libtpu: 0.0.40
codegen_flags: <defaults>
</compile_context>

<pallas_src>
import math

import jax
import jax.numpy as jnp
from jax.experimental import pallas as pl
from jax.experimental.pallas import tpu as pltpu

_LANE = 128   # vreg lane width
_TAIL = 8     # sublane-aligned tail region of the conv carry buffer (>= K-1)


# ------------------------------ kernel factory --------------------------------
def make_residual_block_kernel(Tc, Dm, Din, n, P_dt, P_n, K, SC, eps, mxu_dtype):
    """Kernel body for one (batch, L-chunk) grid step."""
    n_sc = Tc // SC

    def silu(v):
        # sigmoid = 1/(1+exp(-v)); exp -> EUP, approx reciprocal -> EUP slot.
        return v * pl.reciprocal(1.0 + jnp.exp(-v), approx=True)

    def softplus(v):
        # F.softplus(threshold=20): exp(v) overflowing to +inf in the
        # unselected branch is harmless under jnp.where (do not "fix").
        return jnp.where(v > 20.0, v, jnp.log(1.0 + jnp.exp(v)))

    def kernel(x_ref, wn_ref, win_ref, wconv_ref, bconv_ref, wxp_ref,
               wdt_ref, bdt_ref, alogT_ref, dvec_ref, wout_ref,
               out_ref,
               xbuf_sc, xc_sc, du_sc, delta_sc, bc_sc, ys_sc, state_sc):
        # Correctness of the carried state_sc / conv tail requires:
        #   - L-chunk axis == grid axis 1 and marked "arbitrary" (sequential),
        #   - only the batch axis core-sharded ("parallel").
        lc = pl.program_id(1)

        # ---- reset carried state at the first chunk of each batch element ----
        @pl.when(lc == 0)
        def _():
            state_sc[...] = jnp.zeros_like(state_sc)
            xbuf_sc[0:_TAIL, :] = jnp.zeros((_TAIL, Din), jnp.float32)

        x = x_ref[0]                                            # (Tc, Dm) f32

        # ---- RMSNorm ----
        ms = jnp.mean(x * x, axis=-1, keepdims=True)
        xn = x * jax.lax.rsqrt(ms + eps) * wn_ref[...]

        # ---- fused in_proj: x-branch and res-branch in one MXU pass ----
        xr = jnp.dot(xn.astype(mxu_dtype), win_ref[...],
                     preferred_element_type=jnp.float32)        # (Tc, 2*Din)
        xi = xr[:, :Din]
        res = xr[:, Din:]

        # ---- causal depthwise conv1d via persistent buffer (no concat copy) ----
        # Layout: rows [_TAIL-(K-1), _TAIL) hold the previous chunk's tail,
        # rows [_TAIL, _TAIL+Tc) hold this chunk's xi.
        xbuf_sc[_TAIL:_TAIL + Tc, :] = xi
        base = _TAIL - (K - 1)
        conv = xbuf_sc[base:base + Tc, :] * wconv_ref[0:1, :]
        for k in range(1, K):
            conv = conv + xbuf_sc[base + k:base + k + Tc, :] * wconv_ref[k:k + 1, :]
        conv = conv + bconv_ref[...]
        xc = silu(conv)                                         # (Tc, Din)
        xc_sc[...] = xc
        # Carry this chunk's last K-1 xi rows for the next chunk (the tap reads
        # above were traced first, so ref ordering keeps this correct).
        xbuf_sc[base:_TAIL, :] = xbuf_sc[_TAIL + Tc - (K - 1):_TAIL + Tc, :]

        # ---- fused, lane-aligned x_proj: [delta_low |pad| B |pad| C |pad] ----
        xdbl = jnp.dot(xc.astype(mxu_dtype), wxp_ref[...],
                       preferred_element_type=jnp.float32)      # (Tc, P_dt+2*P_n)
        bc_sc[...] = xdbl[:, P_dt:]                             # lane-dense [B|C]
        delta = softplus(
            jnp.dot(xdbl[:, 0:P_dt].astype(mxu_dtype), wdt_ref[...],
                    preferred_element_type=jnp.float32)
            + bdt_ref[...])                                     # (Tc, Din)
        delta_sc[...] = delta
        du_sc[...] = delta * xc

        A_T = -jnp.exp(alogT_ref[...])                          # (n, Din)

        # ---- selective scan over SC-sized sub-chunks ----
        def sub_chunk(s, state):
            i0 = pl.multiple_of(s * SC, SC)
            d_s = delta_sc[pl.ds(i0, SC), :]                    # (SC, Din)
            du_s = du_sc[pl.ds(i0, SC), :]                      # (SC, Din)
            b_s = bc_sc[pl.ds(i0, SC), 0:n]                     # (SC, n)
            c_s = bc_sc[pl.ds(i0, SC), P_n:P_n + n]             # (SC, n)
            # Batched blocks hoisted off the serial dependency chain:
            dA_blk = jnp.exp((d_s[:, None, :] * A_T[None, :, :])
                             .reshape(SC * n, Din))             # (SC*n, Din)
            dBu_blk = (b_s[:, :, None] * du_s[:, None, :]).reshape(SC * n, Din)
            cE_blk = jnp.broadcast_to(c_s[:, :, None],
                                      (SC, n, Din)).reshape(SC * n, Din)
            ys_rows = []
            for i in range(SC):                                 # serial recurrence
                state = (dA_blk[i * n:(i + 1) * n, :] * state
                         + dBu_blk[i * n:(i + 1) * n, :])
                ys_rows.append(jnp.sum(state * cE_blk[i * n:(i + 1) * n, :],
                                       axis=0, keepdims=True))  # (1, Din)
            ys_sc[pl.ds(i0, SC), :] = jnp.concatenate(ys_rows, axis=0)
            return state

        state = jax.lax.fori_loop(0, n_sc, sub_chunk, state_sc[...], unroll=True)
        state_sc[...] = state                                   # carry across chunks

        # ---- D skip, SiLU gate, out_proj, residual add ----
        y = ys_sc[...] + xc_sc[...] * dvec_ref[...]
        y = y * silu(res)
        out = jnp.dot(y.astype(mxu_dtype), wout_ref[...],
                      preferred_element_type=jnp.float32)       # (Tc, Dm)
        out_ref[0] = out + x

    return kernel


# -------------------------------- the wrapper ----------------------------------
def residual_block_forward(x, params, *, d_state, dt_rank, d_conv, eps=1e-5,
                           l_chunk=256, scan_chunk=8, mxu_dtype=jnp.bfloat16):
    B, L, Dm = x.shape
    Din = params['in_proj_w'].shape[0] // 2
    n, K = d_state, d_conv

    Tc = min(l_chunk, L)
    assert L % Tc == 0, "sequence length must be divisible by the L-chunk"
    SC = min(scan_chunk, Tc)
    assert Tc % SC == 0
    assert K - 1 <= _TAIL and Tc >= K - 1

    md = mxu_dtype
    P_dt = -(-dt_rank // _LANE) * _LANE        # delta_low segment padded width
    P_n = -(-n // _LANE) * _LANE               # B / C segment padded widths

    # ---- host-side layout glue: fuse + pre-transpose + lane-align weights ----
    wn = params['norm_w'].reshape(1, Dm).astype(jnp.float32)
    win = params['in_proj_w'].T.astype(md)                     # (Dm, 2*Din)
    wconv = params['conv_w'][:, 0, :].T.astype(jnp.float32)    # (K, Din)
    bconv = params['conv_b'].reshape(1, Din).astype(jnp.float32)

    # x_proj: columns [0,dt_rank)=delta_low, [P_dt,P_dt+n)=B, [P_dt+P_n,...+n)=C,
    # zero-padded so every segment starts at a 128-lane boundary.
    wxp_t = params['x_proj_w'].T.astype(jnp.float32)           # (Din, dt_rank+2n)
    wxp = jnp.zeros((Din, P_dt + 2 * P_n), jnp.float32)
    wxp = wxp.at[:, 0:dt_rank].set(wxp_t[:, 0:dt_rank])
    wxp = wxp.at[:, P_dt:P_dt + n].set(wxp_t[:, dt_rank:dt_rank + n])
    wxp = wxp.at[:, P_dt + P_n:P_dt + P_n + n].set(wxp_t[:, dt_rank + n:])
    wxp = wxp.astype(md)

    # dt_proj padded with zero rows to match the padded delta_low width.
    wdt_t = params['dt_proj_w'].T.astype(jnp.float32)          # (dt_rank, Din)
    wdt = jnp.zeros((P_dt, Din), jnp.float32).at[0:dt_rank].set(wdt_t).astype(md)

    bdt = params['dt_proj_b'].reshape(1, Din).astype(jnp.float32)
    alogT = params['A_log'].T.astype(jnp.float32)              # (n, Din)
    dvec = params['D'].reshape(1, Din).astype(jnp.float32)
    wout = params['out_proj_w'].T.astype(md)                   # (Din, Dm)

    weights = (wn, win, wconv, bconv, wxp, wdt, bdt, alogT, dvec, wout)

    kern = make_residual_block_kernel(Tc, Dm, Din, n, P_dt, P_n, K, SC, eps, md)

    x_spec = pl.BlockSpec((1, Tc, Dm), lambda b, l: (b, l, 0))
    out_specs = pl.BlockSpec((1, Tc, Dm), lambda b, l: (b, l, 0))

    scratch_shapes = [
        pltpu.VMEM((_TAIL + Tc, Din), jnp.float32),  # conv input + carried tail
        pltpu.VMEM((Tc, Din), jnp.float32),          # xc (u)
        pltpu.VMEM((Tc, Din), jnp.float32),          # delta * u
        pltpu.VMEM((Tc, Din), jnp.float32),          # delta
        pltpu.VMEM((Tc, 2 * P_n), jnp.float32),      # lane-aligned [B | C]
        pltpu.VMEM((Tc, Din), jnp.float32),          # ys
        pltpu.VMEM((n, Din), jnp.float32),           # SSM state, carried
    ]

    def build(single_buffer_weights):
        def wspec(a):
            if single_buffer_weights:
                # Constant block index -> no benefit from double buffering.
                return pl.BlockSpec(a.shape, lambda b, l, nd=a.ndim: (0,) * nd,
                                    pipeline_mode=pl.Buffered(1))
            return pl.BlockSpec(a.shape, lambda b, l, nd=a.ndim: (0,) * nd)

        return pl.pallas_call(
            kern,
            out_shape=jax.ShapeDtypeStruct((B, L, Dm), jnp.float32),
            grid_spec=pltpu.PrefetchScalarGridSpec(
                num_scalar_prefetch=0,
                grid=(B, L // Tc),
                in_specs=[x_spec] + [wspec(w) for w in weights],
                out_specs=out_specs,
                scratch_shapes=scratch_shapes),
            compiler_params=pltpu.CompilerParams(
                dimension_semantics=("parallel", "arbitrary"),
                vmem_limit_bytes=48 * 1024 * 1024),
        )

    x32 = x.astype(jnp.float32)
    try:
        return build(True)(x32, *weights)
    except Exception:
        # Fallback for jax versions without single-buffer pipeline_mode support.
        return build(False)(x32, *weights)


# ------------------------------ pure-JAX reference ------------------------------
def ref_forward(x, p, *, d_state, dt_rank, d_conv, eps=1e-5):
    B, L, Dm = x.shape
    Din = p['in_proj_w'].shape[0] // 2
    n, K = d_state, d_conv
    xn = x * jax.lax.rsqrt(jnp.mean(x * x, -1, keepdims=True) + eps) * p['norm_w']
    xr = xn @ p['in_proj_w'].T
    xi, res = xr[..., :Din], xr[..., Din:]
    w = p['conv_w'][:, 0, :]                                   # (Din, K)
    xpad = jnp.pad(xi, ((0, 0), (K - 1, 0), (0, 0)))
    conv = jnp.zeros_like(xi) + p['conv_b']
    for k in range(K):
        conv = conv + xpad[:, k:k + L, :] * w[:, k]
    xc = jax.nn.silu(conv)
    xdbl = xc @ p['x_proj_w'].T
    dlow = xdbl[..., :dt_rank]
    Bm = xdbl[..., dt_rank:dt_rank + n]
    Cm = xdbl[..., dt_rank + n:]
    delta = jax.nn.softplus(dlow @ p['dt_proj_w'].T + p['dt_proj_b'])
    A = -jnp.exp(p['A_log'])                                   # (Din, n)
    dA = jnp.exp(delta[..., None] * A[None, None])             # (B, L, Din, n)
    dBu = delta[..., None] * Bm[:, :, None, :] * xc[..., None]
    state = jnp.zeros((B, Din, n), jnp.float32)
    ys = []
    for t in range(L):
        state = dA[:, t] * state + dBu[:, t]
        ys.append(jnp.einsum('bdn,bn->bd', state, Cm[:, t]))
    y = jnp.stack(ys, axis=1) + xc * p['D']
    y = y * jax.nn.silu(res)
    return y @ p['out_proj_w'].T + x


# ------------------------------------- main --------------------------------------
if __name__ == "__main__":
    # Small, shape-consistent ModelArgs: d_model=32, expand=2 -> d_inner=64,
    # d_state=16, dt_rank='auto' -> ceil(32/16)=2, d_conv=4.
    Dm = 32
    Din = 2 * Dm
    n = 16
    dt_rank = max(1, math.ceil(Dm / 16))
    K = 4
    B, L = 2, 32            # two L-chunks of 16, two scan sub-chunks per chunk

    key = jax.random.PRNGKey(0)
    ks = jax.random.split(key, 8)

    def rnd(k, shape, scale):
        return jax.random.normal(k, shape, jnp.float32) * scale

    params = {
        'norm_w':     jnp.ones((Dm,), jnp.float32),                    # RMSNorm weight
        'in_proj_w':  rnd(ks[0], (2 * Din, Dm), Dm ** -0.5),           # (2*d_inner, d_model)
        'conv_w':     rnd(ks[1], (Din, 1, K), K ** -0.5),              # Conv1d weight
        'conv_b':     rnd(ks[2], (Din,), 0.1),                         # Conv1d bias
        'x_proj_w':   rnd(ks[3], (dt_rank + 2 * n, Din), Din ** -0.5), # x_proj weight
        'dt_proj_w':  rnd(ks[4], (Din, dt_rank), dt_rank ** -0.5),     # dt_proj weight
        'dt_proj_b':  rnd(ks[5], (Din,), 0.1),                         # dt_proj bias
        'A_log':      jnp.log(jnp.broadcast_to(
                          jnp.arange(1, n + 1, dtype=jnp.float32)[None, :],
                          (Din, n))),                                  # (d_inner, n)
        'D':          jnp.ones((Din,), jnp.float32),
        'out_proj_w': rnd(ks[6], (Dm, Din), Din ** -0.5),              # out_proj weight
    }

    x = jax.random.normal(ks[7], (B, L, Dm), jnp.float32)

    out = residual_block_forward(x, params, d_state=n, dt_rank=dt_rank,
                                 d_conv=K, l_chunk=16, scan_chunk=8,
                                 mxu_dtype=jnp.bfloat16)
    out = jax.block_until_ready(out)

    ref = ref_forward(x, params, d_state=n, dt_rank=dt_rank, d_conv=K)
    assert out.shape == x.shape
    err = float(jnp.max(jnp.abs(out - ref)))
    assert jnp.allclose(out, ref, atol=5e-2, rtol=5e-2), err
    print("KERNEL_OK")
</pallas_src>

<mosaic_0001>
module attributes {stable_mosaic.version = 11 : i64} {
  func.func @kernel(%arg0: i32, %arg1: i32, %arg2: memref<1x16x32xf32, #tpu.memory_space<vmem>>, %arg3: memref<1x32xf32, #tpu.memory_space<vmem>>, %arg4: memref<32x128xbf16, #tpu.memory_space<vmem>>, %arg5: memref<4x64xf32, #tpu.memory_space<vmem>>, %arg6: memref<1x64xf32, #tpu.memory_space<vmem>>, %arg7: memref<64x384xbf16, #tpu.memory_space<vmem>>, %arg8: memref<128x64xbf16, #tpu.memory_space<vmem>>, %arg9: memref<1x64xf32, #tpu.memory_space<vmem>>, %arg10: memref<16x64xf32, #tpu.memory_space<vmem>>, %arg11: memref<1x64xf32, #tpu.memory_space<vmem>>, %arg12: memref<64x32xbf16, #tpu.memory_space<vmem>>, %arg13: memref<1x16x32xf32, #tpu.memory_space<vmem>>, %arg14: memref<24x64xf32, #tpu.memory_space<vmem>>, %arg15: memref<16x64xf32, #tpu.memory_space<vmem>>, %arg16: memref<16x64xf32, #tpu.memory_space<vmem>>, %arg17: memref<16x64xf32, #tpu.memory_space<vmem>>, %arg18: memref<16x256xf32, #tpu.memory_space<vmem>>, %arg19: memref<16x64xf32, #tpu.memory_space<vmem>>, %arg20: memref<16x64xf32, #tpu.memory_space<vmem>>) attributes {dimension_semantics = [#tpu.dimension_semantics<parallel>, #tpu.dimension_semantics<arbitrary>], iteration_bounds = array<i64: 2, 2>, scalar_prefetch = 0 : i64, scratch_operands = 7 : i64, tpu.core_type = #tpu.core_type<tc>, window_params = [{transform_indices = @transform_0, window_bounds = array<i64: 1, 16, 32>}, {pipeline_mode = #tpu.pipeline_mode<synchronous>, transform_indices = @transform_1, window_bounds = array<i64: 1, 32>}, {pipeline_mode = #tpu.pipeline_mode<synchronous>, transform_indices = @transform_2, window_bounds = array<i64: 32, 128>}, {pipeline_mode = #tpu.pipeline_mode<synchronous>, transform_indices = @transform_3, window_bounds = array<i64: 4, 64>}, {pipeline_mode = #tpu.pipeline_mode<synchronous>, transform_indices = @transform_4, window_bounds = array<i64: 1, 64>}, {pipeline_mode = #tpu.pipeline_mode<synchronous>, transform_indices = @transform_5, window_bounds = array<i64: 64, 384>}, {pipeline_mode = #tpu.pipeline_mode<synchronous>, transform_indices = @transform_6, window_bounds = array<i64: 128, 64>}, {pipeline_mode = #tpu.pipeline_mode<synchronous>, transform_indices = @transform_7, window_bounds = array<i64: 1, 64>}, {pipeline_mode = #tpu.pipeline_mode<synchronous>, transform_indices = @transform_8, window_bounds = array<i64: 16, 64>}, {pipeline_mode = #tpu.pipeline_mode<synchronous>, transform_indices = @transform_9, window_bounds = array<i64: 1, 64>}, {pipeline_mode = #tpu.pipeline_mode<synchronous>, transform_indices = @transform_10, window_bounds = array<i64: 64, 32>}, {transform_indices = @transform_11, window_bounds = array<i64: 1, 16, 32>}]} {
    %c0_i32 = arith.constant 0 : i32
    %0 = arith.cmpi eq, %arg1, %c0_i32 : i32
    %1 = arith.extui %0 : i1 to i32
    %c0_i32_0 = arith.constant 0 : i32
    %2 = arith.cmpi ne, %1, %c0_i32_0 : i32
    scf.if %2 {
      %cst_94 = arith.constant 0.000000e+00 : f32
      %293 = vector.broadcast %cst_94 : f32 to vector<16x64xf32>
      %c0_95 = arith.constant 0 : index
      %c0_96 = arith.constant 0 : index
      %294 = vector.load %arg20[%c0_95, %c0_96] : memref<16x64xf32, #tpu.memory_space<vmem>>, vector<16x64xf32>
      tpu.vector_store %arg20[%c0_95, %c0_96], %293 {strides = array<i32>} : memref<16x64xf32, #tpu.memory_space<vmem>>, vector<16x64xf32>,
      %cst_97 = arith.constant 0.000000e+00 : f32
      %295 = vector.broadcast %cst_97 : f32 to vector<8x64xf32>
      %c0_98 = arith.constant 0 : index
      %c0_99 = arith.constant 0 : index
      %296 = vector.load %arg14[%c0_98, %c0_99] : memref<24x64xf32, #tpu.memory_space<vmem>>, vector<8x64xf32>
      tpu.vector_store %arg14[%c0_98, %c0_99], %295 {strides = array<i32>} : memref<24x64xf32, #tpu.memory_space<vmem>>, vector<8x64xf32>,
    } else {
    }
    %c0 = arith.constant 0 : index
    %c0_1 = arith.constant 0 : index
    %c0_2 = arith.constant 0 : index
    %3 = vector.load %arg2[%c0, %c0_1, %c0_2] : memref<1x16x32xf32, #tpu.memory_space<vmem>>, vector<1x16x32xf32>
    %4 = vector.shape_cast %3 : vector<1x16x32xf32> to vector<16x32xf32>
    %5 = arith.mulf %4, %4 : vector<16x32xf32>
    %cst = arith.constant dense<0.000000e+00> : vector<16xf32>
    %6 = vector.multi_reduction <add>, %5, %cst [1] : vector<16x32xf32> to vector<16xf32>
    %7 = vector.shape_cast %6 : vector<16xf32> to vector<16x1xf32>
    %cst_3 = arith.constant 3.200000e+01 : f32
    %8 = vector.broadcast %cst_3 : f32 to vector<16x1xf32>
    %9 = arith.divf %7, %8 : vector<16x1xf32>
    %cst_4 = arith.constant 9.99999974E-6 : f32
    %10 = vector.broadcast %cst_4 : f32 to vector<16x1xf32>
    %11 = arith.addf %9, %10 : vector<16x1xf32>
    %12 = math.rsqrt %11 : vector<16x1xf32>
    %13 = vector.broadcast %12 : vector<16x1xf32> to vector<16x32xf32>
    %14 = arith.mulf %4, %13 : vector<16x32xf32>
    %c0_5 = arith.constant 0 : index
    %c0_6 = arith.constant 0 : index
    %15 = vector.load %arg3[%c0_5, %c0_6] : memref<1x32xf32, #tpu.memory_space<vmem>>, vector<1x32xf32>
    %16 = vector.broadcast %15 : vector<1x32xf32> to vector<16x32xf32>
    %17 = arith.mulf %14, %16 : vector<16x32xf32>
    %18 = arith.truncf %17 : vector<16x32xf32> to vector<16x32xbf16>
    %c0_7 = arith.constant 0 : index
    %c0_8 = arith.constant 0 : index
    %19 = vector.load %arg4[%c0_7, %c0_8] : memref<32x128xbf16, #tpu.memory_space<vmem>>, vector<32x128xbf16>
    %cst_9 = arith.constant dense<0.000000e+00> : vector<16x128xf32>
    %20 = tpu.matmul %18, %19, %cst_9 {dimension_numbers = #tpu.dot_dimension_numbers<[1], [0], [0], [1], [0, 0, 1, 1], [], []>} : vector<16x32xbf16>, vector<32x128xbf16>, vector<16x128xf32> -> vector<16x128xf32>
    %21 = vector.extract_strided_slice %20 {offsets = [0, 0], sizes = [16, 64], strides = [1, 1]} : vector<16x128xf32> to vector<16x64xf32>
    %22 = vector.extract_strided_slice %20 {offsets = [0, 64], sizes = [16, 64], strides = [1, 1]} : vector<16x128xf32> to vector<16x64xf32>
    %c8 = arith.constant 8 : index
    %c0_10 = arith.constant 0 : index
    %23 = vector.load %arg14[%c8, %c0_10] : memref<24x64xf32, #tpu.memory_space<vmem>>, vector<16x64xf32>
    tpu.vector_store %arg14[%c8, %c0_10], %21 {strides = array<i32>} : memref<24x64xf32, #tpu.memory_space<vmem>>, vector<16x64xf32>,
    %c5 = arith.constant 5 : index
    %c0_11 = arith.constant 0 : index
    %24 = vector.load %arg14[%c5, %c0_11] : memref<24x64xf32, #tpu.memory_space<vmem>>, vector<16x64xf32>
    %c0_12 = arith.constant 0 : index
    %c0_13 = arith.constant 0 : index
    %25 = vector.load %arg5[%c0_12, %c0_13] : memref<4x64xf32, #tpu.memory_space<vmem>>, vector<1x64xf32>
    %26 = vector.broadcast %25 : vector<1x64xf32> to vector<16x64xf32>
    %27 = arith.mulf %24, %26 : vector<16x64xf32>
    %c6 = arith.constant 6 : index
    %c0_14 = arith.constant 0 : index
    %28 = vector.load %arg14[%c6, %c0_14] : memref<24x64xf32, #tpu.memory_space<vmem>>, vector<16x64xf32>
    %c1 = arith.constant 1 : index
    %c0_15 = arith.constant 0 : index
    %29 = vector.load %arg5[%c1, %c0_15] : memref<4x64xf32, #tpu.memory_space<vmem>>, vector<1x64xf32>
    %30 = vector.broadcast %29 : vector<1x64xf32> to vector<16x64xf32>
    %31 = arith.mulf %28, %30 : vector<16x64xf32>
    %32 = arith.addf %27, %31 : vector<16x64xf32>
    %c7 = arith.constant 7 : index
    %c0_16 = arith.constant 0 : index
    %33 = vector.load %arg14[%c7, %c0_16] : memref<24x64xf32, #tpu.memory_space<vmem>>, vector<16x64xf32>
    %c2 = arith.constant 2 : index
    %c0_17 = arith.constant 0 : index
    %34 = vector.load %arg5[%c2, %c0_17] : memref<4x64xf32, #tpu.memory_space<vmem>>, vector<1x64xf32>
    %35 = vector.broadcast %34 : vector<1x64xf32> to vector<16x64xf32>
    %36 = arith.mulf %33, %35 : vector<16x64xf32>
    %37 = arith.addf %32, %36 : vector<16x64xf32>
    %c8_18 = arith.constant 8 : index
    %c0_19 = arith.constant 0 : index
    %38 = vector.load %arg14[%c8_18, %c0_19] : memref<24x64xf32, #tpu.memory_space<vmem>>, vector<16x64xf32>
    %c3 = arith.constant 3 : index
    %c0_20 = arith.constant 0 : index
    %39 = vector.load %arg5[%c3, %c0_20] : memref<4x64xf32, #tpu.memory_space<vmem>>, vector<1x64xf32>
    %40 = vector.broadcast %39 : vector<1x64xf32> to vector<16x64xf32>
    %41 = arith.mulf %38, %40 : vector<16x64xf32>
    %42 = arith.addf %37, %41 : vector<16x64xf32>
    %c0_21 = arith.constant 0 : index
    %c0_22 = arith.constant 0 : index
    %43 = vector.load %arg6[%c0_21, %c0_22] : memref<1x64xf32, #tpu.memory_space<vmem>>, vector<1x64xf32>
    %44 = vector.broadcast %43 : vector<1x64xf32> to vector<16x64xf32>
    %45 = arith.addf %42, %44 : vector<16x64xf32>
    %cst_23 = arith.constant 0.000000e+00 : f32
    %46 = vector.broadcast %cst_23 : f32 to vector<16x64xf32>
    %47 = arith.subf %46, %45 : vector<16x64xf32>
    %48 = math.exp %47 : vector<16x64xf32>
    %cst_24 = arith.constant 1.000000e+00 : f32
    %49 = vector.broadcast %cst_24 : f32 to vector<16x64xf32>
    %50 = arith.addf %49, %48 : vector<16x64xf32>
    %51 = tpu.reciprocal %50 {approx = true} : vector<16x64xf32> -> vector<16x64xf32>
    %52 = arith.mulf %45, %51 : vector<16x64xf32>
    %c0_25 = arith.constant 0 : index
    %c0_26 = arith.constant 0 : index
    %53 = vector.load %arg15[%c0_25, %c0_26] : memref<16x64xf32, #tpu.memory_space<vmem>>, vector<16x64xf32>
    tpu.vector_store %arg15[%c0_25, %c0_26], %52 {strides = array<i32>} : memref<16x64xf32, #tpu.memory_space<vmem>>, vector<16x64xf32>,
    %c21 = arith.constant 21 : index
    %c0_27 = arith.constant 0 : index
    %54 = vector.load %arg14[%c21, %c0_27] : memref<24x64xf32, #tpu.memory_space<vmem>>, vector<3x64xf32>
    %c5_28 = arith.constant 5 : index
    %c0_29 = arith.constant 0 : index
    %55 = vector.load %arg14[%c5_28, %c0_29] : memref<24x64xf32, #tpu.memory_space<vmem>>, vector<3x64xf32>
    tpu.vector_store %arg14[%c5_28, %c0_29], %54 {strides = array<i32>} : memref<24x64xf32, #tpu.memory_space<vmem>>, vector<3x64xf32>,
    %56 = arith.truncf %52 : vector<16x64xf32> to vector<16x64xbf16>
    %c0_30 = arith.constant 0 : index
    %c0_31 = arith.constant 0 : index
    %57 = vector.load %arg7[%c0_30, %c0_31] : memref<64x384xbf16, #tpu.memory_space<vmem>>, vector<64x384xbf16>
    %cst_32 = arith.constant dense<0.000000e+00> : vector<16x384xf32>
    %58 = tpu.matmul %56, %57, %cst_32 {dimension_numbers = #tpu.dot_dimension_numbers<[1], [0], [0], [1], [0, 0, 1, 1], [], []>} : vector<16x64xbf16>, vector<64x384xbf16>, vector<16x384xf32> -> vector<16x384xf32>
    %59 = vector.extract_strided_slice %58 {offsets = [0, 128], sizes = [16, 256], strides = [1, 1]} : vector<16x384xf32> to vector<16x256xf32>
    %c0_33 = arith.constant 0 : index
    %c0_34 = arith.constant 0 : index
    %60 = vector.load %arg18[%c0_33, %c0_34] : memref<16x256xf32, #tpu.memory_space<vmem>>, vector<16x256xf32>
    tpu.vector_store %arg18[%c0_33, %c0_34], %59 {strides = array<i32>} : memref<16x256xf32, #tpu.memory_space<vmem>>, vector<16x256xf32>,
    %61 = vector.extract_strided_slice %58 {offsets = [0, 0], sizes = [16, 128], strides = [1, 1]} : vector<16x384xf32> to vector<16x128xf32>
    %62 = arith.truncf %61 : vector<16x128xf32> to vector<16x128xbf16>
    %c0_35 = arith.constant 0 : index
    %c0_36 = arith.constant 0 : index
    %63 = vector.load %arg8[%c0_35, %c0_36] : memref<128x64xbf16, #tpu.memory_space<vmem>>, vector<128x64xbf16>
    %cst_37 = arith.constant dense<0.000000e+00> : vector<16x64xf32>
    %64 = tpu.matmul %62, %63, %cst_37 {dimension_numbers = #tpu.dot_dimension_numbers<[1], [0], [0], [1], [0, 0, 1, 1], [], []>} : vector<16x128xbf16>, vector<128x64xbf16>, vector<16x64xf32> -> vector<16x64xf32>
    %c0_38 = arith.constant 0 : index
    %c0_39 = arith.constant 0 : index
    %65 = vector.load %arg9[%c0_38, %c0_39] : memref<1x64xf32, #tpu.memory_space<vmem>>, vector<1x64xf32>
    %66 = vector.broadcast %65 : vector<1x64xf32> to vector<16x64xf32>
    %67 = arith.addf %64, %66 : vector<16x64xf32>
    %cst_40 = arith.constant 2.000000e+01 : f32
    %68 = vector.broadcast %cst_40 : f32 to vector<16x64xf32>
    %69 = arith.cmpf ogt, %67, %68 : vector<16x64xf32>
    %70 = math.exp %67 : vector<16x64xf32>
    %cst_41 = arith.constant 1.000000e+00 : f32
    %71 = vector.broadcast %cst_41 : f32 to vector<16x64xf32>
    %72 = arith.addf %71, %70 : vector<16x64xf32>
    %73 = math.log %72 : vector<16x64xf32>
    %74 = arith.select %69, %67, %73 : vector<16x64xi1>, vector<16x64xf32>
    %c0_42 = arith.constant 0 : index
    %c0_43 = arith.constant 0 : index
    %75 = vector.load %arg17[%c0_42, %c0_43] : memref<16x64xf32, #tpu.memory_space<vmem>>, vector<16x64xf32>
    tpu.vector_store %arg17[%c0_42, %c0_43], %74 {strides = array<i32>} : memref<16x64xf32, #tpu.memory_space<vmem>>, vector<16x64xf32>,
    %76 = arith.mulf %74, %52 : vector<16x64xf32>
    %c0_44 = arith.constant 0 : index
    %c0_45 = arith.constant 0 : index
    %77 = vector.load %arg16[%c0_44, %c0_45] : memref<16x64xf32, #tpu.memory_space<vmem>>, vector<16x64xf32>
    tpu.vector_store %arg16[%c0_44, %c0_45], %76 {strides = array<i32>} : memref<16x64xf32, #tpu.memory_space<vmem>>, vector<16x64xf32>,
    %c0_46 = arith.constant 0 : index
    %c0_47 = arith.constant 0 : index
    %78 = vector.load %arg10[%c0_46, %c0_47] : memref<16x64xf32, #tpu.memory_space<vmem>>, vector<16x64xf32>
    %79 = math.exp %78 : vector<16x64xf32>
    %cst_48 = arith.constant 0.000000e+00 : f32
    %80 = vector.broadcast %cst_48 : f32 to vector<16x64xf32>
    %81 = arith.subf %80, %79 : vector<16x64xf32>
    %c0_49 = arith.constant 0 : index
    %c0_50 = arith.constant 0 : index
    %82 = vector.load %arg20[%c0_49, %c0_50] : memref<16x64xf32, #tpu.memory_space<vmem>>, vector<16x64xf32>
    %c0_i32_51 = arith.constant 0 : i32
    %c8_i32 = arith.constant 8 : i32
    %83 = arith.muli %c0_i32_51, %c8_i32 : i32
    %84 = tpu.assume_multiple %83, 8 : i32
    %85 = arith.index_cast %84 : i32 to index
    %c0_52 = arith.constant 0 : index
    %86 = vector.load %arg17[%85, %c0_52] : memref<16x64xf32, #tpu.memory_space<vmem>>, vector<8x64xf32>
    %87 = arith.index_cast %84 : i32 to index
    %c0_53 = arith.constant 0 : index
    %88 = vector.load %arg16[%87, %c0_53] : memref<16x64xf32, #tpu.memory_space<vmem>>, vector<8x64xf32>
    %89 = arith.index_cast %84 : i32 to index
    %c0_54 = arith.constant 0 : index
    %90 = vector.load %arg18[%89, %c0_54] : memref<16x256xf32, #tpu.memory_space<vmem>>, vector<8x16xf32>
    %91 = arith.index_cast %84 : i32 to index
    %c128 = arith.constant 128 : index
    %92 = vector.load %arg18[%91, %c128] : memref<16x256xf32, #tpu.memory_space<vmem>>, vector<8x16xf32>
    %93 = vector.shape_cast %86 : vector<8x64xf32> to vector<8x1x64xf32>
    %94 = vector.shape_cast %81 : vector<16x64xf32> to vector<1x16x64xf32>
    %95 = vector.broadcast %93 : vector<8x1x64xf32> to vector<8x16x64xf32>
    %96 = vector.broadcast %94 : vector<1x16x64xf32> to vector<8x16x64xf32>
    %97 = arith.mulf %95, %96 : vector<8x16x64xf32>
    %98 = vector.shape_cast %97 : vector<8x16x64xf32> to vector<128x64xf32>
    %99 = math.exp %98 : vector<128x64xf32>
    %100 = vector.shape_cast %90 : vector<8x16xf32> to vector<8x16x1xf32>
    %101 = vector.shape_cast %88 : vector<8x64xf32> to vector<8x1x64xf32>
    %102 = vector.broadcast %100 : vector<8x16x1xf32> to vector<8x16x64xf32>
    %103 = vector.broadcast %101 : vector<8x1x64xf32> to vector<8x16x64xf32>
    %104 = arith.mulf %102, %103 : vector<8x16x64xf32>
    %105 = vector.shape_cast %104 : vector<8x16x64xf32> to vector<128x64xf32>
    %106 = vector.shape_cast %92 : vector<8x16xf32> to vector<8x16x1xf32>
    %107 = vector.shape_cast %106 : vector<8x16x1xf32> to vector<8x16x1xf32>
    %108 = vector.broadcast %107 : vector<8x16x1xf32> to vector<8x16x64xf32>
    %109 = vector.shape_cast %108 : vector<8x16x64xf32> to vector<128x64xf32>
    %110 = vector.extract_strided_slice %99 {offsets = [0, 0], sizes = [16, 64], strides = [1, 1]} : vector<128x64xf32> to vector<16x64xf32>
    %111 = arith.mulf %110, %82 : vector<16x64xf32>
    %112 = vector.extract_strided_slice %105 {offsets = [0, 0], sizes = [16, 64], strides = [1, 1]} : vector<128x64xf32> to vector<16x64xf32>
    %113 = arith.addf %111, %112 : vector<16x64xf32>
    %114 = vector.extract_strided_slice %109 {offsets = [0, 0], sizes = [16, 64], strides = [1, 1]} : vector<128x64xf32> to vector<16x64xf32>
    %115 = arith.mulf %113, %114 : vector<16x64xf32>
    %cst_55 = arith.constant dense<0.000000e+00> : vector<64xf32>
    %116 = vector.multi_reduction <add>, %115, %cst_55 [0] : vector<16x64xf32> to vector<64xf32>
    %117 = vector.shape_cast %116 : vector<64xf32> to vector<1x64xf32>
    %118 = vector.extract_strided_slice %99 {offsets = [16, 0], sizes = [16, 64], strides = [1, 1]} : vector<128x64xf32> to vector<16x64xf32>
    %119 = arith.mulf %118, %113 : vector<16x64xf32>
    %120 = vector.extract_strided_slice %105 {offsets = [16, 0], sizes = [16, 64], strides = [1, 1]} : vector<128x64xf32> to vector<16x64xf32>
    %121 = arith.addf %119, %120 : vector<16x64xf32>
    %122 = vector.extract_strided_slice %109 {offsets = [16, 0], sizes = [16, 64], strides = [1, 1]} : vector<128x64xf32> to vector<16x64xf32>
    %123 = arith.mulf %121, %122 : vector<16x64xf32>
    %cst_56 = arith.constant dense<0.000000e+00> : vector<64xf32>
    %124 = vector.multi_reduction <add>, %123, %cst_56 [0] : vector<16x64xf32> to vector<64xf32>
    %125 = vector.shape_cast %124 : vector<64xf32> to vector<1x64xf32>
    %126 = vector.extract_strided_slice %99 {offsets = [32, 0], sizes = [16, 64], strides = [1, 1]} : vector<128x64xf32> to vector<16x64xf32>
    %127 = arith.mulf %126, %121 : vector<16x64xf32>
    %128 = vector.extract_strided_slice %105 {offsets = [32, 0], sizes = [16, 64], strides = [1, 1]} : vector<128x64xf32> to vector<16x64xf32>
    %129 = arith.addf %127, %128 : vector<16x64xf32>
    %130 = vector.extract_strided_slice %109 {offsets = [32, 0], sizes = [16, 64], strides = [1, 1]} : vector<128x64xf32> to vector<16x64xf32>
    %131 = arith.mulf %129, %130 : vector<16x64xf32>
    %cst_57 = arith.constant dense<0.000000e+00> : vector<64xf32>
    %132 = vector.multi_reduction <add>, %131, %cst_57 [0] : vector<16x64xf32> to vector<64xf32>
    %133 = vector.shape_cast %132 : vector<64xf32> to vector<1x64xf32>
    %134 = vector.extract_strided_slice %99 {offsets = [48, 0], sizes = [16, 64], strides = [1, 1]} : vector<128x64xf32> to vector<16x64xf32>
    %135 = arith.mulf %134, %129 : vector<16x64xf32>
    %136 = vector.extract_strided_slice %105 {offsets = [48, 0], sizes = [16, 64], strides = [1, 1]} : vector<128x64xf32> to vector<16x64xf32>
    %137 = arith.addf %135, %136 : vector<16x64xf32>
    %138 = vector.extract_strided_slice %109 {offsets = [48, 0], sizes = [16, 64], strides = [1, 1]} : vector<128x64xf32> to vector<16x64xf32>
    %139 = arith.mulf %137, %138 : vector<16x64xf32>
    %cst_58 = arith.constant dense<0.000000e+00> : vector<64xf32>
    %140 = vector.multi_reduction <add>, %139, %cst_58 [0] : vector<16x64xf32> to vector<64xf32>
    %141 = vector.shape_cast %140 : vector<64xf32> to vector<1x64xf32>
    %142 = vector.extract_strided_slice %99 {offsets = [64, 0], sizes = [16, 64], strides = [1, 1]} : vector<128x64xf32> to vector<16x64xf32>
    %143 = arith.mulf %142, %137 : vector<16x64xf32>
    %144 = vector.extract_strided_slice %105 {offsets = [64, 0], sizes = [16, 64], strides = [1, 1]} : vector<128x64xf32> to vector<16x64xf32>
    %145 = arith.addf %143, %144 : vector<16x64xf32>
    %146 = vector.extract_strided_slice %109 {offsets = [64, 0], sizes = [16, 64], strides = [1, 1]} : vector<128x64xf32> to vector<16x64xf32>
    %147 = arith.mulf %145, %146 : vector<16x64xf32>
    %cst_59 = arith.constant dense<0.000000e+00> : vector<64xf32>
    %148 = vector.multi_reduction <add>, %147, %cst_59 [0] : vector<16x64xf32> to vector<64xf32>
    %149 = vector.shape_cast %148 : vector<64xf32> to vector<1x64xf32>
    %150 = vector.extract_strided_slice %99 {offsets = [80, 0], sizes = [16, 64], strides = [1, 1]} : vector<128x64xf32> to vector<16x64xf32>
    %151 = arith.mulf %150, %145 : vector<16x64xf32>
    %152 = vector.extract_strided_slice %105 {offsets = [80, 0], sizes = [16, 64], strides = [1, 1]} : vector<128x64xf32> to vector<16x64xf32>
    %153 = arith.addf %151, %152 : vector<16x64xf32>
    %154 = vector.extract_strided_slice %109 {offsets = [80, 0], sizes = [16, 64], strides = [1, 1]} : vector<128x64xf32> to vector<16x64xf32>
    %155 = arith.mulf %153, %154 : vector<16x64xf32>
    %cst_60 = arith.constant dense<0.000000e+00> : vector<64xf32>
    %156 = vector.multi_reduction <add>, %155, %cst_60 [0] : vector<16x64xf32> to vector<64xf32>
    %157 = vector.shape_cast %156 : vector<64xf32> to vector<1x64xf32>
    %158 = vector.extract_strided_slice %99 {offsets = [96, 0], sizes = [16, 64], strides = [1, 1]} : vector<128x64xf32> to vector<16x64xf32>
    %159 = arith.mulf %158, %153 : vector<16x64xf32>
    %160 = vector.extract_strided_slice %105 {offsets = [96, 0], sizes = [16, 64], strides = [1, 1]} : vector<128x64xf32> to vector<16x64xf32>
    %161 = arith.addf %159, %160 : vector<16x64xf32>
    %162 = vector.extract_strided_slice %109 {offsets = [96, 0], sizes = [16, 64], strides = [1, 1]} : vector<128x64xf32> to vector<16x64xf32>
    %163 = arith.mulf %161, %162 : vector<16x64xf32>
    %cst_61 = arith.constant dense<0.000000e+00> : vector<64xf32>
    %164 = vector.multi_reduction <add>, %163, %cst_61 [0] : vector<16x64xf32> to vector<64xf32>
    %165 = vector.shape_cast %164 : vector<64xf32> to vector<1x64xf32>
    %166 = vector.extract_strided_slice %99 {offsets = [112, 0], sizes = [16, 64], strides = [1, 1]} : vector<128x64xf32> to vector<16x64xf32>
    %167 = arith.mulf %166, %161 : vector<16x64xf32>
    %168 = vector.extract_strided_slice %105 {offsets = [112, 0], sizes = [16, 64], strides = [1, 1]} : vector<128x64xf32> to vector<16x64xf32>
    %169 = arith.addf %167, %168 : vector<16x64xf32>
    %170 = vector.extract_strided_slice %109 {offsets = [112, 0], sizes = [16, 64], strides = [1, 1]} : vector<128x64xf32> to vector<16x64xf32>
    %171 = arith.mulf %169, %170 : vector<16x64xf32>
    %cst_62 = arith.constant dense<0.000000e+00> : vector<64xf32>
    %172 = vector.multi_reduction <add>, %171, %cst_62 [0] : vector<16x64xf32> to vector<64xf32>
    %173 = vector.shape_cast %172 : vector<64xf32> to vector<1x64xf32>
    %174 = tpu.concatenate %117, %125, %133, %141, %149, %157, %165, %173 in 0 : vector<1x64xf32>, vector<1x64xf32>, vector<1x64xf32>, vector<1x64xf32>, vector<1x64xf32>, vector<1x64xf32>, vector<1x64xf32>, vector<1x64xf32> -> vector<8x64xf32>
    %175 = arith.index_cast %84 : i32 to index
    %c0_63 = arith.constant 0 : index
    %176 = vector.load %arg19[%175, %c0_63] : memref<16x64xf32, #tpu.memory_space<vmem>>, vector<8x64xf32>
    tpu.vector_store %arg19[%175, %c0_63], %174 {strides = array<i32>} : memref<16x64xf32, #tpu.memory_space<vmem>>, vector<8x64xf32>,
    %c1_i32 = arith.constant 1 : i32
    %c8_i32_64 = arith.constant 8 : i32
    %177 = arith.muli %c1_i32, %c8_i32_64 : i32
    %178 = tpu.assume_multiple %177, 8 : i32
    %179 = arith.index_cast %178 : i32 to index
    %c0_65 = arith.constant 0 : index
    %180 = vector.load %arg17[%179, %c0_65] : memref<16x64xf32, #tpu.memory_space<vmem>>, vector<8x64xf32>
    %181 = arith.index_cast %178 : i32 to index
    %c0_66 = arith.constant 0 : index
    %182 = vector.load %arg16[%181, %c0_66] : memref<16x64xf32, #tpu.memory_space<vmem>>, vector<8x64xf32>
    %183 = arith.index_cast %178 : i32 to index
    %c0_67 = arith.constant 0 : index
    %184 = vector.load %arg18[%183, %c0_67] : memref<16x256xf32, #tpu.memory_space<vmem>>, vector<8x16xf32>
    %185 = arith.index_cast %178 : i32 to index
    %c128_68 = arith.constant 128 : index
    %186 = vector.load %arg18[%185, %c128_68] : memref<16x256xf32, #tpu.memory_space<vmem>>, vector<8x16xf32>
    %187 = vector.shape_cast %180 : vector<8x64xf32> to vector<8x1x64xf32>
    %188 = vector.shape_cast %81 : vector<16x64xf32> to vector<1x16x64xf32>
    %189 = vector.broadcast %187 : vector<8x1x64xf32> to vector<8x16x64xf32>
    %190 = vector.broadcast %188 : vector<1x16x64xf32> to vector<8x16x64xf32>
    %191 = arith.mulf %189, %190 : vector<8x16x64xf32>
    %192 = vector.shape_cast %191 : vector<8x16x64xf32> to vector<128x64xf32>
    %193 = math.exp %192 : vector<128x64xf32>
    %194 = vector.shape_cast %184 : vector<8x16xf32> to vector<8x16x1xf32>
    %195 = vector.shape_cast %182 : vector<8x64xf32> to vector<8x1x64xf32>
    %196 = vector.broadcast %194 : vector<8x16x1xf32> to vector<8x16x64xf32>
    %197 = vector.broadcast %195 : vector<8x1x64xf32> to vector<8x16x64xf32>
    %198 = arith.mulf %196, %197 : vector<8x16x64xf32>
    %199 = vector.shape_cast %198 : vector<8x16x64xf32> to vector<128x64xf32>
    %200 = vector.shape_cast %186 : vector<8x16xf32> to vector<8x16x1xf32>
    %201 = vector.shape_cast %200 : vector<8x16x1xf32> to vector<8x16x1xf32>
    %202 = vector.broadcast %201 : vector<8x16x1xf32> to vector<8x16x64xf32>
    %203 = vector.shape_cast %202 : vector<8x16x64xf32> to vector<128x64xf32>
    %204 = vector.extract_strided_slice %193 {offsets = [0, 0], sizes = [16, 64], strides = [1, 1]} : vector<128x64xf32> to vector<16x64xf32>
    %205 = arith.mulf %204, %169 : vector<16x64xf32>
    %206 = vector.extract_strided_slice %199 {offsets = [0, 0], sizes = [16, 64], strides = [1, 1]} : vector<128x64xf32> to vector<16x64xf32>
    %207 = arith.addf %205, %206 : vector<16x64xf32>
    %208 = vector.extract_strided_slice %203 {offsets = [0, 0], sizes = [16, 64], strides = [1, 1]} : vector<128x64xf32> to vector<16x64xf32>
    %209 = arith.mulf %207, %208 : vector<16x64xf32>
    %cst_69 = arith.constant dense<0.000000e+00> : vector<64xf32>
    %210 = vector.multi_reduction <add>, %209, %cst_69 [0] : vector<16x64xf32> to vector<64xf32>
    %211 = vector.shape_cast %210 : vector<64xf32> to vector<1x64xf32>
    %212 = vector.extract_strided_slice %193 {offsets = [16, 0], sizes = [16, 64], strides = [1, 1]} : vector<128x64xf32> to vector<16x64xf32>
    %213 = arith.mulf %212, %207 : vector<16x64xf32>
    %214 = vector.extract_strided_slice %199 {offsets = [16, 0], sizes = [16, 64], strides = [1, 1]} : vector<128x64xf32> to vector<16x64xf32>
    %215 = arith.addf %213, %214 : vector<16x64xf32>
    %216 = vector.extract_strided_slice %203 {offsets = [16, 0], sizes = [16, 64], strides = [1, 1]} : vector<128x64xf32> to vector<16x64xf32>
    %217 = arith.mulf %215, %216 : vector<16x64xf32>
    %cst_70 = arith.constant dense<0.000000e+00> : vector<64xf32>
    %218 = vector.multi_reduction <add>, %217, %cst_70 [0] : vector<16x64xf32> to vector<64xf32>
    %219 = vector.shape_cast %218 : vector<64xf32> to vector<1x64xf32>
    %220 = vector.extract_strided_slice %193 {offsets = [32, 0], sizes = [16, 64], strides = [1, 1]} : vector<128x64xf32> to vector<16x64xf32>
    %221 = arith.mulf %220, %215 : vector<16x64xf32>
    %222 = vector.extract_strided_slice %199 {offsets = [32, 0], sizes = [16, 64], strides = [1, 1]} : vector<128x64xf32> to vector<16x64xf32>
    %223 = arith.addf %221, %222 : vector<16x64xf32>
    %224 = vector.extract_strided_slice %203 {offsets = [32, 0], sizes = [16, 64], strides = [1, 1]} : vector<128x64xf32> to vector<16x64xf32>
    %225 = arith.mulf %223, %224 : vector<16x64xf32>
    %cst_71 = arith.constant dense<0.000000e+00> : vector<64xf32>
    %226 = vector.multi_reduction <add>, %225, %cst_71 [0] : vector<16x64xf32> to vector<64xf32>
    %227 = vector.shape_cast %226 : vector<64xf32> to vector<1x64xf32>
    %228 = vector.extract_strided_slice %193 {offsets = [48, 0], sizes = [16, 64], strides = [1, 1]} : vector<128x64xf32> to vector<16x64xf32>
    %229 = arith.mulf %228, %223 : vector<16x64xf32>
    %230 = vector.extract_strided_slice %199 {offsets = [48, 0], sizes = [16, 64], strides = [1, 1]} : vector<128x64xf32> to vector<16x64xf32>
    %231 = arith.addf %229, %230 : vector<16x64xf32>
    %232 = vector.extract_strided_slice %203 {offsets = [48, 0], sizes = [16, 64], strides = [1, 1]} : vector<128x64xf32> to vector<16x64xf32>
    %233 = arith.mulf %231, %232 : vector<16x64xf32>
    %cst_72 = arith.constant dense<0.000000e+00> : vector<64xf32>
    %234 = vector.multi_reduction <add>, %233, %cst_72 [0] : vector<16x64xf32> to vector<64xf32>
    %235 = vector.shape_cast %234 : vector<64xf32> to vector<1x64xf32>
    %236 = vector.extract_strided_slice %193 {offsets = [64, 0], sizes = [16, 64], strides = [1, 1]} : vector<128x64xf32> to vector<16x64xf32>
    %237 = arith.mulf %236, %231 : vector<16x64xf32>
    %238 = vector.extract_strided_slice %199 {offsets = [64, 0], sizes = [16, 64], strides = [1, 1]} : vector<128x64xf32> to vector<16x64xf32>
    %239 = arith.addf %237, %238 : vector<16x64xf32>
    %240 = vector.extract_strided_slice %203 {offsets = [64, 0], sizes = [16, 64], strides = [1, 1]} : vector<128x64xf32> to vector<16x64xf32>
    %241 = arith.mulf %239, %240 : vector<16x64xf32>
    %cst_73 = arith.constant dense<0.000000e+00> : vector<64xf32>
    %242 = vector.multi_reduction <add>, %241, %cst_73 [0] : vector<16x64xf32> to vector<64xf32>
    %243 = vector.shape_cast %242 : vector<64xf32> to vector<1x64xf32>
    %244 = vector.extract_strided_slice %193 {offsets = [80, 0], sizes = [16, 64], strides = [1, 1]} : vector<128x64xf32> to vector<16x64xf32>
    %245 = arith.mulf %244, %239 : vector<16x64xf32>
    %246 = vector.extract_strided_slice %199 {offsets = [80, 0], sizes = [16, 64], strides = [1, 1]} : vector<128x64xf32> to vector<16x64xf32>
    %247 = arith.addf %245, %246 : vector<16x64xf32>
    %248 = vector.extract_strided_slice %203 {offsets = [80, 0], sizes = [16, 64], strides = [1, 1]} : vector<128x64xf32> to vector<16x64xf32>
    %249 = arith.mulf %247, %248 : vector<16x64xf32>
    %cst_74 = arith.constant dense<0.000000e+00> : vector<64xf32>
    %250 = vector.multi_reduction <add>, %249, %cst_74 [0] : vector<16x64xf32> to vector<64xf32>
    %251 = vector.shape_cast %250 : vector<64xf32> to vector<1x64xf32>
    %252 = vector.extract_strided_slice %193 {offsets = [96, 0], sizes = [16, 64], strides = [1, 1]} : vector<128x64xf32> to vector<16x64xf32>
    %253 = arith.mulf %252, %247 : vector<16x64xf32>
    %254 = vector.extract_strided_slice %199 {offsets = [96, 0], sizes = [16, 64], strides = [1, 1]} : vector<128x64xf32> to vector<16x64xf32>
    %255 = arith.addf %253, %254 : vector<16x64xf32>
    %256 = vector.extract_strided_slice %203 {offsets = [96, 0], sizes = [16, 64], strides = [1, 1]} : vector<128x64xf32> to vector<16x64xf32>
    %257 = arith.mulf %255, %256 : vector<16x64xf32>
    %cst_75 = arith.constant dense<0.000000e+00> : vector<64xf32>
    %258 = vector.multi_reduction <add>, %257, %cst_75 [0] : vector<16x64xf32> to vector<64xf32>
    %259 = vector.shape_cast %258 : vector<64xf32> to vector<1x64xf32>
    %260 = vector.extract_strided_slice %193 {offsets = [112, 0], sizes = [16, 64], strides = [1, 1]} : vector<128x64xf32> to vector<16x64xf32>
    %261 = arith.mulf %260, %255 : vector<16x64xf32>
    %262 = vector.extract_strided_slice %199 {offsets = [112, 0], sizes = [16, 64], strides = [1, 1]} : vector<128x64xf32> to vector<16x64xf32>
    %263 = arith.addf %261, %262 : vector<16x64xf32>
    %264 = vector.extract_strided_slice %203 {offsets = [112, 0], sizes = [16, 64], strides = [1, 1]} : vector<128x64xf32> to vector<16x64xf32>
    %265 = arith.mulf %263, %264 : vector<16x64xf32>
    %cst_76 = arith.constant dense<0.000000e+00> : vector<64xf32>
    %266 = vector.multi_reduction <add>, %265, %cst_76 [0] : vector<16x64xf32> to vector<64xf32>
    %267 = vector.shape_cast %266 : vector<64xf32> to vector<1x64xf32>
    %268 = tpu.concatenate %211, %219, %227, %235, %243, %251, %259, %267 in 0 : vector<1x64xf32>, vector<1x64xf32>, vector<1x64xf32>, vector<1x64xf32>, vector<1x64xf32>, vector<1x64xf32>, vector<1x64xf32>, vector<1x64xf32> -> vector<8x64xf32>
    %269 = arith.index_cast %178 : i32 to index
    %c0_77 = arith.constant 0 : index
    %270 = vector.load %arg19[%269, %c0_77] : memref<16x64xf32, #tpu.memory_space<vmem>>, vector<8x64xf32>
    tpu.vector_store %arg19[%269, %c0_77], %268 {strides = array<i32>} : memref<16x64xf32, #tpu.memory_space<vmem>>, vector<8x64xf32>,
    %c2_i32 = arith.constant 2 : i32
    %c0_78 = arith.constant 0 : index
    %c0_79 = arith.constant 0 : index
    %271 = vector.load %arg20[%c0_78, %c0_79] : memref<16x64xf32, #tpu.memory_space<vmem>>, vector<16x64xf32>
    tpu.vector_store %arg20[%c0_78, %c0_79], %263 {strides = array<i32>} : memref<16x64xf32, #tpu.memory_space<vmem>>, vector<16x64xf32>,
    %c0_80 = arith.constant 0 : index
    %c0_81 = arith.constant 0 : index
    %272 = vector.load %arg19[%c0_80, %c0_81] : memref<16x64xf32, #tpu.memory_space<vmem>>, vector<16x64xf32>
    %c0_82 = arith.constant 0 : index
    %c0_83 = arith.constant 0 : index
    %273 = vector.load %arg15[%c0_82, %c0_83] : memref<16x64xf32, #tpu.memory_space<vmem>>, vector<16x64xf32>
    %c0_84 = arith.constant 0 : index
    %c0_85 = arith.constant 0 : index
    %274 = vector.load %arg11[%c0_84, %c0_85] : memref<1x64xf32, #tpu.memory_space<vmem>>, vector<1x64xf32>
    %275 = vector.broadcast %274 : vector<1x64xf32> to vector<16x64xf32>
    %276 = arith.mulf %273, %275 : vector<16x64xf32>
    %277 = arith.addf %272, %276 : vector<16x64xf32>
    %cst_86 = arith.constant 0.000000e+00 : f32
    %278 = vector.broadcast %cst_86 : f32 to vector<16x64xf32>
    %279 = arith.subf %278, %22 : vector<16x64xf32>
    %280 = math.exp %279 : vector<16x64xf32>
    %cst_87 = arith.constant 1.000000e+00 : f32
    %281 = vector.broadcast %cst_87 : f32 to vector<16x64xf32>
    %282 = arith.addf %281, %280 : vector<16x64xf32>
    %283 = tpu.reciprocal %282 {approx = true} : vector<16x64xf32> -> vector<16x64xf32>
    %284 = arith.mulf %22, %283 : vector<16x64xf32>
    %285 = arith.mulf %277, %284 : vector<16x64xf32>
    %286 = arith.truncf %285 : vector<16x64xf32> to vector<16x64xbf16>
    %c0_88 = arith.constant 0 : index
    %c0_89 = arith.constant 0 : index
    %287 = vector.load %arg12[%c0_88, %c0_89] : memref<64x32xbf16, #tpu.memory_space<vmem>>, vector<64x32xbf16>
    %cst_90 = arith.constant dense<0.000000e+00> : vector<16x32xf32>
    %288 = tpu.matmul %286, %287, %cst_90 {dimension_numbers = #tpu.dot_dimension_numbers<[1], [0], [0], [1], [0, 0, 1, 1], [], []>} : vector<16x64xbf16>, vector<64x32xbf16>, vector<16x32xf32> -> vector<16x32xf32>
    %289 = arith.addf %288, %4 : vector<16x32xf32>
    %c0_91 = arith.constant 0 : index
    %c0_92 = arith.constant 0 : index
    %c0_93 = arith.constant 0 : index
    %290 = vector.load %arg13[%c0_91, %c0_92, %c0_93] : memref<1x16x32xf32, #tpu.memory_space<vmem>>, vector<1x16x32xf32>
    %291 = vector.shape_cast %290 : vector<1x16x32xf32> to vector<16x32xf32>
    %292 = vector.shape_cast %289 : vector<16x32xf32> to vector<1x16x32xf32>
    tpu.vector_store %arg13[%c0_91, %c0_92, %c0_93], %292 {strides = array<i32>} : memref<1x16x32xf32, #tpu.memory_space<vmem>>, vector<1x16x32xf32>,
    return
  }
  func.func @transform_0(%arg0: i32, %arg1: i32) -> (i32, i32, i32) {
    %c0_i32 = arith.constant 0 : i32
    %c0_i32_0 = arith.constant 0 : i32
    return %arg0, %arg1, %c0_i32 : i32, i32, i32
  }
  func.func @transform_1(%arg0: i32, %arg1: i32) -> (i32, i32) {
    %c0_i32 = arith.constant 0 : i32
    %c0_i32_0 = arith.constant 0 : i32
    %c0_i32_1 = arith.constant 0 : i32
    return %c0_i32, %c0_i32_0 : i32, i32
  }
  func.func @transform_2(%arg0: i32, %arg1: i32) -> (i32, i32) {
    %c0_i32 = arith.constant 0 : i32
    %c0_i32_0 = arith.constant 0 : i32
    %c0_i32_1 = arith.constant 0 : i32
    return %c0_i32, %c0_i32_0 : i32, i32
  }
  func.func @transform_3(%arg0: i32, %arg1: i32) -> (i32, i32) {
    %c0_i32 = arith.constant 0 : i32
    %c0_i32_0 = arith.constant 0 : i32
    %c0_i32_1 = arith.constant 0 : i32
    return %c0_i32, %c0_i32_0 : i32, i32
  }
  func.func @transform_4(%arg0: i32, %arg1: i32) -> (i32, i32) {
    %c0_i32 = arith.constant 0 : i32
    %c0_i32_0 = arith.constant 0 : i32
    %c0_i32_1 = arith.constant 0 : i32
    return %c0_i32, %c0_i32_0 : i32, i32
  }
  func.func @transform_5(%arg0: i32, %arg1: i32) -> (i32, i32) {
    %c0_i32 = arith.constant 0 : i32
    %c0_i32_0 = arith.constant 0 : i32
    %c0_i32_1 = arith.constant 0 : i32
    return %c0_i32, %c0_i32_0 : i32, i32
  }
  func.func @transform_6(%arg0: i32, %arg1: i32) -> (i32, i32) {
    %c0_i32 = arith.constant 0 : i32
    %c0_i32_0 = arith.constant 0 : i32
    %c0_i32_1 = arith.constant 0 : i32
    return %c0_i32, %c0_i32_0 : i32, i32
  }
  func.func @transform_7(%arg0: i32, %arg1: i32) -> (i32, i32) {
    %c0_i32 = arith.constant 0 : i32
    %c0_i32_0 = arith.constant 0 : i32
    %c0_i32_1 = arith.constant 0 : i32
    return %c0_i32, %c0_i32_0 : i32, i32
  }
  func.func @transform_8(%arg0: i32, %arg1: i32) -> (i32, i32) {
    %c0_i32 = arith.constant 0 : i32
    %c0_i32_0 = arith.constant 0 : i32
    %c0_i32_1 = arith.constant 0 : i32
    return %c0_i32, %c0_i32_0 : i32, i32
  }
  func.func @transform_9(%arg0: i32, %arg1: i32) -> (i32, i32) {
    %c0_i32 = arith.constant 0 : i32
    %c0_i32_0 = arith.constant 0 : i32
    %c0_i32_1 = arith.constant 0 : i32
    return %c0_i32, %c0_i32_0 : i32, i32
  }
  func.func @transform_10(%arg0: i32, %arg1: i32) -> (i32, i32) {
    %c0_i32 = arith.constant 0 : i32
    %c0_i32_0 = arith.constant 0 : i32
    %c0_i32_1 = arith.constant 0 : i32
    return %c0_i32, %c0_i32_0 : i32, i32
  }
  func.func @transform_11(%arg0: i32, %arg1: i32) -> (i32, i32, i32) {
    %c0_i32 = arith.constant 0 : i32
    %c0_i32_0 = arith.constant 0 : i32
    return %arg0, %arg1, %c0_i32 : i32, i32, i32
  }
}

module attributes {stable_mosaic.version = 11 : i64} {
  func.func @kernel(%arg0: i32, %arg1: i32, %arg2: memref<1x16x32xf32, #tpu.memory_space<vmem>>, %arg3: memref<1x32xf32, #tpu.memory_space<vmem>>, %arg4: memref<32x128xbf16, #tpu.memory_space<vmem>>, %arg5: memref<4x64xf32, #tpu.memory_space<vmem>>, %arg6: memref<1x64xf32, #tpu.memory_space<vmem>>, %arg7: memref<64x384xbf16, #tpu.memory_space<vmem>>, %arg8: memref<128x64xbf16, #tpu.memory_space<vmem>>, %arg9: memref<1x64xf32, #tpu.memory_space<vmem>>, %arg10: memref<16x64xf32, #tpu.memory_space<vmem>>, %arg11: memref<1x64xf32, #tpu.memory_space<vmem>>, %arg12: memref<64x32xbf16, #tpu.memory_space<vmem>>, %arg13: memref<1x16x32xf32, #tpu.memory_space<vmem>>, %arg14: memref<24x64xf32, #tpu.memory_space<vmem>>, %arg15: memref<16x64xf32, #tpu.memory_space<vmem>>, %arg16: memref<16x64xf32, #tpu.memory_space<vmem>>, %arg17: memref<16x64xf32, #tpu.memory_space<vmem>>, %arg18: memref<16x256xf32, #tpu.memory_space<vmem>>, %arg19: memref<16x64xf32, #tpu.memory_space<vmem>>, %arg20: memref<16x64xf32, #tpu.memory_space<vmem>>) attributes {dimension_semantics = [#tpu.dimension_semantics<parallel>, #tpu.dimension_semantics<arbitrary>], iteration_bounds = array<i64: 2, 2>, scalar_prefetch = 0 : i64, scratch_operands = 7 : i64, tpu.core_type = #tpu.core_type<tc>, window_params = [{transform_indices = @transform_0, window_bounds = array<i64: 1, 16, 32>}, {pipeline_mode = #tpu.pipeline_mode<synchronous>, transform_indices = @transform_1, window_bounds = array<i64: 1, 32>}, {pipeline_mode = #tpu.pipeline_mode<synchronous>, transform_indices = @transform_2, window_bounds = array<i64: 32, 128>}, {pipeline_mode = #tpu.pipeline_mode<synchronous>, transform_indices = @transform_3, window_bounds = array<i64: 4, 64>}, {pipeline_mode = #tpu.pipeline_mode<synchronous>, transform_indices = @transform_4, window_bounds = array<i64: 1, 64>}, {pipeline_mode = #tpu.pipeline_mode<synchronous>, transform_indices = @transform_5, window_bounds = array<i64: 64, 384>}, {pipeline_mode = #tpu.pipeline_mode<synchronous>, transform_indices = @transform_6, window_bounds = array<i64: 128, 64>}, {pipeline_mode = #tpu.pipeline_mode<synchronous>, transform_indices = @transform_7, window_bounds = array<i64: 1, 64>}, {pipeline_mode = #tpu.pipeline_mode<synchronous>, transform_indices = @transform_8, window_bounds = array<i64: 16, 64>}, {pipeline_mode = #tpu.pipeline_mode<synchronous>, transform_indices = @transform_9, window_bounds = array<i64: 1, 64>}, {pipeline_mode = #tpu.pipeline_mode<synchronous>, transform_indices = @transform_10, window_bounds = array<i64: 64, 32>}, {transform_indices = @transform_11, window_bounds = array<i64: 1, 16, 32>}]} {
    %c0_i32 = arith.constant 0 : i32
    %0 = arith.cmpi eq, %arg1, %c0_i32 : i32
    %1 = arith.extui %0 : i1 to i32
    %c0_i32_0 = arith.constant 0 : i32
    %2 = arith.cmpi ne, %1, %c0_i32_0 : i32
    scf.if %2 {
      %cst_94 = arith.constant 0.000000e+00 : f32
      %293 = vector.broadcast %cst_94 : f32 to vector<16x64xf32>
      %c0_95 = arith.constant 0 : index
      %c0_96 = arith.constant 0 : index
      %294 = vector.load %arg20[%c0_95, %c0_96] : memref<16x64xf32, #tpu.memory_space<vmem>>, vector<16x64xf32>
      tpu.vector_store %arg20[%c0_95, %c0_96], %293 {strides = array<i32>} : memref<16x64xf32, #tpu.memory_space<vmem>>, vector<16x64xf32>,
      %cst_97 = arith.constant 0.000000e+00 : f32
      %295 = vector.broadcast %cst_97 : f32 to vector<8x64xf32>
      %c0_98 = arith.constant 0 : index
      %c0_99 = arith.constant 0 : index
      %296 = vector.load %arg14[%c0_98, %c0_99] : memref<24x64xf32, #tpu.memory_space<vmem>>, vector<8x64xf32>
      tpu.vector_store %arg14[%c0_98, %c0_99], %295 {strides = array<i32>} : memref<24x64xf32, #tpu.memory_space<vmem>>, vector<8x64xf32>,
    } else {
    }
    %c0 = arith.constant 0 : index
    %c0_1 = arith.constant 0 : index
    %c0_2 = arith.constant 0 : index
    %3 = vector.load %arg2[%c0, %c0_1, %c0_2] : memref<1x16x32xf32, #tpu.memory_space<vmem>>, vector<1x16x32xf32>
    %4 = vector.shape_cast %3 : vector<1x16x32xf32> to vector<16x32xf32>
    %5 = arith.mulf %4, %4 : vector<16x32xf32>
    %cst = arith.constant dense<0.000000e+00> : vector<16xf32>
    %6 = vector.multi_reduction <add>, %5, %cst [1] : vector<16x32xf32> to vector<16xf32>
    %7 = vector.shape_cast %6 : vector<16xf32> to vector<16x1xf32>
    %cst_3 = arith.constant 3.200000e+01 : f32
    %8 = vector.broadcast %cst_3 : f32 to vector<16x1xf32>
    %9 = arith.divf %7, %8 : vector<16x1xf32>
    %cst_4 = arith.constant 9.99999974E-6 : f32
    %10 = vector.broadcast %cst_4 : f32 to vector<16x1xf32>
    %11 = arith.addf %9, %10 : vector<16x1xf32>
    %12 = math.rsqrt %11 : vector<16x1xf32>
    %13 = vector.broadcast %12 : vector<16x1xf32> to vector<16x32xf32>
    %14 = arith.mulf %4, %13 : vector<16x32xf32>
    %c0_5 = arith.constant 0 : index
    %c0_6 = arith.constant 0 : index
    %15 = vector.load %arg3[%c0_5, %c0_6] : memref<1x32xf32, #tpu.memory_space<vmem>>, vector<1x32xf32>
    %16 = vector.broadcast %15 : vector<1x32xf32> to vector<16x32xf32>
    %17 = arith.mulf %14, %16 : vector<16x32xf32>
    %18 = arith.truncf %17 : vector<16x32xf32> to vector<16x32xbf16>
    %c0_7 = arith.constant 0 : index
    %c0_8 = arith.constant 0 : index
    %19 = vector.load %arg4[%c0_7, %c0_8] : memref<32x128xbf16, #tpu.memory_space<vmem>>, vector<32x128xbf16>
    %cst_9 = arith.constant dense<0.000000e+00> : vector<16x128xf32>
    %20 = tpu.matmul %18, %19, %cst_9 {dimension_numbers = #tpu.dot_dimension_numbers<[1], [0], [0], [1], [0, 0, 1, 1], [], []>} : vector<16x32xbf16>, vector<32x128xbf16>, vector<16x128xf32> -> vector<16x128xf32>
    %21 = vector.extract_strided_slice %20 {offsets = [0, 0], sizes = [16, 64], strides = [1, 1]} : vector<16x128xf32> to vector<16x64xf32>
    %22 = vector.extract_strided_slice %20 {offsets = [0, 64], sizes = [16, 64], strides = [1, 1]} : vector<16x128xf32> to vector<16x64xf32>
    %c8 = arith.constant 8 : index
    %c0_10 = arith.constant 0 : index
    %23 = vector.load %arg14[%c8, %c0_10] : memref<24x64xf32, #tpu.memory_space<vmem>>, vector<16x64xf32>
    tpu.vector_store %arg14[%c8, %c0_10], %21 {strides = array<i32>} : memref<24x64xf32, #tpu.memory_space<vmem>>, vector<16x64xf32>,
    %c5 = arith.constant 5 : index
    %c0_11 = arith.constant 0 : index
    %24 = vector.load %arg14[%c5, %c0_11] : memref<24x64xf32, #tpu.memory_space<vmem>>, vector<16x64xf32>
    %c0_12 = arith.constant 0 : index
    %c0_13 = arith.constant 0 : index
    %25 = vector.load %arg5[%c0_12, %c0_13] : memref<4x64xf32, #tpu.memory_space<vmem>>, vector<1x64xf32>
    %26 = vector.broadcast %25 : vector<1x64xf32> to vector<16x64xf32>
    %27 = arith.mulf %24, %26 : vector<16x64xf32>
    %c6 = arith.constant 6 : index
    %c0_14 = arith.constant 0 : index
    %28 = vector.load %arg14[%c6, %c0_14] : memref<24x64xf32, #tpu.memory_space<vmem>>, vector<16x64xf32>
    %c1 = arith.constant 1 : index
    %c0_15 = arith.constant 0 : index
    %29 = vector.load %arg5[%c1, %c0_15] : memref<4x64xf32, #tpu.memory_space<vmem>>, vector<1x64xf32>
    %30 = vector.broadcast %29 : vector<1x64xf32> to vector<16x64xf32>
    %31 = arith.mulf %28, %30 : vector<16x64xf32>
    %32 = arith.addf %27, %31 : vector<16x64xf32>
    %c7 = arith.constant 7 : index
    %c0_16 = arith.constant 0 : index
    %33 = vector.load %arg14[%c7, %c0_16] : memref<24x64xf32, #tpu.memory_space<vmem>>, vector<16x64xf32>
    %c2 = arith.constant 2 : index
    %c0_17 = arith.constant 0 : index
    %34 = vector.load %arg5[%c2, %c0_17] : memref<4x64xf32, #tpu.memory_space<vmem>>, vector<1x64xf32>
    %35 = vector.broadcast %34 : vector<1x64xf32> to vector<16x64xf32>
    %36 = arith.mulf %33, %35 : vector<16x64xf32>
    %37 = arith.addf %32, %36 : vector<16x64xf32>
    %c8_18 = arith.constant 8 : index
    %c0_19 = arith.constant 0 : index
    %38 = vector.load %arg14[%c8_18, %c0_19] : memref<24x64xf32, #tpu.memory_space<vmem>>, vector<16x64xf32>
    %c3 = arith.constant 3 : index
    %c0_20 = arith.constant 0 : index
    %39 = vector.load %arg5[%c3, %c0_20] : memref<4x64xf32, #tpu.memory_space<vmem>>, vector<1x64xf32>
    %40 = vector.broadcast %39 : vector<1x64xf32> to vector<16x64xf32>
    %41 = arith.mulf %38, %40 : vector<16x64xf32>
    %42 = arith.addf %37, %41 : vector<16x64xf32>
    %c0_21 = arith.constant 0 : index
    %c0_22 = arith.constant 0 : index
    %43 = vector.load %arg6[%c0_21, %c0_22] : memref<1x64xf32, #tpu.memory_space<vmem>>, vector<1x64xf32>
    %44 = vector.broadcast %43 : vector<1x64xf32> to vector<16x64xf32>
    %45 = arith.addf %42, %44 : vector<16x64xf32>
    %cst_23 = arith.constant 0.000000e+00 : f32
    %46 = vector.broadcast %cst_23 : f32 to vector<16x64xf32>
    %47 = arith.subf %46, %45 : vector<16x64xf32>
    %48 = math.exp %47 : vector<16x64xf32>
    %cst_24 = arith.constant 1.000000e+00 : f32
    %49 = vector.broadcast %cst_24 : f32 to vector<16x64xf32>
    %50 = arith.addf %49, %48 : vector<16x64xf32>
    %51 = tpu.reciprocal %50 {approx = true} : vector<16x64xf32> -> vector<16x64xf32>
    %52 = arith.mulf %45, %51 : vector<16x64xf32>
    %c0_25 = arith.constant 0 : index
    %c0_26 = arith.constant 0 : index
    %53 = vector.load %arg15[%c0_25, %c0_26] : memref<16x64xf32, #tpu.memory_space<vmem>>, vector<16x64xf32>
    tpu.vector_store %arg15[%c0_25, %c0_26], %52 {strides = array<i32>} : memref<16x64xf32, #tpu.memory_space<vmem>>, vector<16x64xf32>,
    %c21 = arith.constant 21 : index
    %c0_27 = arith.constant 0 : index
    %54 = vector.load %arg14[%c21, %c0_27] : memref<24x64xf32, #tpu.memory_space<vmem>>, vector<3x64xf32>
    %c5_28 = arith.constant 5 : index
    %c0_29 = arith.constant 0 : index
    %55 = vector.load %arg14[%c5_28, %c0_29] : memref<24x64xf32, #tpu.memory_space<vmem>>, vector<3x64xf32>
    tpu.vector_store %arg14[%c5_28, %c0_29], %54 {strides = array<i32>} : memref<24x64xf32, #tpu.memory_space<vmem>>, vector<3x64xf32>,
    %56 = arith.truncf %52 : vector<16x64xf32> to vector<16x64xbf16>
    %c0_30 = arith.constant 0 : index
    %c0_31 = arith.constant 0 : index
    %57 = vector.load %arg7[%c0_30, %c0_31] : memref<64x384xbf16, #tpu.memory_space<vmem>>, vector<64x384xbf16>
    %cst_32 = arith.constant dense<0.000000e+00> : vector<16x384xf32>
    %58 = tpu.matmul %56, %57, %cst_32 {dimension_numbers = #tpu.dot_dimension_numbers<[1], [0], [0], [1], [0, 0, 1, 1], [], []>} : vector<16x64xbf16>, vector<64x384xbf16>, vector<16x384xf32> -> vector<16x384xf32>
    %59 = vector.extract_strided_slice %58 {offsets = [0, 128], sizes = [16, 256], strides = [1, 1]} : vector<16x384xf32> to vector<16x256xf32>
    %c0_33 = arith.constant 0 : index
    %c0_34 = arith.constant 0 : index
    %60 = vector.load %arg18[%c0_33, %c0_34] : memref<16x256xf32, #tpu.memory_space<vmem>>, vector<16x256xf32>
    tpu.vector_store %arg18[%c0_33, %c0_34], %59 {strides = array<i32>} : memref<16x256xf32, #tpu.memory_space<vmem>>, vector<16x256xf32>,
    %61 = vector.extract_strided_slice %58 {offsets = [0, 0], sizes = [16, 128], strides = [1, 1]} : vector<16x384xf32> to vector<16x128xf32>
    %62 = arith.truncf %61 : vector<16x128xf32> to vector<16x128xbf16>
    %c0_35 = arith.constant 0 : index
    %c0_36 = arith.constant 0 : index
    %63 = vector.load %arg8[%c0_35, %c0_36] : memref<128x64xbf16, #tpu.memory_space<vmem>>, vector<128x64xbf16>
    %cst_37 = arith.constant dense<0.000000e+00> : vector<16x64xf32>
    %64 = tpu.matmul %62, %63, %cst_37 {dimension_numbers = #tpu.dot_dimension_numbers<[1], [0], [0], [1], [0, 0, 1, 1], [], []>} : vector<16x128xbf16>, vector<128x64xbf16>, vector<16x64xf32> -> vector<16x64xf32>
    %c0_38 = arith.constant 0 : index
    %c0_39 = arith.constant 0 : index
    %65 = vector.load %arg9[%c0_38, %c0_39] : memref<1x64xf32, #tpu.memory_space<vmem>>, vector<1x64xf32>
    %66 = vector.broadcast %65 : vector<1x64xf32> to vector<16x64xf32>
    %67 = arith.addf %64, %66 : vector<16x64xf32>
    %cst_40 = arith.constant 2.000000e+01 : f32
    %68 = vector.broadcast %cst_40 : f32 to vector<16x64xf32>
    %69 = arith.cmpf ogt, %67, %68 : vector<16x64xf32>
    %70 = math.exp %67 : vector<16x64xf32>
    %cst_41 = arith.constant 1.000000e+00 : f32
    %71 = vector.broadcast %cst_41 : f32 to vector<16x64xf32>
    %72 = arith.addf %71, %70 : vector<16x64xf32>
    %73 = math.log %72 : vector<16x64xf32>
    %74 = arith.select %69, %67, %73 : vector<16x64xi1>, vector<16x64xf32>
    %c0_42 = arith.constant 0 : index
    %c0_43 = arith.constant 0 : index
    %75 = vector.load %arg17[%c0_42, %c0_43] : memref<16x64xf32, #tpu.memory_space<vmem>>, vector<16x64xf32>
    tpu.vector_store %arg17[%c0_42, %c0_43], %74 {strides = array<i32>} : memref<16x64xf32, #tpu.memory_space<vmem>>, vector<16x64xf32>,
    %76 = arith.mulf %74, %52 : vector<16x64xf32>
    %c0_44 = arith.constant 0 : index
    %c0_45 = arith.constant 0 : index
    %77 = vector.load %arg16[%c0_44, %c0_45] : memref<16x64xf32, #tpu.memory_space<vmem>>, vector<16x64xf32>
    tpu.vector_store %arg16[%c0_44, %c0_45], %76 {strides = array<i32>} : memref<16x64xf32, #tpu.memory_space<vmem>>, vector<16x64xf32>,
    %c0_46 = arith.constant 0 : index
    %c0_47 = arith.constant 0 : index
    %78 = vector.load %arg10[%c0_46, %c0_47] : memref<16x64xf32, #tpu.memory_space<vmem>>, vector<16x64xf32>
    %79 = math.exp %78 : vector<16x64xf32>
    %cst_48 = arith.constant 0.000000e+00 : f32
    %80 = vector.broadcast %cst_48 : f32 to vector<16x64xf32>
    %81 = arith.subf %80, %79 : vector<16x64xf32>
    %c0_49 = arith.constant 0 : index
    %c0_50 = arith.constant 0 : index
    %82 = vector.load %arg20[%c0_49, %c0_50] : memref<16x64xf32, #tpu.memory_space<vmem>>, vector<16x64xf32>
    %c0_i32_51 = arith.constant 0 : i32
    %c8_i32 = arith.constant 8 : i32
    %83 = arith.muli %c0_i32_51, %c8_i32 : i32
    %84 = tpu.assume_multiple %83, 8 : i32
    %85 = arith.index_cast %84 : i32 to index
    %c0_52 = arith.constant 0 : index
    %86 = vector.load %arg17[%85, %c0_52] : memref<16x64xf32, #tpu.memory_space<vmem>>, vector<8x64xf32>
    %87 = arith.index_cast %84 : i32 to index
    %c0_53 = arith.constant 0 : index
    %88 = vector.load %arg16[%87, %c0_53] : memref<16x64xf32, #tpu.memory_space<vmem>>, vector<8x64xf32>
    %89 = arith.index_cast %84 : i32 to index
    %c0_54 = arith.constant 0 : index
    %90 = vector.load %arg18[%89, %c0_54] : memref<16x256xf32, #tpu.memory_space<vmem>>, vector<8x16xf32>
    %91 = arith.index_cast %84 : i32 to index
    %c128 = arith.constant 128 : index
    %92 = vector.load %arg18[%91, %c128] : memref<16x256xf32, #tpu.memory_space<vmem>>, vector<8x16xf32>
    %93 = vector.shape_cast %86 : vector<8x64xf32> to vector<8x1x64xf32>
    %94 = vector.shape_cast %81 : vector<16x64xf32> to vector<1x16x64xf32>
    %95 = vector.broadcast %93 : vector<8x1x64xf32> to vector<8x16x64xf32>
    %96 = vector.broadcast %94 : vector<1x16x64xf32> to vector<8x16x64xf32>
    %97 = arith.mulf %95, %96 : vector<8x16x64xf32>
    %98 = vector.shape_cast %97 : vector<8x16x64xf32> to vector<128x64xf32>
    %99 = math.exp %98 : vector<128x64xf32>
    %100 = vector.shape_cast %90 : vector<8x16xf32> to vector<8x16x1xf32>
    %101 = vector.shape_cast %88 : vector<8x64xf32> to vector<8x1x64xf32>
    %102 = vector.broadcast %100 : vector<8x16x1xf32> to vector<8x16x64xf32>
    %103 = vector.broadcast %101 : vector<8x1x64xf32> to vector<8x16x64xf32>
    %104 = arith.mulf %102, %103 : vector<8x16x64xf32>
    %105 = vector.shape_cast %104 : vector<8x16x64xf32> to vector<128x64xf32>
    %106 = vector.shape_cast %92 : vector<8x16xf32> to vector<8x16x1xf32>
    %107 = vector.shape_cast %106 : vector<8x16x1xf32> to vector<8x16x1xf32>
    %108 = vector.broadcast %107 : vector<8x16x1xf32> to vector<8x16x64xf32>
    %109 = vector.shape_cast %108 : vector<8x16x64xf32> to vector<128x64xf32>
    %110 = vector.extract_strided_slice %99 {offsets = [0, 0], sizes = [16, 64], strides = [1, 1]} : vector<128x64xf32> to vector<16x64xf32>
    %111 = arith.mulf %110, %82 : vector<16x64xf32>
    %112 = vector.extract_strided_slice %105 {offsets = [0, 0], sizes = [16, 64], strides = [1, 1]} : vector<128x64xf32> to vector<16x64xf32>
    %113 = arith.addf %111, %112 : vector<16x64xf32>
    %114 = vector.extract_strided_slice %109 {offsets = [0, 0], sizes = [16, 64], strides = [1, 1]} : vector<128x64xf32> to vector<16x64xf32>
    %115 = arith.mulf %113, %114 : vector<16x64xf32>
    %cst_55 = arith.constant dense<0.000000e+00> : vector<64xf32>
    %116 = vector.multi_reduction <add>, %115, %cst_55 [0] : vector<16x64xf32> to vector<64xf32>
    %117 = vector.shape_cast %116 : vector<64xf32> to vector<1x64xf32>
    %118 = vector.extract_strided_slice %99 {offsets = [16, 0], sizes = [16, 64], strides = [1, 1]} : vector<128x64xf32> to vector<16x64xf32>
    %119 = arith.mulf %118, %113 : vector<16x64xf32>
    %120 = vector.extract_strided_slice %105 {offsets = [16, 0], sizes = [16, 64], strides = [1, 1]} : vector<128x64xf32> to vector<16x64xf32>
    %121 = arith.addf %119, %120 : vector<16x64xf32>
    %122 = vector.extract_strided_slice %109 {offsets = [16, 0], sizes = [16, 64], strides = [1, 1]} : vector<128x64xf32> to vector<16x64xf32>
    %123 = arith.mulf %121, %122 : vector<16x64xf32>
    %cst_56 = arith.constant dense<0.000000e+00> : vector<64xf32>
    %124 = vector.multi_reduction <add>, %123, %cst_56 [0] : vector<16x64xf32> to vector<64xf32>
    %125 = vector.shape_cast %124 : vector<64xf32> to vector<1x64xf32>
    %126 = vector.extract_strided_slice %99 {offsets = [32, 0], sizes = [16, 64], strides = [1, 1]} : vector<128x64xf32> to vector<16x64xf32>
    %127 = arith.mulf %126, %121 : vector<16x64xf32>
    %128 = vector.extract_strided_slice %105 {offsets = [32, 0], sizes = [16, 64], strides = [1, 1]} : vector<128x64xf32> to vector<16x64xf32>
    %129 = arith.addf %127, %128 : vector<16x64xf32>
    %130 = vector.extract_strided_slice %109 {offsets = [32, 0], sizes = [16, 64], strides = [1, 1]} : vector<128x64xf32> to vector<16x64xf32>
    %131 = arith.mulf %129, %130 : vector<16x64xf32>
    %cst_57 = arith.constant dense<0.000000e+00> : vector<64xf32>
    %132 = vector.multi_reduction <add>, %131, %cst_57 [0] : vector<16x64xf32> to vector<64xf32>
    %133 = vector.shape_cast %132 : vector<64xf32> to vector<1x64xf32>
    %134 = vector.extract_strided_slice %99 {offsets = [48, 0], sizes = [16, 64], strides = [1, 1]} : vector<128x64xf32> to vector<16x64xf32>
    %135 = arith.mulf %134, %129 : vector<16x64xf32>
    %136 = vector.extract_strided_slice %105 {offsets = [48, 0], sizes = [16, 64], strides = [1, 1]} : vector<128x64xf32> to vector<16x64xf32>
    %137 = arith.addf %135, %136 : vector<16x64xf32>
    %138 = vector.extract_strided_slice %109 {offsets = [48, 0], sizes = [16, 64], strides = [1, 1]} : vector<128x64xf32> to vector<16x64xf32>
    %139 = arith.mulf %137, %138 : vector<16x64xf32>
    %cst_58 = arith.constant dense<0.000000e+00> : vector<64xf32>
    %140 = vector.multi_reduction <add>, %139, %cst_58 [0] : vector<16x64xf32> to vector<64xf32>
    %141 = vector.shape_cast %140 : vector<64xf32> to vector<1x64xf32>
    %142 = vector.extract_strided_slice %99 {offsets = [64, 0], sizes = [16, 64], strides = [1, 1]} : vector<128x64xf32> to vector<16x64xf32>
    %143 = arith.mulf %142, %137 : vector<16x64xf32>
    %144 = vector.extract_strided_slice %105 {offsets = [64, 0], sizes = [16, 64], strides = [1, 1]} : vector<128x64xf32> to vector<16x64xf32>
    %145 = arith.addf %143, %144 : vector<16x64xf32>
    %146 = vector.extract_strided_slice %109 {offsets = [64, 0], sizes = [16, 64], strides = [1, 1]} : vector<128x64xf32> to vector<16x64xf32>
    %147 = arith.mulf %145, %146 : vector<16x64xf32>
    %cst_59 = arith.constant dense<0.000000e+00> : vector<64xf32>
    %148 = vector.multi_reduction <add>, %147, %cst_59 [0] : vector<16x64xf32> to vector<64xf32>
    %149 = vector.shape_cast %148 : vector<64xf32> to vector<1x64xf32>
    %150 = vector.extract_strided_slice %99 {offsets = [80, 0], sizes = [16, 64], strides = [1, 1]} : vector<128x64xf32> to vector<16x64xf32>
    %151 = arith.mulf %150, %145 : vector<16x64xf32>
    %152 = vector.extract_strided_slice %105 {offsets = [80, 0], sizes = [16, 64], strides = [1, 1]} : vector<128x64xf32> to vector<16x64xf32>
    %153 = arith.addf %151, %152 : vector<16x64xf32>
    %154 = vector.extract_strided_slice %109 {offsets = [80, 0], sizes = [16, 64], strides = [1, 1]} : vector<128x64xf32> to vector<16x64xf32>
    %155 = arith.mulf %153, %154 : vector<16x64xf32>
    %cst_60 = arith.constant dense<0.000000e+00> : vector<64xf32>
    %156 = vector.multi_reduction <add>, %155, %cst_60 [0] : vector<16x64xf32> to vector<64xf32>
    %157 = vector.shape_cast %156 : vector<64xf32> to vector<1x64xf32>
    %158 = vector.extract_strided_slice %99 {offsets = [96, 0], sizes = [16, 64], strides = [1, 1]} : vector<128x64xf32> to vector<16x64xf32>
    %159 = arith.mulf %158, %153 : vector<16x64xf32>
    %160 = vector.extract_strided_slice %105 {offsets = [96, 0], sizes = [16, 64], strides = [1, 1]} : vector<128x64xf32> to vector<16x64xf32>
    %161 = arith.addf %159, %160 : vector<16x64xf32>
    %162 = vector.extract_strided_slice %109 {offsets = [96, 0], sizes = [16, 64], strides = [1, 1]} : vector<128x64xf32> to vector<16x64xf32>
    %163 = arith.mulf %161, %162 : vector<16x64xf32>
    %cst_61 = arith.constant dense<0.000000e+00> : vector<64xf32>
    %164 = vector.multi_reduction <add>, %163, %cst_61 [0] : vector<16x64xf32> to vector<64xf32>
    %165 = vector.shape_cast %164 : vector<64xf32> to vector<1x64xf32>
    %166 = vector.extract_strided_slice %99 {offsets = [112, 0], sizes = [16, 64], strides = [1, 1]} : vector<128x64xf32> to vector<16x64xf32>
    %167 = arith.mulf %166, %161 : vector<16x64xf32>
    %168 = vector.extract_strided_slice %105 {offsets = [112, 0], sizes = [16, 64], strides = [1, 1]} : vector<128x64xf32> to vector<16x64xf32>
    %169 = arith.addf %167, %168 : vector<16x64xf32>
    %170 = vector.extract_strided_slice %109 {offsets = [112, 0], sizes = [16, 64], strides = [1, 1]} : vector<128x64xf32> to vector<16x64xf32>
    %171 = arith.mulf %169, %170 : vector<16x64xf32>
    %cst_62 = arith.constant dense<0.000000e+00> : vector<64xf32>
    %172 = vector.multi_reduction <add>, %171, %cst_62 [0] : vector<16x64xf32> to vector<64xf32>
    %173 = vector.shape_cast %172 : vector<64xf32> to vector<1x64xf32>
    %174 = tpu.concatenate %117, %125, %133, %141, %149, %157, %165, %173 in 0 : vector<1x64xf32>, vector<1x64xf32>, vector<1x64xf32>, vector<1x64xf32>, vector<1x64xf32>, vector<1x64xf32>, vector<1x64xf32>, vector<1x64xf32> -> vector<8x64xf32>
    %175 = arith.index_cast %84 : i32 to index
    %c0_63 = arith.constant 0 : index
    %176 = vector.load %arg19[%175, %c0_63] : memref<16x64xf32, #tpu.memory_space<vmem>>, vector<8x64xf32>
    tpu.vector_store %arg19[%175, %c0_63], %174 {strides = array<i32>} : memref<16x64xf32, #tpu.memory_space<vmem>>, vector<8x64xf32>,
    %c1_i32 = arith.constant 1 : i32
    %c8_i32_64 = arith.constant 8 : i32
    %177 = arith.muli %c1_i32, %c8_i32_64 : i32
    %178 = tpu.assume_multiple %177, 8 : i32
    %179 = arith.index_cast %178 : i32 to index
    %c0_65 = arith.constant 0 : index
    %180 = vector.load %arg17[%179, %c0_65] : memref<16x64xf32, #tpu.memory_space<vmem>>, vector<8x64xf32>
    %181 = arith.index_cast %178 : i32 to index
    %c0_66 = arith.constant 0 : index
    %182 = vector.load %arg16[%181, %c0_66] : memref<16x64xf32, #tpu.memory_space<vmem>>, vector<8x64xf32>
    %183 = arith.index_cast %178 : i32 to index
    %c0_67 = arith.constant 0 : index
    %184 = vector.load %arg18[%183, %c0_67] : memref<16x256xf32, #tpu.memory_space<vmem>>, vector<8x16xf32>
    %185 = arith.index_cast %178 : i32 to index
    %c128_68 = arith.constant 128 : index
    %186 = vector.load %arg18[%185, %c128_68] : memref<16x256xf32, #tpu.memory_space<vmem>>, vector<8x16xf32>
    %187 = vector.shape_cast %180 : vector<8x64xf32> to vector<8x1x64xf32>
    %188 = vector.shape_cast %81 : vector<16x64xf32> to vector<1x16x64xf32>
    %189 = vector.broadcast %187 : vector<8x1x64xf32> to vector<8x16x64xf32>
    %190 = vector.broadcast %188 : vector<1x16x64xf32> to vector<8x16x64xf32>
    %191 = arith.mulf %189, %190 : vector<8x16x64xf32>
    %192 = vector.shape_cast %191 : vector<8x16x64xf32> to vector<128x64xf32>
    %193 = math.exp %192 : vector<128x64xf32>
    %194 = vector.shape_cast %184 : vector<8x16xf32> to vector<8x16x1xf32>
    %195 = vector.shape_cast %182 : vector<8x64xf32> to vector<8x1x64xf32>
    %196 = vector.broadcast %194 : vector<8x16x1xf32> to vector<8x16x64xf32>
    %197 = vector.broadcast %195 : vector<8x1x64xf32> to vector<8x16x64xf32>
    %198 = arith.mulf %196, %197 : vector<8x16x64xf32>
    %199 = vector.shape_cast %198 : vector<8x16x64xf32> to vector<128x64xf32>
    %200 = vector.shape_cast %186 : vector<8x16xf32> to vector<8x16x1xf32>
    %201 = vector.shape_cast %200 : vector<8x16x1xf32> to vector<8x16x1xf32>
    %202 = vector.broadcast %201 : vector<8x16x1xf32> to vector<8x16x64xf32>
    %203 = vector.shape_cast %202 : vector<8x16x64xf32> to vector<128x64xf32>
    %204 = vector.extract_strided_slice %193 {offsets = [0, 0], sizes = [16, 64], strides = [1, 1]} : vector<128x64xf32> to vector<16x64xf32>
    %205 = arith.mulf %204, %169 : vector<16x64xf32>
    %206 = vector.extract_strided_slice %199 {offsets = [0, 0], sizes = [16, 64], strides = [1, 1]} : vector<128x64xf32> to vector<16x64xf32>
    %207 = arith.addf %205, %206 : vector<16x64xf32>
    %208 = vector.extract_strided_slice %203 {offsets = [0, 0], sizes = [16, 64], strides = [1, 1]} : vector<128x64xf32> to vector<16x64xf32>
    %209 = arith.mulf %207, %208 : vector<16x64xf32>
    %cst_69 = arith.constant dense<0.000000e+00> : vector<64xf32>
    %210 = vector.multi_reduction <add>, %209, %cst_69 [0] : vector<16x64xf32> to vector<64xf32>
    %211 = vector.shape_cast %210 : vector<64xf32> to vector<1x64xf32>
    %212 = vector.extract_strided_slice %193 {offsets = [16, 0], sizes = [16, 64], strides = [1, 1]} : vector<128x64xf32> to vector<16x64xf32>
    %213 = arith.mulf %212, %207 : vector<16x64xf32>
    %214 = vector.extract_strided_slice %199 {offsets = [16, 0], sizes = [16, 64], strides = [1, 1]} : vector<128x64xf32> to vector<16x64xf32>
    %215 = arith.addf %213, %214 : vector<16x64xf32>
    %216 = vector.extract_strided_slice %203 {offsets = [16, 0], sizes = [16, 64], strides = [1, 1]} : vector<128x64xf32> to vector<16x64xf32>
    %217 = arith.mulf %215, %216 : vector<16x64xf32>
    %cst_70 = arith.constant dense<0.000000e+00> : vector<64xf32>
    %218 = vector.multi_reduction <add>, %217, %cst_70 [0] : vector<16x64xf32> to vector<64xf32>
    %219 = vector.shape_cast %218 : vector<64xf32> to vector<1x64xf32>
    %220 = vector.extract_strided_slice %193 {offsets = [32, 0], sizes = [16, 64], strides = [1, 1]} : vector<128x64xf32> to vector<16x64xf32>
    %221 = arith.mulf %220, %215 : vector<16x64xf32>
    %222 = vector.extract_strided_slice %199 {offsets = [32, 0], sizes = [16, 64], strides = [1, 1]} : vector<128x64xf32> to vector<16x64xf32>
    %223 = arith.addf %221, %222 : vector<16x64xf32>
    %224 = vector.extract_strided_slice %203 {offsets = [32, 0], sizes = [16, 64], strides = [1, 1]} : vector<128x64xf32> to vector<16x64xf32>
    %225 = arith.mulf %223, %224 : vector<16x64xf32>
    %cst_71 = arith.constant dense<0.000000e+00> : vector<64xf32>
    %226 = vector.multi_reduction <add>, %225, %cst_71 [0] : vector<16x64xf32> to vector<64xf32>
    %227 = vector.shape_cast %226 : vector<64xf32> to vector<1x64xf32>
    %228 = vector.extract_strided_slice %193 {offsets = [48, 0], sizes = [16, 64], strides = [1, 1]} : vector<128x64xf32> to vector<16x64xf32>
    %229 = arith.mulf %228, %223 : vector<16x64xf32>
    %230 = vector.extract_strided_slice %199 {offsets = [48, 0], sizes = [16, 64], strides = [1, 1]} : vector<128x64xf32> to vector<16x64xf32>
    %231 = arith.addf %229, %230 : vector<16x64xf32>
    %232 = vector.extract_strided_slice %203 {offsets = [48, 0], sizes = [16, 64], strides = [1, 1]} : vector<128x64xf32> to vector<16x64xf32>
    %233 = arith.mulf %231, %232 : vector<16x64xf32>
    %cst_72 = arith.constant dense<0.000000e+00> : vector<64xf32>
    %234 = vector.multi_reduction <add>, %233, %cst_72 [0] : vector<16x64xf32> to vector<64xf32>
    %235 = vector.shape_cast %234 : vector<64xf32> to vector<1x64xf32>
    %236 = vector.extract_strided_slice %193 {offsets = [64, 0], sizes = [16, 64], strides = [1, 1]} : vector<128x64xf32> to vector<16x64xf32>
    %237 = arith.mulf %236, %231 : vector<16x64xf32>
    %238 = vector.extract_strided_slice %199 {offsets = [64, 0], sizes = [16, 64], strides = [1, 1]} : vector<128x64xf32> to vector<16x64xf32>
    %239 = arith.addf %237, %238 : vector<16x64xf32>
    %240 = vector.extract_strided_slice %203 {offsets = [64, 0], sizes = [16, 64], strides = [1, 1]} : vector<128x64xf32> to vector<16x64xf32>
    %241 = arith.mulf %239, %240 : vector<16x64xf32>
    %cst_73 = arith.constant dense<0.000000e+00> : vector<64xf32>
    %242 = vector.multi_reduction <add>, %241, %cst_73 [0] : vector<16x64xf32> to vector<64xf32>
    %243 = vector.shape_cast %242 : vector<64xf32> to vector<1x64xf32>
    %244 = vector.extract_strided_slice %193 {offsets = [80, 0], sizes = [16, 64], strides = [1, 1]} : vector<128x64xf32> to vector<16x64xf32>
    %245 = arith.mulf %244, %239 : vector<16x64xf32>
    %246 = vector.extract_strided_slice %199 {offsets = [80, 0], sizes = [16, 64], strides = [1, 1]} : vector<128x64xf32> to vector<16x64xf32>
    %247 = arith.addf %245, %246 : vector<16x64xf32>
    %248 = vector.extract_strided_slice %203 {offsets = [80, 0], sizes = [16, 64], strides = [1, 1]} : vector<128x64xf32> to vector<16x64xf32>
    %249 = arith.mulf %247, %248 : vector<16x64xf32>
    %cst_74 = arith.constant dense<0.000000e+00> : vector<64xf32>
    %250 = vector.multi_reduction <add>, %249, %cst_74 [0] : vector<16x64xf32> to vector<64xf32>
    %251 = vector.shape_cast %250 : vector<64xf32> to vector<1x64xf32>
    %252 = vector.extract_strided_slice %193 {offsets = [96, 0], sizes = [16, 64], strides = [1, 1]} : vector<128x64xf32> to vector<16x64xf32>
    %253 = arith.mulf %252, %247 : vector<16x64xf32>
    %254 = vector.extract_strided_slice %199 {offsets = [96, 0], sizes = [16, 64], strides = [1, 1]} : vector<128x64xf32> to vector<16x64xf32>
    %255 = arith.addf %253, %254 : vector<16x64xf32>
    %256 = vector.extract_strided_slice %203 {offsets = [96, 0], sizes = [16, 64], strides = [1, 1]} : vector<128x64xf32> to vector<16x64xf32>
    %257 = arith.mulf %255, %256 : vector<16x64xf32>
    %cst_75 = arith.constant dense<0.000000e+00> : vector<64xf32>
    %258 = vector.multi_reduction <add>, %257, %cst_75 [0] : vector<16x64xf32> to vector<64xf32>
    %259 = vector.shape_cast %258 : vector<64xf32> to vector<1x64xf32>
    %260 = vector.extract_strided_slice %193 {offsets = [112, 0], sizes = [16, 64], strides = [1, 1]} : vector<128x64xf32> to vector<16x64xf32>
    %261 = arith.mulf %260, %255 : vector<16x64xf32>
    %262 = vector.extract_strided_slice %199 {offsets = [112, 0], sizes = [16, 64], strides = [1, 1]} : vector<128x64xf32> to vector<16x64xf32>
    %263 = arith.addf %261, %262 : vector<16x64xf32>
    %264 = vector.extract_strided_slice %203 {offsets = [112, 0], sizes = [16, 64], strides = [1, 1]} : vector<128x64xf32> to vector<16x64xf32>
    %265 = arith.mulf %263, %264 : vector<16x64xf32>
    %cst_76 = arith.constant dense<0.000000e+00> : vector<64xf32>
    %266 = vector.multi_reduction <add>, %265, %cst_76 [0] : vector<16x64xf32> to vector<64xf32>
    %267 = vector.shape_cast %266 : vector<64xf32> to vector<1x64xf32>
    %268 = tpu.concatenate %211, %219, %227, %235, %243, %251, %259, %267 in 0 : vector<1x64xf32>, vector<1x64xf32>, vector<1x64xf32>, vector<1x64xf32>, vector<1x64xf32>, vector<1x64xf32>, vector<1x64xf32>, vector<1x64xf32> -> vector<8x64xf32>
    %269 = arith.index_cast %178 : i32 to index
    %c0_77 = arith.constant 0 : index
    %270 = vector.load %arg19[%269, %c0_77] : memref<16x64xf32, #tpu.memory_space<vmem>>, vector<8x64xf32>
    tpu.vector_store %arg19[%269, %c0_77], %268 {strides = array<i32>} : memref<16x64xf32, #tpu.memory_space<vmem>>, vector<8x64xf32>,
    %c2_i32 = arith.constant 2 : i32
    %c0_78 = arith.constant 0 : index
    %c0_79 = arith.constant 0 : index
    %271 = vector.load %arg20[%c0_78, %c0_79] : memref<16x64xf32, #tpu.memory_space<vmem>>, vector<16x64xf32>
    tpu.vector_store %arg20[%c0_78, %c0_79], %263 {strides = array<i32>} : memref<16x64xf32, #tpu.memory_space<vmem>>, vector<16x64xf32>,
    %c0_80 = arith.constant 0 : index
    %c0_81 = arith.constant 0 : index
    %272 = vector.load %arg19[%c0_80, %c0_81] : memref<16x64xf32, #tpu.memory_space<vmem>>, vector<16x64xf32>
    %c0_82 = arith.constant 0 : index
    %c0_83 = arith.constant 0 : index
    %273 = vector.load %arg15[%c0_82, %c0_83] : memref<16x64xf32, #tpu.memory_space<vmem>>, vector<16x64xf32>
    %c0_84 = arith.constant 0 : index
    %c0_85 = arith.constant 0 : index
    %274 = vector.load %arg11[%c0_84, %c0_85] : memref<1x64xf32, #tpu.memory_space<vmem>>, vector<1x64xf32>
    %275 = vector.broadcast %274 : vector<1x64xf32> to vector<16x64xf32>
    %276 = arith.mulf %273, %275 : vector<16x64xf32>
    %277 = arith.addf %272, %276 : vector<16x64xf32>
    %cst_86 = arith.constant 0.000000e+00 : f32
    %278 = vector.broadcast %cst_86 : f32 to vector<16x64xf32>
    %279 = arith.subf %278, %22 : vector<16x64xf32>
    %280 = math.exp %279 : vector<16x64xf32>
    %cst_87 = arith.constant 1.000000e+00 : f32
    %281 = vector.broadcast %cst_87 : f32 to vector<16x64xf32>
    %282 = arith.addf %281, %280 : vector<16x64xf32>
    %283 = tpu.reciprocal %282 {approx = true} : vector<16x64xf32> -> vector<16x64xf32>
    %284 = arith.mulf %22, %283 : vector<16x64xf32>
    %285 = arith.mulf %277, %284 : vector<16x64xf32>
    %286 = arith.truncf %285 : vector<16x64xf32> to vector<16x64xbf16>
    %c0_88 = arith.constant 0 : index
    %c0_89 = arith.constant 0 : index
    %287 = vector.load %arg12[%c0_88, %c0_89] : memref<64x32xbf16, #tpu.memory_space<vmem>>, vector<64x32xbf16>
    %cst_90 = arith.constant dense<0.000000e+00> : vector<16x32xf32>
    %288 = tpu.matmul %286, %287, %cst_90 {dimension_numbers = #tpu.dot_dimension_numbers<[1], [0], [0], [1], [0, 0, 1, 1], [], []>} : vector<16x64xbf16>, vector<64x32xbf16>, vector<16x32xf32> -> vector<16x32xf32>
    %289 = arith.addf %288, %4 : vector<16x32xf32>
    %c0_91 = arith.constant 0 : index
    %c0_92 = arith.constant 0 : index
    %c0_93 = arith.constant 0 : index
    %290 = vector.load %arg13[%c0_91, %c0_92, %c0_93] : memref<1x16x32xf32, #tpu.memory_space<vmem>>, vector<1x16x32xf32>
    %291 = vector.shape_cast %290 : vector<1x16x32xf32> to vector<16x32xf32>
    %292 = vector.shape_cast %289 : vector<16x32xf32> to vector<1x16x32xf32>
    tpu.vector_store %arg13[%c0_91, %c0_92, %c0_93], %292 {strides = array<i32>} : memref<1x16x32xf32, #tpu.memory_space<vmem>>, vector<1x16x32xf32>,
    return
  }
  func.func @transform_0(%arg0: i32, %arg1: i32) -> (i32, i32, i32) {
    %c0_i32 = arith.constant 0 : i32
    %c0_i32_0 = arith.constant 0 : i32
    return %arg0, %arg1, %c0_i32 : i32, i32, i32
  }
  func.func @transform_1(%arg0: i32, %arg1: i32) -> (i32, i32) {
    %c0_i32 = arith.constant 0 : i32
    %c0_i32_0 = arith.constant 0 : i32
    %c0_i32_1 = arith.constant 0 : i32
    return %c0_i32, %c0_i32_0 : i32, i32
  }
  func.func @transform_2(%arg0: i32, %arg1: i32) -> (i32, i32) {
    %c0_i32 = arith.constant 0 : i32
    %c0_i32_0 = arith.constant 0 : i32
    %c0_i32_1 = arith.constant 0 : i32
    return %c0_i32, %c0_i32_0 : i32, i32
  }
  func.func @transform_3(%arg0: i32, %arg1: i32) -> (i32, i32) {
    %c0_i32 = arith.constant 0 : i32
    %c0_i32_0 = arith.constant 0 : i32
    %c0_i32_1 = arith.constant 0 : i32
    return %c0_i32, %c0_i32_0 : i32, i32
  }
  func.func @transform_4(%arg0: i32, %arg1: i32) -> (i32, i32) {
    %c0_i32 = arith.constant 0 : i32
    %c0_i32_0 = arith.constant 0 : i32
    %c0_i32_1 = arith.constant 0 : i32
    return %c0_i32, %c0_i32_0 : i32, i32
  }
  func.func @transform_5(%arg0: i32, %arg1: i32) -> (i32, i32) {
    %c0_i32 = arith.constant 0 : i32
    %c0_i32_0 = arith.constant 0 : i32
    %c0_i32_1 = arith.constant 0 : i32
    return %c0_i32, %c0_i32_0 : i32, i32
  }
  func.func @transform_6(%arg0: i32, %arg1: i32) -> (i32, i32) {
    %c0_i32 = arith.constant 0 : i32
    %c0_i32_0 = arith.constant 0 : i32
    %c0_i32_1 = arith.constant 0 : i32
    return %c0_i32, %c0_i32_0 : i32, i32
  }
  func.func @transform_7(%arg0: i32, %arg1: i32) -> (i32, i32) {
    %c0_i32 = arith.constant 0 : i32
    %c0_i32_0 = arith.constant 0 : i32
    %c0_i32_1 = arith.constant 0 : i32
    return %c0_i32, %c0_i32_0 : i32, i32
  }
  func.func @transform_8(%arg0: i32, %arg1: i32) -> (i32, i32) {
    %c0_i32 = arith.constant 0 : i32
    %c0_i32_0 = arith.constant 0 : i32
    %c0_i32_1 = arith.constant 0 : i32
    return %c0_i32, %c0_i32_0 : i32, i32
  }
  func.func @transform_9(%arg0: i32, %arg1: i32) -> (i32, i32) {
    %c0_i32 = arith.constant 0 : i32
    %c0_i32_0 = arith.constant 0 : i32
    %c0_i32_1 = arith.constant 0 : i32
    return %c0_i32, %c0_i32_0 : i32, i32
  }
  func.func @transform_10(%arg0: i32, %arg1: i32) -> (i32, i32) {
    %c0_i32 = arith.constant 0 : i32
    %c0_i32_0 = arith.constant 0 : i32
    %c0_i32_1 = arith.constant 0 : i32
    return %c0_i32, %c0_i32_0 : i32, i32
  }
  func.func @transform_11(%arg0: i32, %arg1: i32) -> (i32, i32, i32) {
    %c0_i32 = arith.constant 0 : i32
    %c0_i32_0 = arith.constant 0 : i32
    return %arg0, %arg1, %c0_i32 : i32, i32, i32
  }
}

</mosaic_0001>

<llo_original>
// kernel: tpu_custom_call.1
$region0: #{tpu_custom_call.1}
  #allocation0 [shape = 'u32[]', space=smem, size = 0x4, offset = 0x4, fixed_abs, tag = 'smem constant byte address 0x4 - core index']
  #allocation1 [shape = 'u32[144,128]{1,0:T(1,128)}', space=vmem, size = 0x12000, scoped, tag = 'internal scratch']
  #allocation2 [shape = 'f32[24,64]{1,0:T(8,128)}', space=vmem, size = 0x3000, scoped, tag = 'scratch operand']
  #allocation3 [shape = 'f32[16,64]{1,0:T(8,128)}', space=vmem, size = 0x2000, scoped, tag = 'scratch operand']
  #allocation4 [shape = 'f32[16,64]{1,0:T(8,128)}', space=vmem, size = 0x2000, scoped, tag = 'scratch operand']
  #allocation5 [shape = 'f32[16,64]{1,0:T(8,128)}', space=vmem, size = 0x2000, scoped, tag = 'scratch operand']
  #allocation6 [shape = 'f32[16,256]{1,0:T(8,128)}', space=vmem, size = 0x4000, scoped, tag = 'scratch operand']
  #allocation7 [shape = 'f32[16,64]{1,0:T(8,128)}', space=vmem, size = 0x2000, scoped, tag = 'scratch operand']
  #allocation8 [shape = 'f32[16,64]{1,0:T(8,128)}', space=vmem, size = 0x2000, scoped, tag = 'scratch operand']
  %s0 = inlined_call_operand.hbm [shape: f32[2,32,32], index: 0, kind: input, shape index: {}]
  %s1 = inlined_call_operand.vmem [shape: f32[1,32], index: 1, kind: input, shape index: {}]
  %s2 = inlined_call_operand.vmem [shape: bf16[32,128], index: 2, kind: input, shape index: {}]
  %s3 = inlined_call_operand.hbm [shape: f32[4,64], index: 3, kind: input, shape index: {}]
  %s4 = inlined_call_operand.vmem [shape: f32[1,64], index: 4, kind: input, shape index: {}]
  %s5 = inlined_call_operand.vmem [shape: bf16[64,384], index: 5, kind: input, shape index: {}]
  %s6 = inlined_call_operand.vmem [shape: bf16[128,64], index: 6, kind: input, shape index: {}]
  %s7 = inlined_call_operand.hbm [shape: f32[1,64], index: 7, kind: input, shape index: {}]
  %s8 = inlined_call_operand.hbm [shape: f32[16,64], index: 8, kind: input, shape index: {}]
  %s9 = inlined_call_operand.hbm [shape: f32[1,64], index: 9, kind: input, shape index: {}]
  %s10 = inlined_call_operand.vmem [shape: bf16[64,32], index: 10, kind: input, shape index: {}]
  %s11 = inlined_call_operand.hbm [shape: f32[2,32,32], index: 11, kind: output, shape index: {}]
  %s12 = sld [smem:[#allocation0]]
  $region101: #{tpu_custom_call.1} parent=0
    _
  %s14 = ssub.s32 1, %s12
  %s15 = scalar_select 0, %s14, %s12
  $region1: #{tpu_custom_call.1} parent=0
    #allocation9 [shape = 'u8[16384]{0}', space=vmem, size = 0x4000, scoped, tag = 'input window, operand 0']
    #allocation10 [shape = 's32[2]{0}', space=sflag, size = 0x8, scoped, tag = 'scoped memory for tpu_custom_call.1']
    #allocation11 [shape = 's32[2]{0}', space=sflag, size = 0x8, scoped, tag = 'scoped memory for tpu_custom_call.1']
    #allocation12 [shape = 'u8[2048]{0}', space=vmem, size = 0x800, scoped, tag = 'input window, operand 3, single buffered']
    #allocation13 [shape = 's32[1]{0}', space=sflag, size = 0x4, scoped, tag = 'scoped memory for tpu_custom_call.1']
    #allocation14 [shape = 'u8[512]{0}', space=vmem, size = 0x400, scoped, tag = 'input window, operand 7, single buffered']
    #allocation15 [shape = 'u8[8192]{0}', space=vmem, size = 0x2000, scoped, tag = 'input window, operand 8, single buffered']
    #allocation16 [shape = 's32[1]{0}', space=sflag, size = 0x4, scoped, tag = 'scoped memory for tpu_custom_call.1']
    #allocation17 [shape = 'u8[512]{0}', space=vmem, size = 0x400, scoped, tag = 'input window, operand 9, single buffered']
    #allocation18 [shape = 'u8[16384]{0}', space=vmem, size = 0x4000, scoped, tag = 'output window, operand 0']
    %16 = vsyncpa [#allocation10], 0
    %s17 = scalar_lea.sflag [#allocation10], 1
    %18 = vsyncpa %s17, 0
    %19 = vsyncpa [#allocation13], 0
    %20 = vsyncpa [#allocation16], 0
    %21 = vsyncpa [#allocation11], 0
    %s22 = scalar_lea.sflag [#allocation11], 1
    %23 = vsyncpa %s22, 0
    loop: start=0, step=1, limit=6
    $region2: #{tpu_custom_call.1} parent=1 // loop_pre_header
      _
    $region3: #{tpu_custom_call.1} parent=1 // loop_header
      %s25 = sphi 0, %s29
      %p26 = scmp.ge.s32.totalorder %s25, 6
      %s32 = sphi 0, %s44
      %s33 = sphi 0, %s40
      %s34 = sphi 0, %s32
      %s35 = sphi 0, %s33
      %s36 = sphi 0, %s34
      %s37 = sphi 0, %s35
      %s49 = sphi 0, %s51
      %s52 = sphi 0, %s49
      %s53 = sphi 0, %s52
      %s69 = sphi 0, %s53
      %s73 = sphi 0, %s73
      %s75 = sphi 0, %s73
      %s76 = sphi 0, %s75
      %s90 = sphi 0, %s76
      %s94 = sphi 0, %s94
      %s96 = sphi 0, %s94
      %s97 = sphi 0, %s96
      %s111 = sphi 0, %s97
      %s115 = sphi 0, %s115
      %s117 = sphi 0, %s115
      %s118 = sphi 0, %s117
      %s132 = sphi 0, %s118
      %s136 = sphi 0, %s136
      %s138 = sphi 0, %s136
      %s139 = sphi 0, %s138
      %s153 = sphi 0, %s139
      %s157 = sphi 0, %s157
      %s159 = sphi 0, %s157
      %s160 = sphi 0, %s159
      %s174 = sphi 0, %s160
      %s178 = sphi 0, %s178
      %s180 = sphi 0, %s178
      %s181 = sphi 0, %s180
      %s195 = sphi 0, %s181
      %s199 = sphi 0, %s199
      %s201 = sphi 0, %s199
      %s202 = sphi 0, %s201
      %s216 = sphi 0, %s202
      %s220 = sphi 0, %s220
      %s222 = sphi 0, %s220
      %s223 = sphi 0, %s222
      %s237 = sphi 0, %s223
      %s241 = sphi 0, %s241
      %s243 = sphi 0, %s241
      %s244 = sphi 0, %s243
      %s258 = sphi 0, %s244
      %s262 = sphi 0, %s262
      %s264 = sphi 0, %s262
      %s265 = sphi 0, %s264
      %s279 = sphi 0, %s265
      %s287 = sphi 0, %s289
      %s290 = sphi 0, %s287
      %s291 = sphi 0, %s290
      %s307 = sphi 0, %s291
    $region4: #{tpu_custom_call.1} parent=1 // loop_header_branch
      %28 = sbr.rel (%p26) target = $region8
    $region5: #{tpu_custom_call.1} parent=1 // loop_body
      %s30 = ssub.s32 %s25, 1
      %s31 = ssub.s32 %s25, 2
      %s38 = sadd.s32 1, %s33
      %p39 = scmp.ge.s32.totalorder %s38, 2
      %s40 = scalar_select %p39, 0, %s38
      %s41 = sadd.s32 1, %s32
      %s42 = scalar_select %p39, %s41, %s32
      %p43 = scmp.ge.s32.totalorder %s42, 2
      %s44 = scalar_select %p43, 0, %s42
      %s45 = ssub.s32 %s32, %s44
      %s46 = ssub.s32 %s33, %s40
      %s47 = sor.u32 %s45, %s46
      %p48 = scmp.eq.s32.totalorder %s47, 0
      %s50 = sadd.s32 %s49, 1
      %s51 = scalar_select %p48, %s49, %s50
      %p54 = pneg %p48
      %p55 = scmp.eq.s32.totalorder %s25, 3
      %p56 = por %p54, %p55
      %p57 = scmp.ne.s32.totalorder %s49, %s52
      %p58 = scmp.eq.s32.totalorder %s25, 0
      %p59 = por %p57, %p58
      %p60 = scmp.ne.s32.totalorder %s49, %s52
      %p61 = scmp.eq.s32.totalorder %s30, 3
      %p62 = por %p60, %p61
      %p63 = scmp.ne.s32.totalorder %s52, %s53
      %p64 = scmp.eq.s32.totalorder %s30, 0
      %p65 = por %p63, %p64
      %p66 = scmp.ne.s32.totalorder %s52, %s53
      %p67 = scmp.eq.s32.totalorder %s31, 3
      %p68 = por %p66, %p67
      %p70 = scmp.ne.s32.totalorder %s53, %s69
      %p71 = scmp.eq.s32.totalorder %s31, 0
      %p72 = por %p70, %p71
      %s74 = sadd.s32 %s73, 1
      %p77 = scmp.eq.s32.totalorder %s25, 3
      %p78 = scmp.ne.s32.totalorder %s73, %s75
      %p79 = scmp.eq.s32.totalorder %s25, 0
      %p80 = por %p78, %p79
      %p81 = scmp.ne.s32.totalorder %s73, %s75
      %p82 = scmp.eq.s32.totalorder %s30, 3
      %p83 = por %p81, %p82
      %p84 = scmp.ne.s32.totalorder %s75, %s76
      %p85 = scmp.eq.s32.totalorder %s30, 0
      %p86 = por %p84, %p85
      %p87 = scmp.ne.s32.totalorder %s75, %s76
      %p88 = scmp.eq.s32.totalorder %s31, 3
      %p89 = por %p87, %p88
      %p91 = scmp.ne.s32.totalorder %s76, %s90
      %p92 = scmp.eq.s32.totalorder %s31, 0
      %p93 = por %p91, %p92
      %s95 = sadd.s32 %s94, 1
      %p98 = scmp.eq.s32.totalorder %s25, 3
      %p99 = scmp.ne.s32.totalorder %s94, %s96
      %p100 = scmp.eq.s32.totalorder %s25, 0
      %p101 = por %p99, %p100
      %p102 = scmp.ne.s32.totalorder %s94, %s96
      %p103 = scmp.eq.s32.totalorder %s30, 3
      %p104 = por %p102, %p103
      %p105 = scmp.ne.s32.totalorder %s96, %s97
      %p106 = scmp.eq.s32.totalorder %s30, 0
      %p107 = por %p105, %p106
      %p108 = scmp.ne.s32.totalorder %s96, %s97
      %p109 = scmp.eq.s32.totalorder %s31, 3
      %p110 = por %p108, %p109
      %p112 = scmp.ne.s32.totalorder %s97, %s111
      %p113 = scmp.eq.s32.totalorder %s31, 0
      %p114 = por %p112, %p113
      %s116 = sadd.s32 %s115, 1
      %p119 = scmp.eq.s32.totalorder %s25, 3
      %p120 = scmp.ne.s32.totalorder %s115, %s117
      %p121 = scmp.eq.s32.totalorder %s25, 0
      %p122 = por %p120, %p121
      %p123 = scmp.ne.s32.totalorder %s115, %s117
      %p124 = scmp.eq.s32.totalorder %s30, 3
      %p125 = por %p123, %p124
      %p126 = scmp.ne.s32.totalorder %s117, %s118
      %p127 = scmp.eq.s32.totalorder %s30, 0
      %p128 = por %p126, %p127
      %p129 = scmp.ne.s32.totalorder %s117, %s118
      %p130 = scmp.eq.s32.totalorder %s31, 3
      %p131 = por %p129, %p130
      %p133 = scmp.ne.s32.totalorder %s118, %s132
      %p134 = scmp.eq.s32.totalorder %s31, 0
      %p135 = por %p133, %p134
      %s137 = sadd.s32 %s136, 1
      %p140 = scmp.eq.s32.totalorder %s25, 3
      %p141 = scmp.ne.s32.totalorder %s136, %s138
      %p142 = scmp.eq.s32.totalorder %s25, 0
      %p143 = por %p141, %p142
      %p144 = scmp.ne.s32.totalorder %s136, %s138
      %p145 = scmp.eq.s32.totalorder %s30, 3
      %p146 = por %p144, %p145
      %p147 = scmp.ne.s32.totalorder %s138, %s139
      %p148 = scmp.eq.s32.totalorder %s30, 0
      %p149 = por %p147, %p148
      %p150 = scmp.ne.s32.totalorder %s138, %s139
      %p151 = scmp.eq.s32.totalorder %s31, 3
      %p152 = por %p150, %p151
      %p154 = scmp.ne.s32.totalorder %s139, %s153
      %p155 = scmp.eq.s32.totalorder %s31, 0
      %p156 = por %p154, %p155
      %s158 = sadd.s32 %s157, 1
      %p161 = scmp.eq.s32.totalorder %s25, 3
      %p162 = scmp.ne.s32.totalorder %s157, %s159
      %p163 = scmp.eq.s32.totalorder %s25, 0
      %p164 = por %p162, %p163
      %p165 = scmp.ne.s32.totalorder %s157, %s159
      %p166 = scmp.eq.s32.totalorder %s30, 3
      %p167 = por %p165, %p166
      %p168 = scmp.ne.s32.totalorder %s159, %s160
      %p169 = scmp.eq.s32.totalorder %s30, 0
      %p170 = por %p168, %p169
      %p171 = scmp.ne.s32.totalorder %s159, %s160
      %p172 = scmp.eq.s32.totalorder %s31, 3
      %p173 = por %p171, %p172
      %p175 = scmp.ne.s32.totalorder %s160, %s174
      %p176 = scmp.eq.s32.totalorder %s31, 0
      %p177 = por %p175, %p176
      %s179 = sadd.s32 %s178, 1
      %p182 = scmp.eq.s32.totalorder %s25, 3
      %p183 = scmp.ne.s32.totalorder %s178, %s180
      %p184 = scmp.eq.s32.totalorder %s25, 0
      %p185 = por %p183, %p184
      %p186 = scmp.ne.s32.totalorder %s178, %s180
      %p187 = scmp.eq.s32.totalorder %s30, 3
      %p188 = por %p186, %p187
      %p189 = scmp.ne.s32.totalorder %s180, %s181
      %p190 = scmp.eq.s32.totalorder %s30, 0
      %p191 = por %p189, %p190
      %p192 = scmp.ne.s32.totalorder %s180, %s181
      %p193 = scmp.eq.s32.totalorder %s31, 3
      %p194 = por %p192, %p193
      %p196 = scmp.ne.s32.totalorder %s181, %s195
      %p197 = scmp.eq.s32.totalorder %s31, 0
      %p198 = por %p196, %p197
      %s200 = sadd.s32 %s199, 1
      %p203 = scmp.eq.s32.totalorder %s25, 3
      %p204 = scmp.ne.s32.totalorder %s199, %s201
      %p205 = scmp.eq.s32.totalorder %s25, 0
      %p206 = por %p204, %p205
      %p207 = scmp.ne.s32.totalorder %s199, %s201
      %p208 = scmp.eq.s32.totalorder %s30, 3
      %p209 = por %p207, %p208
      %p210 = scmp.ne.s32.totalorder %s201, %s202
      %p211 = scmp.eq.s32.totalorder %s30, 0
      %p212 = por %p210, %p211
      %p213 = scmp.ne.s32.totalorder %s201, %s202
      %p214 = scmp.eq.s32.totalorder %s31, 3
      %p215 = por %p213, %p214
      %p217 = scmp.ne.s32.totalorder %s202, %s216
      %p218 = scmp.eq.s32.totalorder %s31, 0
      %p219 = por %p217, %p218
      %s221 = sadd.s32 %s220, 1
      %p224 = scmp.eq.s32.totalorder %s25, 3
      %p225 = scmp.ne.s32.totalorder %s220, %s222
      %p226 = scmp.eq.s32.totalorder %s25, 0
      %p227 = por %p225, %p226
      %p228 = scmp.ne.s32.totalorder %s220, %s222
      %p229 = scmp.eq.s32.totalorder %s30, 3
      %p230 = por %p228, %p229
      %p231 = scmp.ne.s32.totalorder %s222, %s223
      %p232 = scmp.eq.s32.totalorder %s30, 0
      %p233 = por %p231, %p232
      %p234 = scmp.ne.s32.totalorder %s222, %s223
      %p235 = scmp.eq.s32.totalorder %s31, 3
      %p236 = por %p234, %p235
      %p238 = scmp.ne.s32.totalorder %s223, %s237
      %p239 = scmp.eq.s32.totalorder %s31, 0
      %p240 = por %p238, %p239
      %s242 = sadd.s32 %s241, 1
      %p245 = scmp.eq.s32.totalorder %s25, 3
      %p246 = scmp.ne.s32.totalorder %s241, %s243
      %p247 = scmp.eq.s32.totalorder %s25, 0
      %p248 = por %p246, %p247
      %p249 = scmp.ne.s32.totalorder %s241, %s243
      %p250 = scmp.eq.s32.totalorder %s30, 3
      %p251 = por %p249, %p250
      %p252 = scmp.ne.s32.totalorder %s243, %s244
      %p253 = scmp.eq.s32.totalorder %s30, 0
      %p254 = por %p252, %p253
      %p255 = scmp.ne.s32.totalorder %s243, %s244
      %p256 = scmp.eq.s32.totalorder %s31, 3
      %p257 = por %p255, %p256
      %p259 = scmp.ne.s32.totalorder %s244, %s258
      %p260 = scmp.eq.s32.totalorder %s31, 0
      %p261 = por %p259, %p260
      %s263 = sadd.s32 %s262, 1
      %p266 = scmp.eq.s32.totalorder %s25, 3
      %p267 = scmp.ne.s32.totalorder %s262, %s264
      %p268 = scmp.eq.s32.totalorder %s25, 0
      %p269 = por %p267, %p268
      %p270 = scmp.ne.s32.totalorder %s262, %s264
      %p271 = scmp.eq.s32.totalorder %s30, 3
      %p272 = por %p270, %p271
      %p273 = scmp.ne.s32.totalorder %s264, %s265
      %p274 = scmp.eq.s32.totalorder %s30, 0
      %p275 = por %p273, %p274
      %p276 = scmp.ne.s32.totalorder %s264, %s265
      %p277 = scmp.eq.s32.totalorder %s31, 3
      %p278 = por %p276, %p277
      %p280 = scmp.ne.s32.totalorder %s265, %s279
      %p281 = scmp.eq.s32.totalorder %s31, 0
      %p282 = por %p280, %p281
      %s283 = ssub.s32 %s32, %s44
      %s284 = ssub.s32 %s33, %s40
      %s285 = sor.u32 %s283, %s284
      %p286 = scmp.eq.s32.totalorder %s285, 0
      %s288 = sadd.s32 %s287, 1
      %s289 = scalar_select %p286, %s287, %s288
      %p292 = pneg %p286
      %p293 = scmp.eq.s32.totalorder %s25, 3
      %p294 = por %p292, %p293
      %p295 = scmp.ne.s32.totalorder %s287, %s290
      %p296 = scmp.eq.s32.totalorder %s25, 0
      %p297 = por %p295, %p296
      %p298 = scmp.ne.s32.totalorder %s287, %s290
      %p299 = scmp.eq.s32.totalorder %s30, 3
      %p300 = por %p298, %p299
      %p301 = scmp.ne.s32.totalorder %s290, %s291
      %p302 = scmp.eq.s32.totalorder %s30, 0
      %p303 = por %p301, %p302
      %p304 = scmp.ne.s32.totalorder %s290, %s291
      %p305 = scmp.eq.s32.totalorder %s31, 3
      %p306 = por %p304, %p305
      %p308 = scmp.ne.s32.totalorder %s291, %s307
      %p309 = scmp.eq.s32.totalorder %s31, 0
      %p310 = por %p308, %p309
      %p311 = scmp.le.s32.totalorder 1, %s25
      %p312 = scmp.lt.s32.totalorder %s25, 5
      %p313 = pnand %p311, %p312
      %p314 = pneg %p313
      // Predicated region
      $region9: #{tpu_custom_call.1} parent=5 // pred_check
        _
      $region10: #{tpu_custom_call.1} parent=5 // pred_check_branch
        %316 = sbr.rel (%p313) target = $region12
      $region11: #{tpu_custom_call.1} parent=5 // pred_region
        %s317 = ssub.s32 %s25, 1
        // Predicated region
        $region13: #{tpu_custom_call.1} parent=11 // pred_check
          %p318 = pneg %p86
        $region14: #{tpu_custom_call.1} parent=11 // pred_check_branch
          %320 = sbr.rel (%p318) target = $region16
        $region15: #{tpu_custom_call.1} parent=11 // pred_region
          _
        $region16: #{tpu_custom_call.1} parent=11 // pred_fallthru
          _
        // Predicated region
        $region17: #{tpu_custom_call.1} parent=11 // pred_check
          %p321 = pneg %p107
        $region18: #{tpu_custom_call.1} parent=11 // pred_check_branch
          %323 = sbr.rel (%p321) target = $region20
        $region19: #{tpu_custom_call.1} parent=11 // pred_region
          _
        $region20: #{tpu_custom_call.1} parent=11 // pred_fallthru
          _
        // Predicated region
        $region21: #{tpu_custom_call.1} parent=11 // pred_check
          %p324 = pneg %p128
        $region22: #{tpu_custom_call.1} parent=11 // pred_check_branch
          %326 = sbr.rel (%p324) target = $region24
        $region23: #{tpu_custom_call.1} parent=11 // pred_region
          %s328 = ssub.s32 64, 64
          %329 = vsyncadd [#allocation13], %s328
          %s331 = sshll.u32 [#allocation12], 4
          %s332 = int_to_ptr.vmem [resolvable:$true] %s331
          %334 = dma.hbm_to_vmem [thread:$0]  %s3, 64, %s332, [#allocation13]
        $region24: #{tpu_custom_call.1} parent=11 // pred_fallthru
          _
        // Predicated region
        $region25: #{tpu_custom_call.1} parent=11 // pred_check
          %p335 = pneg %p149
        $region26: #{tpu_custom_call.1} parent=11 // pred_check_branch
          %337 = sbr.rel (%p335) target = $region28
        $region27: #{tpu_custom_call.1} parent=11 // pred_region
          _
        $region28: #{tpu_custom_call.1} parent=11 // pred_fallthru
          _
        // Predicated region
        $region29: #{tpu_custom_call.1} parent=11 // pred_check
          %p338 = pneg %p170
        $region30: #{tpu_custom_call.1} parent=11 // pred_check_branch
          %340 = sbr.rel (%p338) target = $region32
        $region31: #{tpu_custom_call.1} parent=11 // pred_region
          _
        $region32: #{tpu_custom_call.1} parent=11 // pred_fallthru
          _
        // Predicated region
        $region33: #{tpu_custom_call.1} parent=11 // pred_check
          %p341 = pneg %p191
        $region34: #{tpu_custom_call.1} parent=11 // pred_check_branch
          %343 = sbr.rel (%p341) target = $region36
        $region35: #{tpu_custom_call.1} parent=11 // pred_region
          _
        $region36: #{tpu_custom_call.1} parent=11 // pred_fallthru
          _
        // Predicated region
        $region37: #{tpu_custom_call.1} parent=11 // pred_check
          %p344 = pneg %p212
        $region38: #{tpu_custom_call.1} parent=11 // pred_check_branch
          %346 = sbr.rel (%p344) target = $region40
        $region39: #{tpu_custom_call.1} parent=11 // pred_region
          %s348 = ssub.s32 16, 16
          %349 = vsyncadd [#allocation13], %s348
          %s351 = sshll.u32 [#allocation14], 4
          %s352 = int_to_ptr.vmem [resolvable:$true] %s351
          %354 = dma.hbm_to_vmem [thread:$0]  %s7, 16, %s352, [#allocation13]
        $region40: #{tpu_custom_call.1} parent=11 // pred_fallthru
          _
        // Predicated region
        $region41: #{tpu_custom_call.1} parent=11 // pred_check
          %p355 = pneg %p233
        $region42: #{tpu_custom_call.1} parent=11 // pred_check_branch
          %357 = sbr.rel (%p355) target = $region44
        $region43: #{tpu_custom_call.1} parent=11 // pred_region
          %s359 = ssub.s32 256, 256
          %360 = vsyncadd [#allocation16], %s359
          %s361 = sshll.u32 [#allocation15], 4
          %s362 = int_to_ptr.vmem [resolvable:$true] %s361
          %367 = dma.hbm_to_vmem [thread:$0]  %s8, 256, %s362, [#allocation16], 128, 128, 8
        $region44: #{tpu_custom_call.1} parent=11 // pred_fallthru
          _
        // Predicated region
        $region45: #{tpu_custom_call.1} parent=11 // pred_check
          %p368 = pneg %p254
        $region46: #{tpu_custom_call.1} parent=11 // pred_check_branch
          %370 = sbr.rel (%p368) target = $region48
        $region47: #{tpu_custom_call.1} parent=11 // pred_region
          %s372 = ssub.s32 16, 16
          %373 = vsyncadd [#allocation16], %s372
          %s375 = sshll.u32 [#allocation17], 4
          %s376 = int_to_ptr.vmem [resolvable:$true] %s375
          %378 = dma.hbm_to_vmem [thread:$0]  %s9, 16, %s376, [#allocation16]
        $region48: #{tpu_custom_call.1} parent=11 // pred_fallthru
          _
        // Predicated region
        $region49: #{tpu_custom_call.1} parent=11 // pred_check
          %p379 = pneg %p275
        $region50: #{tpu_custom_call.1} parent=11 // pred_check_branch
          %381 = sbr.rel (%p379) target = $region52
        $region51: #{tpu_custom_call.1} parent=11 // pred_region
          _
        $region52: #{tpu_custom_call.1} parent=11 // pred_fallthru
          _
      $region12: #{tpu_custom_call.1} parent=5 // pred_fallthru
        _
      %p382 = scmp.lt.s32.totalorder %s25, 4
      // Predicated region
      $region53: #{tpu_custom_call.1} parent=5 // pred_check
        %p383 = pneg %p382
      $region54: #{tpu_custom_call.1} parent=5 // pred_check_branch
        %385 = sbr.rel (%p383) target = $region56
      $region55: #{tpu_custom_call.1} parent=5 // pred_region
        // Predicated region
        $region57: #{tpu_custom_call.1} parent=55 // pred_check
          %p386 = pneg %p59
        $region58: #{tpu_custom_call.1} parent=55 // pred_check_branch
          %388 = sbr.rel (%p386) target = $region60
        $region59: #{tpu_custom_call.1} parent=55 // pred_region
          %s389 = sand.u32 %s49, 1
          %s390 = scalar_lea.sflag [#allocation10], %s389
          %s391 = sand.u32 %s49, 1
          %s392 = smul.addr %s391, 16
          %s393 = scalar_lea.vmem [#allocation9], %s392
          %s394 = smul.u32 2, %s33
          %s396 = ssub.s32 256, 256
          %397 = vsyncadd %s390, %s396
          %s398 = smul.addr %s32, 4
          %s399 = sadd.s32 %s394, %s398
          %s400 = smul.addr %s399, 128
          %s401 = scalar_lea.hbm %s0, %s400
          %s402 = sshll.u32 %s393, 4
          %s403 = int_to_ptr.vmem [resolvable:$true] %s402
          %408 = dma.hbm_to_vmem [thread:$0]  %s401, 256, %s403, %s390, 128, 128, 8
        $region60: #{tpu_custom_call.1} parent=55 // pred_fallthru
          _
      $region56: #{tpu_custom_call.1} parent=5 // pred_fallthru
        _
      %p409 = scmp.le.s32.totalorder 1, %s25
      %p410 = scmp.lt.s32.totalorder %s25, 5
      %p411 = pnand %p409, %p410
      %p412 = pneg %p411
      // Predicated region
      $region61: #{tpu_custom_call.1} parent=5 // pred_check
        _
      $region62: #{tpu_custom_call.1} parent=5 // pred_check_branch
        %414 = sbr.rel (%p411) target = $region64
      $region63: #{tpu_custom_call.1} parent=5 // pred_region
        %s415 = ssub.s32 %s25, 1
        %s416 = sand.u32 %s52, 1
        %s417 = scalar_lea.sflag [#allocation10], %s416
        %s418 = sand.u32 %s52, 1
        %s419 = smul.addr %s418, 16
        %s420 = scalar_lea.vmem [#allocation9], %s419
        // Predicated region
        $region65: #{tpu_custom_call.1} parent=63 // pred_check
          %p421 = pneg %p65
        $region66: #{tpu_custom_call.1} parent=63 // pred_check_branch
          %423 = sbr.rel (%p421) target = $region68
        $region67: #{tpu_custom_call.1} parent=63 // pred_region
          %424 = dma.done %s417, 256
        $region68: #{tpu_custom_call.1} parent=63 // pred_fallthru
          _
        // Predicated region
        $region69: #{tpu_custom_call.1} parent=63 // pred_check
          %p425 = pneg %p128
        $region70: #{tpu_custom_call.1} parent=63 // pred_check_branch
          %427 = sbr.rel (%p425) target = $region72
        $region71: #{tpu_custom_call.1} parent=63 // pred_region
          %428 = dma.done [#allocation13], 64
        $region72: #{tpu_custom_call.1} parent=63 // pred_fallthru
          _
        // Predicated region
        $region73: #{tpu_custom_call.1} parent=63 // pred_check
          %p429 = pneg %p212
        $region74: #{tpu_custom_call.1} parent=63 // pred_check_branch
          %431 = sbr.rel (%p429) target = $region76
        $region75: #{tpu_custom_call.1} parent=63 // pred_region
          %432 = dma.done [#allocation13], 16
        $region76: #{tpu_custom_call.1} parent=63 // pred_fallthru
          _
        // Predicated region
        $region77: #{tpu_custom_call.1} parent=63 // pred_check
          %p433 = pneg %p233
        $region78: #{tpu_custom_call.1} parent=63 // pred_check_branch
          %435 = sbr.rel (%p433) target = $region80
        $region79: #{tpu_custom_call.1} parent=63 // pred_region
          %436 = dma.done [#allocation16], 256
        $region80: #{tpu_custom_call.1} parent=63 // pred_fallthru
          _
        // Predicated region
        $region81: #{tpu_custom_call.1} parent=63 // pred_check
          %p437 = pneg %p254
        $region82: #{tpu_custom_call.1} parent=63 // pred_check_branch
          %439 = sbr.rel (%p437) target = $region84
        $region83: #{tpu_custom_call.1} parent=63 // pred_region
          %440 = dma.done [#allocation16], 16
        $region84: #{tpu_custom_call.1} parent=63 // pred_fallthru
          _
        %s441 = sand.u32 %s52, 1
        %s442 = scalar_lea.sflag [#allocation10], %s441
        %s443 = sand.u32 %s52, 1
        %s444 = smul.addr %s443, 16
        %s445 = scalar_lea.vmem [#allocation9], %s444
        %p446 = pneg %p65
        %p447 = pneg %p62
        %p448 = pneg %p86
        %p449 = pneg %p83
        %p450 = pneg %p107
        %p451 = pneg %p104
        %p452 = pneg %p128
        %p453 = pneg %p125
        %p454 = pneg %p149
        %p455 = pneg %p146
        %p456 = pneg %p170
        %p457 = pneg %p167
        %p458 = pneg %p191
        %p459 = pneg %p188
        %p460 = pneg %p212
        %p461 = pneg %p209
        %p462 = pneg %p233
        %p463 = pneg %p230
        %p464 = pneg %p254
        %p465 = pneg %p251
        %p466 = pneg %p275
        %p467 = pneg %p272
        %p468 = pneg %p303
        %p469 = pneg %p300
        %s470 = sand.u32 %s290, 1
        %s471 = scalar_lea.sflag [#allocation11], %s470
        %s472 = sand.u32 %s290, 1
        %s473 = smul.addr %s472, 16
        %s474 = scalar_lea.vmem [#allocation18], %s473
        %s475 = smul.u32 2, %s35
        %s476 = smul.u32 2, %s35
        %p478 = scmp.eq.s32.totalorder %s35, 0
        // Predicated region
        $region85: #{tpu_custom_call.1} parent=63 // pred_check
          %p479 = pneg %p478
        $region86: #{tpu_custom_call.1} parent=63 // pred_check_branch
          %481 = sbr.rel (%p479) target = $region88
        $region87: #{tpu_custom_call.1} parent=63 // pred_region
          %vm482 = vcmask 523264
          %483 = vst.msk [vmem:[#allocation8] sm:$0xff] %vm482, 0.0
          %484 = vst.msk [vmem:[#allocation8 + $0x8] sm:$0xff] %vm482, 0.0
          %485 = vst.msk [vmem:[#allocation2] sm:$0xff] %vm482, 0.0
        $region88: #{tpu_custom_call.1} parent=63 // pred_fallthru
          _
        %v486 = vld [vmem:[%s420] sm:$0xff]
        %v487 = vld [vmem:[%s420 + $0x8] sm:$0xff]
        %v488 = vmul.f32 %v486, %v486
        %v489 = vmul.f32 %v487, %v487
        %vm490 = vcmask 261120
        %v491 = vsel %vm490, %v488, 0.0
        %492 = vadd.xlane.f32.xlu0 %v491
        %v493 = vpop.xlane.xlu0 %492
        %v494 = vsel %vm490, %v489, 0.0
        %495 = vadd.xlane.f32.xlu0 %v494
        %v496 = vpop.xlane.xlu0 %495
        %v497 = vrcp.pop 32.0
        %v498 = vmul.f32 %v493, %v497
        %v499 = vmul.f32 %v496, %v497
        %v500 = vadd.f32 %v498, 1e-05
        %v501 = vadd.f32 %v499, 1e-05
        %v502 = vrsqrt.pop %v500
        %v503 = vrsqrt.pop %v501
        %v504 = vmul.f32 %v486, %v502
        %v505 = vmul.f32 %v487, %v503
        %v506 = vld [vmem:[%s1] sm:$0x1]
        %v508 = vlaneseq
        %v509 = vshrl.u32 %v508, 7
        %v510 = vsub.s32 0, %v509
        %v511 = vrot.slane %v506, %v510
        %v513 = vmul.f32 %v504, %v511
        %v514 = vmul.f32 %v505, %v511
        %v515 = vpack.c.bf16 %v514, %v513
        %v516 = vld [vmem:[%s2] sm:$0xf]
        %v517 = vld [vmem:[%s2 + $0x4] sm:$0xf]
        %v518 = vld [vmem:[%s2 + $0x8] sm:$0xf]
        %v519 = vld [vmem:[%s2 + $0xc] sm:$0xf]
        %v524 = vunpack.c.l.b16 %v516
        %v525 = vunpack.c.l.b16 %v517
        %v526 = vunpack.c.l.b16 %v518
        %v527 = vunpack.c.l.b16 %v519
        %v528 = vpack.c.b16 %v525, %v524
        %v529 = vpack.c.b16 %v527, %v526
        %v533 = vsel %vm490, %v515, 0
        %535 = vmatprep.subr.bf16.mxu0 0
        %536 = vmatpush1.bf16.msra.mxu0 0
        %537 = vmatprep.subr.bf16.mxu0 0
        %538 = vmatpush1.bf16.msra.mxu0 0
        %539 = vmatprep.subr.bf16.mxu0 0
        %540 = vmatpush1.bf16.msra.mxu0 0
        %541 = vmatprep.subr.bf16.mxu0 0
        %542 = vmatpush1.bf16.msra.mxu0 0
        %543 = vmatprep.subr.bf16.mxu0 0
        %544 = vmatpush1.bf16.msra.mxu0 0
        %545 = vmatprep.subr.bf16.mxu0 0
        %546 = vmatpush1.bf16.msra.mxu0 0
        %547 = vmatprep.subr.bf16.mxu0 0
        %548 = vmatpush1.bf16.msra.mxu0 %v529
        %549 = vmatprep.subr.bf16.mxu0 0
        %550 = vmatpush1.bf16.msra.mxu0 %v528
        %551 = vmatprep.subr.bf16.mxu0 0
        %552 = vmatpush2.bf16.msra.mxu0 0
        %553 = vmatprep.subr.bf16.mxu0 0
        %554 = vmatpush2.bf16.msra.mxu0 0
        %555 = vmatprep.subr.bf16.mxu0 0
        %556 = vmatpush2.bf16.msra.mxu0 0
        %557 = vmatprep.subr.bf16.mxu0 0
        %558 = vmatpush2.bf16.msra.mxu0 0
        %559 = vmatprep.subr.bf16.mxu0 0
        %560 = vmatpush2.bf16.msra.mxu0 0
        %561 = vmatprep.subr.bf16.mxu0 0
        %562 = vmatpush2.bf16.msra.mxu0 0
        %563 = vmatprep.subr.bf16.mxu0 0
        %564 = vmatpush2.bf16.msra.mxu0 0
        %565 = vmatprep.subr.bf16.mxu0 0
        %566 = vmatpush2.bf16.msra.mxu0 0
        %567 = vmatprep.mubr.bf16.mxu0 0
        %568 = vmatmul.mubr.bf16.gmra.mxu0 %v533
        %v569 = vpop.f32.mrf.mxu0
        %v570 = vadd.f32 0.0, %v569
        %v571 = vpop.f32.mrf.mxu0
        %v572 = vpop.f32.mrf.mxu0
        %v573 = vadd.f32 0.0, %v572
        %v574 = vpop.f32.mrf.mxu0
        %575 = vdwg.mxu0
        %vm576 = vcmask 523264
        %577 = vst.msk [vmem:[#allocation2 + $0x8] sm:$0xff] %vm576, %v570
        %578 = vst.msk [vmem:[#allocation2 + $0x10] sm:$0xff] %vm576, %v573
        %v579 = vld [vmem:[#allocation2 + $0x5] sm:$0xff]
        %v580 = vld [vmem:[#allocation2 + $0xd] sm:$0xff]
        %v581 = vld [vmem:[#allocation12] sm:$0x1]
        %v582 = vlaneseq
        %v583 = vshrl.u32 %v582, 7
        %v584 = vsub.s32 0, %v583
        %v585 = vrot.slane %v581, %v584
        %v586 = vmul.f32 %v579, %v585
        %v587 = vmul.f32 %v580, %v585
        %v588 = vld [vmem:[#allocation2 + $0x6] sm:$0xff]
        %v589 = vld [vmem:[#allocation2 + $0xe] sm:$0xff]
        %v590 = vld [vmem:[#allocation12 + $0x1] sm:$0x1]
        %v591 = vlaneseq
        %v592 = vshrl.u32 %v591, 7
        %v593 = vsub.s32 0, %v592
        %v594 = vrot.slane %v590, %v593
        %v595 = vmul.f32 %v588, %v594
        %v596 = vmul.f32 %v589, %v594
        %v597 = vadd.f32 %v586, %v595
        %v598 = vadd.f32 %v587, %v596
        %v599 = vld [vmem:[#allocation2 + $0x7] sm:$0xff]
        %v600 = vld [vmem:[#allocation2 + $0xf] sm:$0xff]
        %v601 = vld [vmem:[#allocation12 + $0x2] sm:$0x1]
        %v602 = vlaneseq
        %v603 = vshrl.u32 %v602, 7
        %v604 = vsub.s32 0, %v603
        %v605 = vrot.slane %v601, %v604
        %v606 = vmul.f32 %v599, %v605
        %v607 = vmul.f32 %v600, %v605
        %v608 = vadd.f32 %v597, %v606
        %v609 = vadd.f32 %v598, %v607
        %v610 = vld [vmem:[#allocation2 + $0x8] sm:$0xff]
        %v611 = vld [vmem:[#allocation2 + $0x10] sm:$0xff]
        %v612 = vld [vmem:[#allocation12 + $0x3] sm:$0x1]
        %v613 = vlaneseq
        %v614 = vshrl.u32 %v613, 7
        %v615 = vsub.s32 0, %v614
        %v616 = vrot.slane %v612, %v615
        %v617 = vmul.f32 %v610, %v616
        %v618 = vmul.f32 %v611, %v616
        %v619 = vadd.f32 %v608, %v617
        %v620 = vadd.f32 %v609, %v618
        %v621 = vld [vmem:[%s4] sm:$0x1]
        %v623 = vlaneseq
        %v624 = vshrl.u32 %v623, 7
        %v625 = vsub.s32 0, %v624
        %v626 = vrot.slane %v621, %v625
        %v628 = vadd.f32 %v619, %v626
        %v629 = vadd.f32 %v620, %v626
        %v630 = vsub.f32 0.0, %v628
        %v631 = vsub.f32 0.0, %v629
        %v632 = vmul.f32 %v630, 1.442695
        %v633 = vpow.pop %v632
        %v634 = vmul.f32 %v631, 1.442695
        %v635 = vpow.pop %v634
        %v636 = vadd.f32 %v633, 1.0
        %v637 = vadd.f32 %v635, 1.0
        %v638 = vrcp.pop %v636
        %v639 = vrcp.pop %v637
        %v640 = vmul.f32 %v628, %v638
        %v641 = vmul.f32 %v629, %v639
        %642 = vst.msk [vmem:[#allocation3] sm:$0xff] %vm576, %v640
        %643 = vst.msk [vmem:[#allocation3 + $0x8] sm:$0xff] %vm576, %v641
        %v644 = vld [vmem:[#allocation2 + $0x15] sm:$0x7]
        %vm645 = vcmask 518144
        %646 = vst.msk [vmem:[#allocation2 + $0x5] sm:$0x7] %vm645, %v644
        %v647 = vpack.c.bf16 %v641, %v640
        %v648 = vld [vmem:[%s5] sm:$0xff]
        %v649 = vld [vmem:[%s5 + $0x8] sm:$0xf]
        %v650 = vld [vmem:[%s5 + $0xc] sm:$0xff]
        %v651 = vld [vmem:[%s5 + $0x14] sm:$0xf]
        %v652 = vld [vmem:[%s5 + $0x18] sm:$0xff]
        %v653 = vld [vmem:[%s5 + $0x20] sm:$0xf]
        %v654 = vld [vmem:[%s5 + $0x24] sm:$0xff]
        %v655 = vld [vmem:[%s5 + $0x2c] sm:$0xf]
        %v656 = vld [vmem:[%s5 + $0x30] sm:$0xff]
        %v657 = vld [vmem:[%s5 + $0x38] sm:$0xf]
        %v658 = vld [vmem:[%s5 + $0x3c] sm:$0xff]
        %v659 = vld [vmem:[%s5 + $0x44] sm:$0xf]
        %v660 = vld [vmem:[%s5 + $0x48] sm:$0xff]
        %v661 = vld [vmem:[%s5 + $0x50] sm:$0xf]
        %v662 = vld [vmem:[%s5 + $0x54] sm:$0xff]
        %v663 = vld [vmem:[%s5 + $0x5c] sm:$0xf]
        %v680 = vunpack.c.l.b16 %v648
        %v681 = vunpack.c.h.b16 %v648
        %v682 = vunpack.c.l.b16 %v649
        %v683 = vunpack.c.l.b16 %v650
        %v684 = vunpack.c.h.b16 %v650
        %v685 = vunpack.c.l.b16 %v651
        %v686 = vunpack.c.l.b16 %v652
        %v687 = vunpack.c.h.b16 %v652
        %v688 = vunpack.c.l.b16 %v653
        %v689 = vunpack.c.l.b16 %v654
        %v690 = vunpack.c.h.b16 %v654
        %v691 = vunpack.c.l.b16 %v655
        %v692 = vunpack.c.l.b16 %v656
        %v693 = vunpack.c.h.b16 %v656
        %v694 = vunpack.c.l.b16 %v657
        %v695 = vunpack.c.l.b16 %v658
        %v696 = vunpack.c.h.b16 %v658
        %v697 = vunpack.c.l.b16 %v659
        %v698 = vunpack.c.l.b16 %v660
        %v699 = vunpack.c.h.b16 %v660
        %v700 = vunpack.c.l.b16 %v661
        %v701 = vunpack.c.l.b16 %v662
        %v702 = vunpack.c.h.b16 %v662
        %v703 = vunpack.c.l.b16 %v663
        %v704 = vpack.c.b16 %v683, %v680
        %v705 = vpack.c.b16 %v684, %v681
        %v706 = vpack.c.b16 %v685, %v682
        %v707 = vpack.c.b16 %v689, %v686
        %v708 = vpack.c.b16 %v690, %v687
        %v709 = vpack.c.b16 %v691, %v688
        %v710 = vpack.c.b16 %v695, %v692
        %v711 = vpack.c.b16 %v696, %v693
        %v712 = vpack.c.b16 %v697, %v694
        %v713 = vpack.c.b16 %v701, %v698
        %v714 = vpack.c.b16 %v702, %v699
        %v715 = vpack.c.b16 %v703, %v700
        %v729 = vsel %vm576, %v647, 0
        %731 = vmatprep.subr.bf16.mxu0 0
        %732 = vmatpush1.bf16.msra.mxu0 0
        %733 = vmatprep.subr.bf16.mxu0 0
        %734 = vmatpush1.bf16.msra.mxu0 0
        %735 = vmatprep.subr.bf16.mxu0 0
        %736 = vmatpush1.bf16.msra.mxu0 0
        %737 = vmatprep.subr.bf16.mxu0 0
        %738 = vmatpush1.bf16.msra.mxu0 0
        %739 = vmatprep.subr.bf16.mxu0 %v714
        %740 = vmatpush1.bf16.msra.mxu0 %v713
        %741 = vmatprep.subr.bf16.mxu0 %v711
        %742 = vmatpush1.bf16.msra.mxu0 %v710
        %743 = vmatprep.subr.bf16.mxu0 %v708
        %744 = vmatpush1.bf16.msra.mxu0 %v707
        %745 = vmatprep.subr.bf16.mxu0 %v705
        %746 = vmatpush1.bf16.msra.mxu0 %v704
        %747 = vmatprep.subr.bf16.mxu0 0
        %748 = vmatpush2.bf16.msra.mxu0 0
        %749 = vmatprep.subr.bf16.mxu0 0
        %750 = vmatpush2.bf16.msra.mxu0 0
        %751 = vmatprep.subr.bf16.mxu0 0
        %752 = vmatpush2.bf16.msra.mxu0 0
        %753 = vmatprep.subr.bf16.mxu0 0
        %754 = vmatpush2.bf16.msra.mxu0 0
        %755 = vmatprep.subr.bf16.mxu0 0
        %756 = vmatpush2.bf16.msra.mxu0 0
        %757 = vmatprep.subr.bf16.mxu0 0
        %758 = vmatpush2.bf16.msra.mxu0 0
        %759 = vmatprep.subr.bf16.mxu0 0
        %760 = vmatpush2.bf16.msra.mxu0 0
        %761 = vmatprep.subr.bf16.mxu0 0
        %762 = vmatpush2.bf16.msra.mxu0 0
        %763 = vmatprep.mubr.bf16.mxu0 0
        %764 = vmatmul.mubr.bf16.gmra.mxu0 %v729
        %v765 = vpop.f32.mrf.mxu0
        %v766 = vadd.f32 0.0, %v765
        %v767 = vpop.f32.mrf.mxu0
        %v768 = vadd.f32 0.0, %v767
        %v769 = vpop.f32.mrf.mxu0
        %v770 = vadd.f32 0.0, %v769
        %v771 = vpop.f32.mrf.mxu0
        %v772 = vadd.f32 0.0, %v771
        %773 = vdwg.mxu0
        %774 = vmatprep.subr.bf16.mxu0 0
        %775 = vmatpush1.bf16.msra.mxu0 0
        %776 = vmatprep.subr.bf16.mxu0 0
        %777 = vmatpush1.bf16.msra.mxu0 0
        %778 = vmatprep.subr.bf16.mxu0 0
        %779 = vmatpush1.bf16.msra.mxu0 0
        %780 = vmatprep.subr.bf16.mxu0 0
        %781 = vmatpush1.bf16.msra.mxu0 0
        %782 = vmatprep.subr.bf16.mxu0 0
        %783 = vmatpush1.bf16.msra.mxu0 %v715
        %784 = vmatprep.subr.bf16.mxu0 0
        %785 = vmatpush1.bf16.msra.mxu0 %v712
        %786 = vmatprep.subr.bf16.mxu0 0
        %787 = vmatpush1.bf16.msra.mxu0 %v709
        %788 = vmatprep.subr.bf16.mxu0 0
        %789 = vmatpush1.bf16.msra.mxu0 %v706
        %790 = vmatprep.subr.bf16.mxu0 0
        %791 = vmatpush2.bf16.msra.mxu0 0
        %792 = vmatprep.subr.bf16.mxu0 0
        %793 = vmatpush2.bf16.msra.mxu0 0
        %794 = vmatprep.subr.bf16.mxu0 0
        %795 = vmatpush2.bf16.msra.mxu0 0
        %796 = vmatprep.subr.bf16.mxu0 0
        %797 = vmatpush2.bf16.msra.mxu0 0
        %798 = vmatprep.subr.bf16.mxu0 0
        %799 = vmatpush2.bf16.msra.mxu0 0
        %800 = vmatprep.subr.bf16.mxu0 0
        %801 = vmatpush2.bf16.msra.mxu0 0
        %802 = vmatprep.subr.bf16.mxu0 0
        %803 = vmatpush2.bf16.msra.mxu0 0
        %804 = vmatprep.subr.bf16.mxu0 0
        %805 = vmatpush2.bf16.msra.mxu0 0
        %806 = vmatprep.mubr.bf16.mxu0 0
        %807 = vmatmul.mubr.bf16.gmra.mxu0 %v729
        %v808 = vpop.f32.mrf.mxu0
        %v809 = vadd.f32 0.0, %v808
        %v810 = vpop.f32.mrf.mxu0
        %v811 = vpop.f32.mrf.mxu0
        %v812 = vadd.f32 0.0, %v811
        %v813 = vpop.f32.mrf.mxu0
        %814 = vdwg.mxu0
        %815 = vst [vmem:[#allocation6] sm:$0xff] %v768
        %816 = vst [vmem:[#allocation6 + $0x8] sm:$0xff] %v809
        %817 = vst [vmem:[#allocation6 + $0x10] sm:$0xff] %v772
        %818 = vst [vmem:[#allocation6 + $0x18] sm:$0xff] %v812
        %v819 = vpack.c.bf16 %v770, %v766
        %v820 = vld [vmem:[%s6] sm:$0xf]
        %v821 = vld [vmem:[%s6 + $0x4] sm:$0xf]
        %v822 = vld [vmem:[%s6 + $0x8] sm:$0xf]
        %v823 = vld [vmem:[%s6 + $0xc] sm:$0xf]
        %v824 = vld [vmem:[%s6 + $0x10] sm:$0xf]
        %v825 = vld [vmem:[%s6 + $0x14] sm:$0xf]
        %v826 = vld [vmem:[%s6 + $0x18] sm:$0xf]
        %v827 = vld [vmem:[%s6 + $0x1c] sm:$0xf]
        %v828 = vld [vmem:[%s6 + $0x20] sm:$0xf]
        %v829 = vld [vmem:[%s6 + $0x24] sm:$0xf]
        %v830 = vld [vmem:[%s6 + $0x28] sm:$0xf]
        %v831 = vld [vmem:[%s6 + $0x2c] sm:$0xf]
        %v832 = vld [vmem:[%s6 + $0x30] sm:$0xf]
        %v833 = vld [vmem:[%s6 + $0x34] sm:$0xf]
        %v834 = vld [vmem:[%s6 + $0x38] sm:$0xf]
        %v835 = vld [vmem:[%s6 + $0x3c] sm:$0xf]
        %v836 = vld [vmem:[#allocation14] sm:$0x1]
        %v838 = vlaneseq
        %v839 = vshrl.u32 %v838, 7
        %v840 = vsub.s32 0, %v839
        %v841 = vrot.slane %v836, %v840
        %v859 = vunpack.c.l.b16 %v820
        %v860 = vunpack.c.l.b16 %v821
        %v861 = vunpack.c.l.b16 %v822
        %v862 = vunpack.c.l.b16 %v823
        %v863 = vunpack.c.l.b16 %v824
        %v864 = vunpack.c.l.b16 %v825
        %v865 = vunpack.c.l.b16 %v826
        %v866 = vunpack.c.l.b16 %v827
        %v867 = vunpack.c.l.b16 %v828
        %v868 = vunpack.c.l.b16 %v829
        %v869 = vunpack.c.l.b16 %v830
        %v870 = vunpack.c.l.b16 %v831
        %v871 = vunpack.c.l.b16 %v832
        %v872 = vunpack.c.l.b16 %v833
        %v873 = vunpack.c.l.b16 %v834
        %v874 = vunpack.c.l.b16 %v835
        %v875 = vpack.c.b16 %v860, %v859
        %v876 = vpack.c.b16 %v862, %v861
        %v877 = vpack.c.b16 %v864, %v863
        %v878 = vpack.c.b16 %v866, %v865
        %v879 = vpack.c.b16 %v868, %v867
        %v880 = vpack.c.b16 %v870, %v869
        %v881 = vpack.c.b16 %v872, %v871
        %v882 = vpack.c.b16 %v874, %v873
        %891 = vmatprep.subr.bf16.mxu0 0
        %892 = vmatpush1.bf16.msra.mxu0 %v882
        %893 = vmatprep.subr.bf16.mxu0 0
        %894 = vmatpush1.bf16.msra.mxu0 %v881
        %895 = vmatprep.subr.bf16.mxu0 0
        %896 = vmatpush1.bf16.msra.mxu0 %v880
        %897 = vmatprep.subr.bf16.mxu0 0
        %898 = vmatpush1.bf16.msra.mxu0 %v879
        %899 = vmatprep.subr.bf16.mxu0 0
        %900 = vmatpush1.bf16.msra.mxu0 %v878
        %901 = vmatprep.subr.bf16.mxu0 0
        %902 = vmatpush1.bf16.msra.mxu0 %v877
        %903 = vmatprep.subr.bf16.mxu0 0
        %904 = vmatpush1.bf16.msra.mxu0 %v876
        %905 = vmatprep.subr.bf16.mxu0 0
        %906 = vmatpush1.bf16.msra.mxu0 %v875
        %907 = vmatprep.subr.bf16.mxu0 0
        %908 = vmatpush2.bf16.msra.mxu0 0
        %909 = vmatprep.subr.bf16.mxu0 0
        %910 = vmatpush2.bf16.msra.mxu0 0
        %911 = vmatprep.subr.bf16.mxu0 0
        %912 = vmatpush2.bf16.msra.mxu0 0
        %913 = vmatprep.subr.bf16.mxu0 0
        %914 = vmatpush2.bf16.msra.mxu0 0
        %915 = vmatprep.subr.bf16.mxu0 0
        %916 = vmatpush2.bf16.msra.mxu0 0
        %917 = vmatprep.subr.bf16.mxu0 0
        %918 = vmatpush2.bf16.msra.mxu0 0
        %919 = vmatprep.subr.bf16.mxu0 0
        %920 = vmatpush2.bf16.msra.mxu0 0
        %921 = vmatprep.subr.bf16.mxu0 0
        %922 = vmatpush2.bf16.msra.mxu0 0
        %923 = vmatprep.mubr.bf16.mxu0 0
        %924 = vmatmul.mubr.bf16.gmra.mxu0 %v819
        %v925 = vpop.f32.mrf.mxu0
        %v926 = vadd.f32 %v841, %v925
        %v927 = vpop.f32.mrf.mxu0
        %v928 = vpop.f32.mrf.mxu0
        %v929 = vadd.f32 %v841, %v928
        %v930 = vpop.f32.mrf.mxu0
        %931 = vdwg.mxu0
        %vm932 = vcmp.gt.f32.partialorder %v926, 20.0
        %vm933 = vcmp.gt.f32.partialorder %v929, 20.0
        %v934 = vmul.f32 %v926, 1.442695
        %v935 = vpow.pop %v934
        %v936 = vmul.f32 %v929, 1.442695
        %v937 = vpow.pop %v936
        %v938 = vadd.f32 %v935, 1.0
        %v939 = vadd.f32 %v937, 1.0
        %v940 = vlog2.pop %v938
        %v941 = vmul.f32 %v940, 0.6931472
        %v942 = vlog2.pop %v939
        %v943 = vmul.f32 %v942, 0.6931472
        %v944 = vsel %vm932, %v926, %v941
        %v945 = vsel %vm933, %v929, %v943
        %946 = vst.msk [vmem:[#allocation5] sm:$0xff] %vm576, %v944
        %947 = vst.msk [vmem:[#allocation5 + $0x8] sm:$0xff] %vm576, %v945
        %v948 = vmul.f32 %v944, %v640
        %v949 = vmul.f32 %v945, %v641
        %950 = vst.msk [vmem:[#allocation4] sm:$0xff] %vm576, %v948
        %951 = vst.msk [vmem:[#allocation4 + $0x8] sm:$0xff] %vm576, %v949
        %v952 = vld [vmem:[#allocation15] sm:$0xff]
        %v953 = vld [vmem:[#allocation15 + $0x8] sm:$0xff]
        %v954 = vmul.f32 %v952, 1.442695
        %v955 = vpow.pop %v954
        %v956 = vmul.f32 %v953, 1.442695
        %v957 = vpow.pop %v956
        %v958 = vsub.f32 0.0, %v955
        %v959 = vsub.f32 0.0, %v957
        %v960 = vld [vmem:[#allocation8] sm:$0xff]
        %v961 = vld [vmem:[#allocation8 + $0x8] sm:$0xff]
        %v962 = vld [vmem:[#allocation5] sm:$0xff]
        %v963 = vld [vmem:[#allocation4] sm:$0xff]
        %s964 = smul.u32 0, 2
        %s965 = smul.addr %s964, 8
        %s966 = scalar_lea.vmem [#allocation6], %s965
        %v967 = vld [vmem:[%s966] sm:$0xff]
        %v968 = vld [vmem:[%s966 + $0x8] sm:$0xff]
        %v970 = vcombine.high %v962, %v962
        %v972 = vunpack.c.l.s4 1966171168
        %v973 = vunpack.c.0.s8 %v972
        %v974 = vlaneseq
        %v975 = vshrl.u32 %v974, 7
        %v976 = vsub.s32 %v973, %v975
        %v977 = vrot.slane %v962, %v976
        %v979 = vunpack.c.l.s4 1966171168
        %v980 = vunpack.c.0.s8 %v979
        %v981 = vlaneseq
        %v982 = vshrl.u32 %v981, 7
        %v983 = vsub.s32 %v980, %v982
        %v984 = vrot.slane %v970, %v983
        %v985 = vcombine.high %v977, %v977
        %v986 = vcombine.high %v984, %v984
        %v988 = vunpack.c.l.s4 1966171168
        %v989 = vunpack.c.0.s8 %v988
        %v990 = vlaneseq
        %v991 = vshrl.u32 %v990, 7
        %v992 = vsub.s32 %v989, %v991
        %v993 = vrot.slane %v977, %v992
        %v995 = vunpack.c.l.s4 1966171168
        %v996 = vunpack.c.0.s8 %v995
        %v997 = vlaneseq
        %v998 = vshrl.u32 %v997, 7
        %v999 = vsub.s32 %v996, %v998
        %v1000 = vrot.slane %v984, %v999
        %v1002 = vunpack.c.l.s4 1966171168
        %v1003 = vunpack.c.0.s8 %v1002
        %v1004 = vlaneseq
        %v1005 = vshrl.u32 %v1004, 7
        %v1006 = vsub.s32 %v1003, %v1005
        %v1007 = vrot.slane %v985, %v1006
        %v1009 = vunpack.c.l.s4 1966171168
        %v1010 = vunpack.c.0.s8 %v1009
        %v1011 = vlaneseq
        %v1012 = vshrl.u32 %v1011, 7
        %v1013 = vsub.s32 %v1010, %v1012
        %v1014 = vrot.slane %v986, %v1013
        %v1015 = vcombine.high %v993, %v993
        %v1016 = vcombine.high %v1000, %v1000
        %v1017 = vcombine.high %v1007, %v1007
        %v1018 = vcombine.high %v1014, %v1014
        %v1019 = vlaneseq
        %v1020 = vshrl.u32 %v1019, 7
        %v1021 = vsub.s32 0, %v1020
        %v1022 = vrot.slane %v993, %v1021
        %v1023 = vlaneseq
        %v1024 = vshrl.u32 %v1023, 7
        %v1025 = vsub.s32 0, %v1024
        %v1026 = vrot.slane %v1007, %v1025
        %v1027 = vlaneseq
        %v1028 = vshrl.u32 %v1027, 7
        %v1029 = vsub.s32 0, %v1028
        %v1030 = vrot.slane %v1015, %v1029
        %v1031 = vlaneseq
        %v1032 = vshrl.u32 %v1031, 7
        %v1033 = vsub.s32 0, %v1032
        %v1034 = vrot.slane %v1017, %v1033
        %v1035 = vlaneseq
        %v1036 = vshrl.u32 %v1035, 7
        %v1037 = vsub.s32 0, %v1036
        %v1038 = vrot.slane %v1000, %v1037
        %v1039 = vlaneseq
        %v1040 = vshrl.u32 %v1039, 7
        %v1041 = vsub.s32 0, %v1040
        %v1042 = vrot.slane %v1014, %v1041
        %v1043 = vlaneseq
        %v1044 = vshrl.u32 %v1043, 7
        %v1045 = vsub.s32 0, %v1044
        %v1046 = vrot.slane %v1016, %v1045
        %v1047 = vlaneseq
        %v1048 = vshrl.u32 %v1047, 7
        %v1049 = vsub.s32 0, %v1048
        %v1050 = vrot.slane %v1018, %v1049
        %v1059 = vmul.f32 %v1022, %v958
        %v1060 = vmul.f32 %v1022, %v959
        %v1061 = vmul.f32 %v1026, %v958
        %v1062 = vmul.f32 %v1026, %v959
        %v1063 = vmul.f32 %v1030, %v958
        %v1064 = vmul.f32 %v1030, %v959
        %v1065 = vmul.f32 %v1034, %v958
        %v1066 = vmul.f32 %v1034, %v959
        %v1067 = vmul.f32 %v1038, %v958
        %v1068 = vmul.f32 %v1038, %v959
        %v1069 = vmul.f32 %v1042, %v958
        %v1070 = vmul.f32 %v1042, %v959
        %v1071 = vmul.f32 %v1046, %v958
        %v1072 = vmul.f32 %v1046, %v959
        %v1073 = vmul.f32 %v1050, %v958
        %v1074 = vmul.f32 %v1050, %v959
        %v1075 = vmul.f32 %v1059, 1.442695
        %v1076 = vpow.pop %v1075
        %v1077 = vmul.f32 %v1060, 1.442695
        %v1078 = vpow.pop %v1077
        %v1079 = vmul.f32 %v1061, 1.442695
        %v1080 = vpow.pop %v1079
        %v1081 = vmul.f32 %v1062, 1.442695
        %v1082 = vpow.pop %v1081
        %v1083 = vmul.f32 %v1063, 1.442695
        %v1084 = vpow.pop %v1083
        %v1085 = vmul.f32 %v1064, 1.442695
        %v1086 = vpow.pop %v1085
        %v1087 = vmul.f32 %v1065, 1.442695
        %v1088 = vpow.pop %v1087
        %v1089 = vmul.f32 %v1066, 1.442695
        %v1090 = vpow.pop %v1089
        %v1091 = vmul.f32 %v1067, 1.442695
        %v1092 = vpow.pop %v1091
        %v1093 = vmul.f32 %v1068, 1.442695
        %v1094 = vpow.pop %v1093
        %v1095 = vmul.f32 %v1069, 1.442695
        %v1096 = vpow.pop %v1095
        %v1097 = vmul.f32 %v1070, 1.442695
        %v1098 = vpow.pop %v1097
        %v1099 = vmul.f32 %v1071, 1.442695
        %v1100 = vpow.pop %v1099
        %v1101 = vmul.f32 %v1072, 1.442695
        %v1102 = vpow.pop %v1101
        %v1103 = vmul.f32 %v1073, 1.442695
        %v1104 = vpow.pop %v1103
        %v1105 = vmul.f32 %v1074, 1.442695
        %v1106 = vpow.pop %v1105
        %v1107 = vlaneseq
        %v1108 = vshrl.u32 %v1107, 7
        %v1109 = vsub.s32 0, %v1108
        %v1110 = vrot.slane %v967, %v1109
        %1112 = vbcast.lane.b32.xlu0 %v1110, 256
        %v1113 = vpop.permute.xlu0 %1112
        %s1115 = sor.u32 256, 8
        %1116 = vbcast.lane.b32.xlu0 %v1110, %s1115
        %v1117 = vpop.permute.xlu0 %1116
        %v1118 = vlaneseq
        %v1119 = vshrl.u32 %v1118, 7
        %v1120 = vsub.s32 1, %v1119
        %v1121 = vrot.slane %v967, %v1120
        %1123 = vbcast.lane.b32.xlu0 %v1121, 256
        %v1124 = vpop.permute.xlu0 %1123
        %s1126 = sor.u32 256, 8
        %1127 = vbcast.lane.b32.xlu0 %v1121, %s1126
        %v1128 = vpop.permute.xlu0 %1127
        %v1129 = vlaneseq
        %v1130 = vshrl.u32 %v1129, 7
        %v1131 = vsub.s32 2, %v1130
        %v1132 = vrot.slane %v967, %v1131
        %1134 = vbcast.lane.b32.xlu0 %v1132, 256
        %v1135 = vpop.permute.xlu0 %1134
        %s1137 = sor.u32 256, 8
        %1138 = vbcast.lane.b32.xlu0 %v1132, %s1137
        %v1139 = vpop.permute.xlu0 %1138
        %v1140 = vlaneseq
        %v1141 = vshrl.u32 %v1140, 7
        %v1142 = vsub.s32 3, %v1141
        %v1143 = vrot.slane %v967, %v1142
        %1145 = vbcast.lane.b32.xlu0 %v1143, 256
        %v1146 = vpop.permute.xlu0 %1145
        %s1148 = sor.u32 256, 8
        %1149 = vbcast.lane.b32.xlu0 %v1143, %s1148
        %v1150 = vpop.permute.xlu0 %1149
        %v1151 = vlaneseq
        %v1152 = vshrl.u32 %v1151, 7
        %v1153 = vsub.s32 4, %v1152
        %v1154 = vrot.slane %v967, %v1153
        %1156 = vbcast.lane.b32.xlu0 %v1154, 256
        %v1157 = vpop.permute.xlu0 %1156
        %s1159 = sor.u32 256, 8
        %1160 = vbcast.lane.b32.xlu0 %v1154, %s1159
        %v1161 = vpop.permute.xlu0 %1160
        %v1162 = vlaneseq
        %v1163 = vshrl.u32 %v1162, 7
        %v1164 = vsub.s32 5, %v1163
        %v1165 = vrot.slane %v967, %v1164
        %1167 = vbcast.lane.b32.xlu0 %v1165, 256
        %v1168 = vpop.permute.xlu0 %1167
        %s1170 = sor.u32 256, 8
        %1171 = vbcast.lane.b32.xlu0 %v1165, %s1170
        %v1172 = vpop.permute.xlu0 %1171
        %v1173 = vlaneseq
        %v1174 = vshrl.u32 %v1173, 7
        %v1175 = vsub.s32 6, %v1174
        %v1176 = vrot.slane %v967, %v1175
        %1178 = vbcast.lane.b32.xlu0 %v1176, 256
        %v1179 = vpop.permute.xlu0 %1178
        %s1181 = sor.u32 256, 8
        %1182 = vbcast.lane.b32.xlu0 %v1176, %s1181
        %v1183 = vpop.permute.xlu0 %1182
        %v1184 = vlaneseq
        %v1185 = vshrl.u32 %v1184, 7
        %v1186 = vsub.s32 7, %v1185
        %v1187 = vrot.slane %v967, %v1186
        %1189 = vbcast.lane.b32.xlu0 %v1187, 256
        %v1190 = vpop.permute.xlu0 %1189
        %s1192 = sor.u32 256, 8
        %1193 = vbcast.lane.b32.xlu0 %v1187, %s1192
        %v1194 = vpop.permute.xlu0 %1193
        %v1196 = vcombine.high %v963, %v963
        %v1198 = vunpack.c.l.s4 1966171168
        %v1199 = vunpack.c.0.s8 %v1198
        %v1200 = vlaneseq
        %v1201 = vshrl.u32 %v1200, 7
        %v1202 = vsub.s32 %v1199, %v1201
        %v1203 = vrot.slane %v963, %v1202
        %v1205 = vunpack.c.l.s4 1966171168
        %v1206 = vunpack.c.0.s8 %v1205
        %v1207 = vlaneseq
        %v1208 = vshrl.u32 %v1207, 7
        %v1209 = vsub.s32 %v1206, %v1208
        %v1210 = vrot.slane %v1196, %v1209
        %v1211 = vcombine.high %v1203, %v1203
        %v1212 = vcombine.high %v1210, %v1210
        %v1214 = vunpack.c.l.s4 1966171168
        %v1215 = vunpack.c.0.s8 %v1214
        %v1216 = vlaneseq
        %v1217 = vshrl.u32 %v1216, 7
        %v1218 = vsub.s32 %v1215, %v1217
        %v1219 = vrot.slane %v1203, %v1218
        %v1221 = vunpack.c.l.s4 1966171168
        %v1222 = vunpack.c.0.s8 %v1221
        %v1223 = vlaneseq
        %v1224 = vshrl.u32 %v1223, 7
        %v1225 = vsub.s32 %v1222, %v1224
        %v1226 = vrot.slane %v1210, %v1225
        %v1228 = vunpack.c.l.s4 1966171168
        %v1229 = vunpack.c.0.s8 %v1228
        %v1230 = vlaneseq
        %v1231 = vshrl.u32 %v1230, 7
        %v1232 = vsub.s32 %v1229, %v1231
        %v1233 = vrot.slane %v1211, %v1232
        %v1235 = vunpack.c.l.s4 1966171168
        %v1236 = vunpack.c.0.s8 %v1235
        %v1237 = vlaneseq
        %v1238 = vshrl.u32 %v1237, 7
        %v1239 = vsub.s32 %v1236, %v1238
        %v1240 = vrot.slane %v1212, %v1239
        %v1241 = vcombine.high %v1219, %v1219
        %v1242 = vcombine.high %v1226, %v1226
        %v1243 = vcombine.high %v1233, %v1233
        %v1244 = vcombine.high %v1240, %v1240
        %v1245 = vlaneseq
        %v1246 = vshrl.u32 %v1245, 7
        %v1247 = vsub.s32 0, %v1246
        %v1248 = vrot.slane %v1219, %v1247
        %v1249 = vlaneseq
        %v1250 = vshrl.u32 %v1249, 7
        %v1251 = vsub.s32 0, %v1250
        %v1252 = vrot.slane %v1233, %v1251
        %v1253 = vlaneseq
        %v1254 = vshrl.u32 %v1253, 7
        %v1255 = vsub.s32 0, %v1254
        %v1256 = vrot.slane %v1241, %v1255
        %v1257 = vlaneseq
        %v1258 = vshrl.u32 %v1257, 7
        %v1259 = vsub.s32 0, %v1258
        %v1260 = vrot.slane %v1243, %v1259
        %v1261 = vlaneseq
        %v1262 = vshrl.u32 %v1261, 7
        %v1263 = vsub.s32 0, %v1262
        %v1264 = vrot.slane %v1226, %v1263
        %v1265 = vlaneseq
        %v1266 = vshrl.u32 %v1265, 7
        %v1267 = vsub.s32 0, %v1266
        %v1268 = vrot.slane %v1240, %v1267
        %v1269 = vlaneseq
        %v1270 = vshrl.u32 %v1269, 7
        %v1271 = vsub.s32 0, %v1270
        %v1272 = vrot.slane %v1242, %v1271
        %v1273 = vlaneseq
        %v1274 = vshrl.u32 %v1273, 7
        %v1275 = vsub.s32 0, %v1274
        %v1276 = vrot.slane %v1244, %v1275
        %v1285 = vmul.f32 %v1113, %v1248
        %v1286 = vmul.f32 %v1117, %v1248
        %v1287 = vmul.f32 %v1124, %v1252
        %v1288 = vmul.f32 %v1128, %v1252
        %v1289 = vmul.f32 %v1135, %v1256
        %v1290 = vmul.f32 %v1139, %v1256
        %v1291 = vmul.f32 %v1146, %v1260
        %v1292 = vmul.f32 %v1150, %v1260
        %v1293 = vmul.f32 %v1157, %v1264
        %v1294 = vmul.f32 %v1161, %v1264
        %v1295 = vmul.f32 %v1168, %v1268
        %v1296 = vmul.f32 %v1172, %v1268
        %v1297 = vmul.f32 %v1179, %v1272
        %v1298 = vmul.f32 %v1183, %v1272
        %v1299 = vmul.f32 %v1190, %v1276
        %v1300 = vmul.f32 %v1194, %v1276
        %v1301 = vlaneseq
        %v1302 = vshrl.u32 %v1301, 7
        %v1303 = vsub.s32 0, %v1302
        %v1304 = vrot.slane %v968, %v1303
        %1306 = vbcast.lane.b32.xlu0 %v1304, 256
        %v1307 = vpop.permute.xlu0 %1306
        %s1309 = sor.u32 256, 8
        %1310 = vbcast.lane.b32.xlu0 %v1304, %s1309
        %v1311 = vpop.permute.xlu0 %1310
        %v1312 = vlaneseq
        %v1313 = vshrl.u32 %v1312, 7
        %v1314 = vsub.s32 1, %v1313
        %v1315 = vrot.slane %v968, %v1314
        %1317 = vbcast.lane.b32.xlu0 %v1315, 256
        %v1318 = vpop.permute.xlu0 %1317
        %s1320 = sor.u32 256, 8
        %1321 = vbcast.lane.b32.xlu0 %v1315, %s1320
        %v1322 = vpop.permute.xlu0 %1321
        %v1323 = vlaneseq
        %v1324 = vshrl.u32 %v1323, 7
        %v1325 = vsub.s32 2, %v1324
        %v1326 = vrot.slane %v968, %v1325
        %1328 = vbcast.lane.b32.xlu0 %v1326, 256
        %v1329 = vpop.permute.xlu0 %1328
        %s1331 = sor.u32 256, 8
        %1332 = vbcast.lane.b32.xlu0 %v1326, %s1331
        %v1333 = vpop.permute.xlu0 %1332
        %v1334 = vlaneseq
        %v1335 = vshrl.u32 %v1334, 7
        %v1336 = vsub.s32 3, %v1335
        %v1337 = vrot.slane %v968, %v1336
        %1339 = vbcast.lane.b32.xlu0 %v1337, 256
        %v1340 = vpop.permute.xlu0 %1339
        %s1342 = sor.u32 256, 8
        %1343 = vbcast.lane.b32.xlu0 %v1337, %s1342
        %v1344 = vpop.permute.xlu0 %1343
        %v1345 = vlaneseq
        %v1346 = vshrl.u32 %v1345, 7
        %v1347 = vsub.s32 4, %v1346
        %v1348 = vrot.slane %v968, %v1347
        %1350 = vbcast.lane.b32.xlu0 %v1348, 256
        %v1351 = vpop.permute.xlu0 %1350
        %s1353 = sor.u32 256, 8
        %1354 = vbcast.lane.b32.xlu0 %v1348, %s1353
        %v1355 = vpop.permute.xlu0 %1354
        %v1356 = vlaneseq
        %v1357 = vshrl.u32 %v1356, 7
        %v1358 = vsub.s32 5, %v1357
        %v1359 = vrot.slane %v968, %v1358
        %1361 = vbcast.lane.b32.xlu0 %v1359, 256
        %v1362 = vpop.permute.xlu0 %1361
        %s1364 = sor.u32 256, 8
        %1365 = vbcast.lane.b32.xlu0 %v1359, %s1364
        %v1366 = vpop.permute.xlu0 %1365
        %v1367 = vlaneseq
        %v1368 = vshrl.u32 %v1367, 7
        %v1369 = vsub.s32 6, %v1368
        %v1370 = vrot.slane %v968, %v1369
        %1372 = vbcast.lane.b32.xlu0 %v1370, 256
        %v1373 = vpop.permute.xlu0 %1372
        %s1375 = sor.u32 256, 8
        %1376 = vbcast.lane.b32.xlu0 %v1370, %s1375
        %v1377 = vpop.permute.xlu0 %1376
        %v1378 = vlaneseq
        %v1379 = vshrl.u32 %v1378, 7
        %v1380 = vsub.s32 7, %v1379
        %v1381 = vrot.slane %v968, %v1380
        %1383 = vbcast.lane.b32.xlu0 %v1381, 256
        %v1384 = vpop.permute.xlu0 %1383
        %s1386 = sor.u32 256, 8
        %1387 = vbcast.lane.b32.xlu0 %v1381, %s1386
        %v1388 = vpop.permute.xlu0 %1387
        %v1389 = vmul.f32 %v1076, %v960
        %v1390 = vmul.f32 %v1078, %v961
        %v1391 = vadd.f32 %v1389, %v1285
        %v1392 = vadd.f32 %v1390, %v1286
        %v1393 = vmul.f32 %v1391, %v1307
        %v1394 = vmul.f32 %v1392, %v1311
        %v1395 = vsel %vm576, %v1393, 0.0
        %v1396 = vsel %vm576, %v1394, 0.0
        %v1397 = vadd.f32 %v1395, %v1396
        %v1398 = vrot.slane %v1397, 4
        %v1399 = vadd.f32 %v1397, %v1398
        %v1400 = vrot.slane %v1399, 2
        %v1401 = vadd.f32 %v1399, %v1400
        %v1402 = vrot.slane %v1401, 1
        %v1403 = vadd.f32 %v1401, %v1402
        %v1404 = vmul.f32 %v1080, %v1391
        %v1405 = vmul.f32 %v1082, %v1392
        %v1406 = vadd.f32 %v1404, %v1287
        %v1407 = vadd.f32 %v1405, %v1288
        %v1408 = vmul.f32 %v1406, %v1318
        %v1409 = vmul.f32 %v1407, %v1322
        %v1410 = vsel %vm576, %v1408, 0.0
        %v1411 = vsel %vm576, %v1409, 0.0
        %v1412 = vadd.f32 %v1410, %v1411
        %v1413 = vrot.slane %v1412, 4
        %v1414 = vadd.f32 %v1412, %v1413
        %v1415 = vrot.slane %v1414, 2
        %v1416 = vadd.f32 %v1414, %v1415
        %v1417 = vrot.slane %v1416, 1
        %v1418 = vadd.f32 %v1416, %v1417
        %v1419 = vmul.f32 %v1084, %v1406
        %v1420 = vmul.f32 %v1086, %v1407
        %v1421 = vadd.f32 %v1419, %v1289
        %v1422 = vadd.f32 %v1420, %v1290
        %v1423 = vmul.f32 %v1421, %v1329
        %v1424 = vmul.f32 %v1422, %v1333
        %v1425 = vsel %vm576, %v1423, 0.0
        %v1426 = vsel %vm576, %v1424, 0.0
        %v1427 = vadd.f32 %v1425, %v1426
        %v1428 = vrot.slane %v1427, 4
        %v1429 = vadd.f32 %v1427, %v1428
        %v1430 = vrot.slane %v1429, 2
        %v1431 = vadd.f32 %v1429, %v1430
        %v1432 = vrot.slane %v1431, 1
        %v1433 = vadd.f32 %v1431, %v1432
        %v1434 = vmul.f32 %v1088, %v1421
        %v1435 = vmul.f32 %v1090, %v1422
        %v1436 = vadd.f32 %v1434, %v1291
        %v1437 = vadd.f32 %v1435, %v1292
        %v1438 = vmul.f32 %v1436, %v1340
        %v1439 = vmul.f32 %v1437, %v1344
        %v1440 = vsel %vm576, %v1438, 0.0
        %v1441 = vsel %vm576, %v1439, 0.0
        %v1442 = vadd.f32 %v1440, %v1441
        %v1443 = vrot.slane %v1442, 4
        %v1444 = vadd.f32 %v1442, %v1443
        %v1445 = vrot.slane %v1444, 2
        %v1446 = vadd.f32 %v1444, %v1445
        %v1447 = vrot.slane %v1446, 1
        %v1448 = vadd.f32 %v1446, %v1447
        %v1449 = vmul.f32 %v1092, %v1436
        %v1450 = vmul.f32 %v1094, %v1437
        %v1451 = vadd.f32 %v1449, %v1293
        %v1452 = vadd.f32 %v1450, %v1294
        %v1453 = vmul.f32 %v1451, %v1351
        %v1454 = vmul.f32 %v1452, %v1355
        %v1455 = vsel %vm576, %v1453, 0.0
        %v1456 = vsel %vm576, %v1454, 0.0
        %v1457 = vadd.f32 %v1455, %v1456
        %v1458 = vrot.slane %v1457, 4
        %v1459 = vadd.f32 %v1457, %v1458
        %v1460 = vrot.slane %v1459, 2
        %v1461 = vadd.f32 %v1459, %v1460
        %v1462 = vrot.slane %v1461, 1
        %v1463 = vadd.f32 %v1461, %v1462
        %v1464 = vmul.f32 %v1096, %v1451
        %v1465 = vmul.f32 %v1098, %v1452
        %v1466 = vadd.f32 %v1464, %v1295
        %v1467 = vadd.f32 %v1465, %v1296
        %v1468 = vmul.f32 %v1466, %v1362
        %v1469 = vmul.f32 %v1467, %v1366
        %v1470 = vsel %vm576, %v1468, 0.0
        %v1471 = vsel %vm576, %v1469, 0.0
        %v1472 = vadd.f32 %v1470, %v1471
        %v1473 = vrot.slane %v1472, 4
        %v1474 = vadd.f32 %v1472, %v1473
        %v1475 = vrot.slane %v1474, 2
        %v1476 = vadd.f32 %v1474, %v1475
        %v1477 = vrot.slane %v1476, 1
        %v1478 = vadd.f32 %v1476, %v1477
        %v1479 = vmul.f32 %v1100, %v1466
        %v1480 = vmul.f32 %v1102, %v1467
        %v1481 = vadd.f32 %v1479, %v1297
        %v1482 = vadd.f32 %v1480, %v1298
        %v1483 = vmul.f32 %v1481, %v1373
        %v1484 = vmul.f32 %v1482, %v1377
        %v1485 = vsel %vm576, %v1483, 0.0
        %v1486 = vsel %vm576, %v1484, 0.0
        %v1487 = vadd.f32 %v1485, %v1486
        %v1488 = vrot.slane %v1487, 4
        %v1489 = vadd.f32 %v1487, %v1488
        %v1490 = vrot.slane %v1489, 2
        %v1491 = vadd.f32 %v1489, %v1490
        %v1492 = vrot.slane %v1491, 1
        %v1493 = vadd.f32 %v1491, %v1492
        %v1494 = vmul.f32 %v1104, %v1481
        %v1495 = vmul.f32 %v1106, %v1482
        %v1496 = vadd.f32 %v1494, %v1299
        %v1497 = vadd.f32 %v1495, %v1300
        %v1498 = vmul.f32 %v1496, %v1384
        %v1499 = vmul.f32 %v1497, %v1388
        %v1500 = vsel %vm576, %v1498, 0.0
        %v1501 = vsel %vm576, %v1499, 0.0
        %v1502 = vadd.f32 %v1500, %v1501
        %v1503 = vrot.slane %v1502, 4
        %v1504 = vadd.f32 %v1502, %v1503
        %v1505 = vrot.slane %v1504, 2
        %v1506 = vadd.f32 %v1504, %v1505
        %v1507 = vrot.slane %v1506, 1
        %v1508 = vadd.f32 %v1506, %v1507
        %vm1509 = vcmask 1040384
        %v1510 = vsel %vm1509, %v1403, %v1418
        %vm1511 = vcmask 1041408
        %v1512 = vsel %vm1511, %v1510, %v1433
        %vm1513 = vcmask 1042432
        %v1514 = vsel %vm1513, %v1512, %v1448
        %vm1515 = vcmask 1043456
        %v1516 = vsel %vm1515, %v1514, %v1463
        %vm1517 = vcmask 1044480
        %v1518 = vsel %vm1517, %v1516, %v1478
        %vm1519 = vcmask 1045504
        %v1520 = vsel %vm1519, %v1518, %v1493
        %vm1521 = vcmask 1046528
        %v1522 = vsel %vm1521, %v1520, %v1508
        %1523 = vst.msk [vmem:[#allocation7] sm:$0xff] %vm576, %v1522
        %s1524 = scalar_lea.vmem [#allocation5], 8
        %v1525 = vld [vmem:[%s1524] sm:$0xff]
        %s1526 = scalar_lea.vmem [#allocation4], 8
        %v1527 = vld [vmem:[%s1526] sm:$0xff]
        %s1528 = smul.u32 1, 2
        %s1529 = smul.addr %s1528, 8
        %s1530 = scalar_lea.vmem [#allocation6], %s1529
        %v1531 = vld [vmem:[%s1530] sm:$0xff]
        %v1532 = vld [vmem:[%s1530 + $0x8] sm:$0xff]
        %v1534 = vcombine.high %v1525, %v1525
        %v1536 = vunpack.c.l.s4 1966171168
        %v1537 = vunpack.c.0.s8 %v1536
        %v1538 = vlaneseq
        %v1539 = vshrl.u32 %v1538, 7
        %v1540 = vsub.s32 %v1537, %v1539
        %v1541 = vrot.slane %v1525, %v1540
        %v1543 = vunpack.c.l.s4 1966171168
        %v1544 = vunpack.c.0.s8 %v1543
        %v1545 = vlaneseq
        %v1546 = vshrl.u32 %v1545, 7
        %v1547 = vsub.s32 %v1544, %v1546
        %v1548 = vrot.slane %v1534, %v1547
        %v1549 = vcombine.high %v1541, %v1541
        %v1550 = vcombine.high %v1548, %v1548
        %v1552 = vunpack.c.l.s4 1966171168
        %v1553 = vunpack.c.0.s8 %v1552
        %v1554 = vlaneseq
        %v1555 = vshrl.u32 %v1554, 7
        %v1556 = vsub.s32 %v1553, %v1555
        %v1557 = vrot.slane %v1541, %v1556
        %v1559 = vunpack.c.l.s4 1966171168
        %v1560 = vunpack.c.0.s8 %v1559
        %v1561 = vlaneseq
        %v1562 = vshrl.u32 %v1561, 7
        %v1563 = vsub.s32 %v1560, %v1562
        %v1564 = vrot.slane %v1548, %v1563
        %v1566 = vunpack.c.l.s4 1966171168
        %v1567 = vunpack.c.0.s8 %v1566
        %v1568 = vlaneseq
        %v1569 = vshrl.u32 %v1568, 7
        %v1570 = vsub.s32 %v1567, %v1569
        %v1571 = vrot.slane %v1549, %v1570
        %v1573 = vunpack.c.l.s4 1966171168
        %v1574 = vunpack.c.0.s8 %v1573
        %v1575 = vlaneseq
        %v1576 = vshrl.u32 %v1575, 7
        %v1577 = vsub.s32 %v1574, %v1576
        %v1578 = vrot.slane %v1550, %v1577
        %v1579 = vcombine.high %v1557, %v1557
        %v1580 = vcombine.high %v1564, %v1564
        %v1581 = vcombine.high %v1571, %v1571
        %v1582 = vcombine.high %v1578, %v1578
        %v1583 = vlaneseq
        %v1584 = vshrl.u32 %v1583, 7
        %v1585 = vsub.s32 0, %v1584
        %v1586 = vrot.slane %v1557, %v1585
        %v1587 = vlaneseq
        %v1588 = vshrl.u32 %v1587, 7
        %v1589 = vsub.s32 0, %v1588
        %v1590 = vrot.slane %v1571, %v1589
        %v1591 = vlaneseq
        %v1592 = vshrl.u32 %v1591, 7
        %v1593 = vsub.s32 0, %v1592
        %v1594 = vrot.slane %v1579, %v1593
        %v1595 = vlaneseq
        %v1596 = vshrl.u32 %v1595, 7
        %v1597 = vsub.s32 0, %v1596
        %v1598 = vrot.slane %v1581, %v1597
        %v1599 = vlaneseq
        %v1600 = vshrl.u32 %v1599, 7
        %v1601 = vsub.s32 0, %v1600
        %v1602 = vrot.slane %v1564, %v1601
        %v1603 = vlaneseq
        %v1604 = vshrl.u32 %v1603, 7
        %v1605 = vsub.s32 0, %v1604
        %v1606 = vrot.slane %v1578, %v1605
        %v1607 = vlaneseq
        %v1608 = vshrl.u32 %v1607, 7
        %v1609 = vsub.s32 0, %v1608
        %v1610 = vrot.slane %v1580, %v1609
        %v1611 = vlaneseq
        %v1612 = vshrl.u32 %v1611, 7
        %v1613 = vsub.s32 0, %v1612
        %v1614 = vrot.slane %v1582, %v1613
        %v1623 = vmul.f32 %v1586, %v958
        %v1624 = vmul.f32 %v1586, %v959
        %v1625 = vmul.f32 %v1590, %v958
        %v1626 = vmul.f32 %v1590, %v959
        %v1627 = vmul.f32 %v1594, %v958
        %v1628 = vmul.f32 %v1594, %v959
        %v1629 = vmul.f32 %v1598, %v958
        %v1630 = vmul.f32 %v1598, %v959
        %v1631 = vmul.f32 %v1602, %v958
        %v1632 = vmul.f32 %v1602, %v959
        %v1633 = vmul.f32 %v1606, %v958
        %v1634 = vmul.f32 %v1606, %v959
        %v1635 = vmul.f32 %v1610, %v958
        %v1636 = vmul.f32 %v1610, %v959
        %v1637 = vmul.f32 %v1614, %v958
        %v1638 = vmul.f32 %v1614, %v959
        %v1639 = vmul.f32 %v1623, 1.442695
        %v1640 = vpow.pop %v1639
        %v1641 = vmul.f32 %v1624, 1.442695
        %v1642 = vpow.pop %v1641
        %v1643 = vmul.f32 %v1625, 1.442695
        %v1644 = vpow.pop %v1643
        %v1645 = vmul.f32 %v1626, 1.442695
        %v1646 = vpow.pop %v1645
        %v1647 = vmul.f32 %v1627, 1.442695
        %v1648 = vpow.pop %v1647
        %v1649 = vmul.f32 %v1628, 1.442695
        %v1650 = vpow.pop %v1649
        %v1651 = vmul.f32 %v1629, 1.442695
        %v1652 = vpow.pop %v1651
        %v1653 = vmul.f32 %v1630, 1.442695
        %v1654 = vpow.pop %v1653
        %v1655 = vmul.f32 %v1631, 1.442695
        %v1656 = vpow.pop %v1655
        %v1657 = vmul.f32 %v1632, 1.442695
        %v1658 = vpow.pop %v1657
        %v1659 = vmul.f32 %v1633, 1.442695
        %v1660 = vpow.pop %v1659
        %v1661 = vmul.f32 %v1634, 1.442695
        %v1662 = vpow.pop %v1661
        %v1663 = vmul.f32 %v1635, 1.442695
        %v1664 = vpow.pop %v1663
        %v1665 = vmul.f32 %v1636, 1.442695
        %v1666 = vpow.pop %v1665
        %v1667 = vmul.f32 %v1637, 1.442695
        %v1668 = vpow.pop %v1667
        %v1669 = vmul.f32 %v1638, 1.442695
        %v1670 = vpow.pop %v1669
        %v1671 = vlaneseq
        %v1672 = vshrl.u32 %v1671, 7
        %v1673 = vsub.s32 0, %v1672
        %v1674 = vrot.slane %v1531, %v1673
        %1676 = vbcast.lane.b32.xlu0 %v1674, 256
        %v1677 = vpop.permute.xlu0 %1676
        %s1679 = sor.u32 256, 8
        %1680 = vbcast.lane.b32.xlu0 %v1674, %s1679
        %v1681 = vpop.permute.xlu0 %1680
        %v1682 = vlaneseq
        %v1683 = vshrl.u32 %v1682, 7
        %v1684 = vsub.s32 1, %v1683
        %v1685 = vrot.slane %v1531, %v1684
        %1687 = vbcast.lane.b32.xlu0 %v1685, 256
        %v1688 = vpop.permute.xlu0 %1687
        %s1690 = sor.u32 256, 8
        %1691 = vbcast.lane.b32.xlu0 %v1685, %s1690
        %v1692 = vpop.permute.xlu0 %1691
        %v1693 = vlaneseq
        %v1694 = vshrl.u32 %v1693, 7
        %v1695 = vsub.s32 2, %v1694
        %v1696 = vrot.slane %v1531, %v1695
        %1698 = vbcast.lane.b32.xlu0 %v1696, 256
        %v1699 = vpop.permute.xlu0 %1698
        %s1701 = sor.u32 256, 8
        %1702 = vbcast.lane.b32.xlu0 %v1696, %s1701
        %v1703 = vpop.permute.xlu0 %1702
        %v1704 = vlaneseq
        %v1705 = vshrl.u32 %v1704, 7
        %v1706 = vsub.s32 3, %v1705
        %v1707 = vrot.slane %v1531, %v1706
        %1709 = vbcast.lane.b32.xlu0 %v1707, 256
        %v1710 = vpop.permute.xlu0 %1709
        %s1712 = sor.u32 256, 8
        %1713 = vbcast.lane.b32.xlu0 %v1707, %s1712
        %v1714 = vpop.permute.xlu0 %1713
        %v1715 = vlaneseq
        %v1716 = vshrl.u32 %v1715, 7
        %v1717 = vsub.s32 4, %v1716
        %v1718 = vrot.slane %v1531, %v1717
        %1720 = vbcast.lane.b32.xlu0 %v1718, 256
        %v1721 = vpop.permute.xlu0 %1720
        %s1723 = sor.u32 256, 8
        %1724 = vbcast.lane.b32.xlu0 %v1718, %s1723
        %v1725 = vpop.permute.xlu0 %1724
        %v1726 = vlaneseq
        %v1727 = vshrl.u32 %v1726, 7
        %v1728 = vsub.s32 5, %v1727
        %v1729 = vrot.slane %v1531, %v1728
        %1731 = vbcast.lane.b32.xlu0 %v1729, 256
        %v1732 = vpop.permute.xlu0 %1731
        %s1734 = sor.u32 256, 8
        %1735 = vbcast.lane.b32.xlu0 %v1729, %s1734
        %v1736 = vpop.permute.xlu0 %1735
        %v1737 = vlaneseq
        %v1738 = vshrl.u32 %v1737, 7
        %v1739 = vsub.s32 6, %v1738
        %v1740 = vrot.slane %v1531, %v1739
        %1742 = vbcast.lane.b32.xlu0 %v1740, 256
        %v1743 = vpop.permute.xlu0 %1742
        %s1745 = sor.u32 256, 8
        %1746 = vbcast.lane.b32.xlu0 %v1740, %s1745
        %v1747 = vpop.permute.xlu0 %1746
        %v1748 = vlaneseq
        %v1749 = vshrl.u32 %v1748, 7
        %v1750 = vsub.s32 7, %v1749
        %v1751 = vrot.slane %v1531, %v1750
        %1753 = vbcast.lane.b32.xlu0 %v1751, 256
        %v1754 = vpop.permute.xlu0 %1753
        %s1756 = sor.u32 256, 8
        %1757 = vbcast.lane.b32.xlu0 %v1751, %s1756
        %v1758 = vpop.permute.xlu0 %1757
        %v1760 = vcombine.high %v1527, %v1527
        %v1762 = vunpack.c.l.s4 1966171168
        %v1763 = vunpack.c.0.s8 %v1762
        %v1764 = vlaneseq
        %v1765 = vshrl.u32 %v1764, 7
        %v1766 = vsub.s32 %v1763, %v1765
        %v1767 = vrot.slane %v1527, %v1766
        %v1769 = vunpack.c.l.s4 1966171168
        %v1770 = vunpack.c.0.s8 %v1769
        %v1771 = vlaneseq
        %v1772 = vshrl.u32 %v1771, 7
        %v1773 = vsub.s32 %v1770, %v1772
        %v1774 = vrot.slane %v1760, %v1773
        %v1775 = vcombine.high %v1767, %v1767
        %v1776 = vcombine.high %v1774, %v1774
        %v1778 = vunpack.c.l.s4 1966171168
        %v1779 = vunpack.c.0.s8 %v1778
        %v1780 = vlaneseq
        %v1781 = vshrl.u32 %v1780, 7
        %v1782 = vsub.s32 %v1779, %v1781
        %v1783 = vrot.slane %v1767, %v1782
        %v1785 = vunpack.c.l.s4 1966171168
        %v1786 = vunpack.c.0.s8 %v1785
        %v1787 = vlaneseq
        %v1788 = vshrl.u32 %v1787, 7
        %v1789 = vsub.s32 %v1786, %v1788
        %v1790 = vrot.slane %v1774, %v1789
        %v1792 = vunpack.c.l.s4 1966171168
        %v1793 = vunpack.c.0.s8 %v1792
        %v1794 = vlaneseq
        %v1795 = vshrl.u32 %v1794, 7
        %v1796 = vsub.s32 %v1793, %v1795
        %v1797 = vrot.slane %v1775, %v1796
        %v1799 = vunpack.c.l.s4 1966171168
        %v1800 = vunpack.c.0.s8 %v1799
        %v1801 = vlaneseq
        %v1802 = vshrl.u32 %v1801, 7
        %v1803 = vsub.s32 %v1800, %v1802
        %v1804 = vrot.slane %v1776, %v1803
        %v1805 = vcombine.high %v1783, %v1783
        %v1806 = vcombine.high %v1790, %v1790
        %v1807 = vcombine.high %v1797, %v1797
        %v1808 = vcombine.high %v1804, %v1804
        %v1809 = vlaneseq
        %v1810 = vshrl.u32 %v1809, 7
        %v1811 = vsub.s32 0, %v1810
        %v1812 = vrot.slane %v1783, %v1811
        %v1813 = vlaneseq
        %v1814 = vshrl.u32 %v1813, 7
        %v1815 = vsub.s32 0, %v1814
        %v1816 = vrot.slane %v1797, %v1815
        %v1817 = vlaneseq
        %v1818 = vshrl.u32 %v1817, 7
        %v1819 = vsub.s32 0, %v1818
        %v1820 = vrot.slane %v1805, %v1819
        %v1821 = vlaneseq
        %v1822 = vshrl.u32 %v1821, 7
        %v1823 = vsub.s32 0, %v1822
        %v1824 = vrot.slane %v1807, %v1823
        %v1825 = vlaneseq
        %v1826 = vshrl.u32 %v1825, 7
        %v1827 = vsub.s32 0, %v1826
        %v1828 = vrot.slane %v1790, %v1827
        %v1829 = vlaneseq
        %v1830 = vshrl.u32 %v1829, 7
        %v1831 = vsub.s32 0, %v1830
        %v1832 = vrot.slane %v1804, %v1831
        %v1833 = vlaneseq
        %v1834 = vshrl.u32 %v1833, 7
        %v1835 = vsub.s32 0, %v1834
        %v1836 = vrot.slane %v1806, %v1835
        %v1837 = vlaneseq
        %v1838 = vshrl.u32 %v1837, 7
        %v1839 = vsub.s32 0, %v1838
        %v1840 = vrot.slane %v1808, %v1839
        %v1849 = vmul.f32 %v1677, %v1812
        %v1850 = vmul.f32 %v1681, %v1812
        %v1851 = vmul.f32 %v1688, %v1816
        %v1852 = vmul.f32 %v1692, %v1816
        %v1853 = vmul.f32 %v1699, %v1820
        %v1854 = vmul.f32 %v1703, %v1820
        %v1855 = vmul.f32 %v1710, %v1824
        %v1856 = vmul.f32 %v1714, %v1824
        %v1857 = vmul.f32 %v1721, %v1828
        %v1858 = vmul.f32 %v1725, %v1828
        %v1859 = vmul.f32 %v1732, %v1832
        %v1860 = vmul.f32 %v1736, %v1832
        %v1861 = vmul.f32 %v1743, %v1836
        %v1862 = vmul.f32 %v1747, %v1836
        %v1863 = vmul.f32 %v1754, %v1840
        %v1864 = vmul.f32 %v1758, %v1840
        %v1865 = vlaneseq
        %v1866 = vshrl.u32 %v1865, 7
        %v1867 = vsub.s32 0, %v1866
        %v1868 = vrot.slane %v1532, %v1867
        %1870 = vbcast.lane.b32.xlu0 %v1868, 256
        %v1871 = vpop.permute.xlu0 %1870
        %s1873 = sor.u32 256, 8
        %1874 = vbcast.lane.b32.xlu0 %v1868, %s1873
        %v1875 = vpop.permute.xlu0 %1874
        %v1876 = vlaneseq
        %v1877 = vshrl.u32 %v1876, 7
        %v1878 = vsub.s32 1, %v1877
        %v1879 = vrot.slane %v1532, %v1878
        %1881 = vbcast.lane.b32.xlu0 %v1879, 256
        %v1882 = vpop.permute.xlu0 %1881
        %s1884 = sor.u32 256, 8
        %1885 = vbcast.lane.b32.xlu0 %v1879, %s1884
        %v1886 = vpop.permute.xlu0 %1885
        %v1887 = vlaneseq
        %v1888 = vshrl.u32 %v1887, 7
        %v1889 = vsub.s32 2, %v1888
        %v1890 = vrot.slane %v1532, %v1889
        %1892 = vbcast.lane.b32.xlu0 %v1890, 256
        %v1893 = vpop.permute.xlu0 %1892
        %s1895 = sor.u32 256, 8
        %1896 = vbcast.lane.b32.xlu0 %v1890, %s1895
        %v1897 = vpop.permute.xlu0 %1896
        %v1898 = vlaneseq
        %v1899 = vshrl.u32 %v1898, 7
        %v1900 = vsub.s32 3, %v1899
        %v1901 = vrot.slane %v1532, %v1900
        %1903 = vbcast.lane.b32.xlu0 %v1901, 256
        %v1904 = vpop.permute.xlu0 %1903
        %s1906 = sor.u32 256, 8
        %1907 = vbcast.lane.b32.xlu0 %v1901, %s1906
        %v1908 = vpop.permute.xlu0 %1907
        %v1909 = vlaneseq
        %v1910 = vshrl.u32 %v1909, 7
        %v1911 = vsub.s32 4, %v1910
        %v1912 = vrot.slane %v1532, %v1911
        %1914 = vbcast.lane.b32.xlu0 %v1912, 256
        %v1915 = vpop.permute.xlu0 %1914
        %s1917 = sor.u32 256, 8
        %1918 = vbcast.lane.b32.xlu0 %v1912, %s1917
        %v1919 = vpop.permute.xlu0 %1918
        %v1920 = vlaneseq
        %v1921 = vshrl.u32 %v1920, 7
        %v1922 = vsub.s32 5, %v1921
        %v1923 = vrot.slane %v1532, %v1922
        %1925 = vbcast.lane.b32.xlu0 %v1923, 256
        %v1926 = vpop.permute.xlu0 %1925
        %s1928 = sor.u32 256, 8
        %1929 = vbcast.lane.b32.xlu0 %v1923, %s1928
        %v1930 = vpop.permute.xlu0 %1929
        %v1931 = vlaneseq
        %v1932 = vshrl.u32 %v1931, 7
        %v1933 = vsub.s32 6, %v1932
        %v1934 = vrot.slane %v1532, %v1933
        %1936 = vbcast.lane.b32.xlu0 %v1934, 256
        %v1937 = vpop.permute.xlu0 %1936
        %s1939 = sor.u32 256, 8
        %1940 = vbcast.lane.b32.xlu0 %v1934, %s1939
        %v1941 = vpop.permute.xlu0 %1940
        %v1942 = vlaneseq
        %v1943 = vshrl.u32 %v1942, 7
        %v1944 = vsub.s32 7, %v1943
        %v1945 = vrot.slane %v1532, %v1944
        %1947 = vbcast.lane.b32.xlu0 %v1945, 256
        %v1948 = vpop.permute.xlu0 %1947
        %s1950 = sor.u32 256, 8
        %1951 = vbcast.lane.b32.xlu0 %v1945, %s1950
        %v1952 = vpop.permute.xlu0 %1951
        %v1953 = vmul.f32 %v1640, %v1496
        %v1954 = vmul.f32 %v1642, %v1497
        %v1955 = vadd.f32 %v1953, %v1849
        %v1956 = vadd.f32 %v1954, %v1850
        %v1957 = vmul.f32 %v1955, %v1871
        %v1958 = vmul.f32 %v1956, %v1875
        %v1959 = vsel %vm576, %v1957, 0.0
        %v1960 = vsel %vm576, %v1958, 0.0
        %v1961 = vadd.f32 %v1959, %v1960
        %v1962 = vrot.slane %v1961, 4
        %v1963 = vadd.f32 %v1961, %v1962
        %v1964 = vrot.slane %v1963, 2
        %v1965 = vadd.f32 %v1963, %v1964
        %v1966 = vrot.slane %v1965, 1
        %v1967 = vadd.f32 %v1965, %v1966
        %v1968 = vmul.f32 %v1644, %v1955
        %v1969 = vmul.f32 %v1646, %v1956
        %v1970 = vadd.f32 %v1968, %v1851
        %v1971 = vadd.f32 %v1969, %v1852
        %v1972 = vmul.f32 %v1970, %v1882
        %v1973 = vmul.f32 %v1971, %v1886
        %v1974 = vsel %vm576, %v1972, 0.0
        %v1975 = vsel %vm576, %v1973, 0.0
        %v1976 = vadd.f32 %v1974, %v1975
        %v1977 = vrot.slane %v1976, 4
        %v1978 = vadd.f32 %v1976, %v1977
        %v1979 = vrot.slane %v1978, 2
        %v1980 = vadd.f32 %v1978, %v1979
        %v1981 = vrot.slane %v1980, 1
        %v1982 = vadd.f32 %v1980, %v1981
        %v1983 = vmul.f32 %v1648, %v1970
        %v1984 = vmul.f32 %v1650, %v1971
        %v1985 = vadd.f32 %v1983, %v1853
        %v1986 = vadd.f32 %v1984, %v1854
        %v1987 = vmul.f32 %v1985, %v1893
        %v1988 = vmul.f32 %v1986, %v1897
        %v1989 = vsel %vm576, %v1987, 0.0
        %v1990 = vsel %vm576, %v1988, 0.0
        %v1991 = vadd.f32 %v1989, %v1990
        %v1992 = vrot.slane %v1991, 4
        %v1993 = vadd.f32 %v1991, %v1992
        %v1994 = vrot.slane %v1993, 2
        %v1995 = vadd.f32 %v1993, %v1994
        %v1996 = vrot.slane %v1995, 1
        %v1997 = vadd.f32 %v1995, %v1996
        %v1998 = vmul.f32 %v1652, %v1985
        %v1999 = vmul.f32 %v1654, %v1986
        %v2000 = vadd.f32 %v1998, %v1855
        %v2001 = vadd.f32 %v1999, %v1856
        %v2002 = vmul.f32 %v2000, %v1904
        %v2003 = vmul.f32 %v2001, %v1908
        %v2004 = vsel %vm576, %v2002, 0.0
        %v2005 = vsel %vm576, %v2003, 0.0
        %v2006 = vadd.f32 %v2004, %v2005
        %v2007 = vrot.slane %v2006, 4
        %v2008 = vadd.f32 %v2006, %v2007
        %v2009 = vrot.slane %v2008, 2
        %v2010 = vadd.f32 %v2008, %v2009
        %v2011 = vrot.slane %v2010, 1
        %v2012 = vadd.f32 %v2010, %v2011
        %v2013 = vmul.f32 %v1656, %v2000
        %v2014 = vmul.f32 %v1658, %v2001
        %v2015 = vadd.f32 %v2013, %v1857
        %v2016 = vadd.f32 %v2014, %v1858
        %v2017 = vmul.f32 %v2015, %v1915
        %v2018 = vmul.f32 %v2016, %v1919
        %v2019 = vsel %vm576, %v2017, 0.0
        %v2020 = vsel %vm576, %v2018, 0.0
        %v2021 = vadd.f32 %v2019, %v2020
        %v2022 = vrot.slane %v2021, 4
        %v2023 = vadd.f32 %v2021, %v2022
        %v2024 = vrot.slane %v2023, 2
        %v2025 = vadd.f32 %v2023, %v2024
        %v2026 = vrot.slane %v2025, 1
        %v2027 = vadd.f32 %v2025, %v2026
        %v2028 = vmul.f32 %v1660, %v2015
        %v2029 = vmul.f32 %v1662, %v2016
        %v2030 = vadd.f32 %v2028, %v1859
        %v2031 = vadd.f32 %v2029, %v1860
        %v2032 = vmul.f32 %v2030, %v1926
        %v2033 = vmul.f32 %v2031, %v1930
        %v2034 = vsel %vm576, %v2032, 0.0
        %v2035 = vsel %vm576, %v2033, 0.0
        %v2036 = vadd.f32 %v2034, %v2035
        %v2037 = vrot.slane %v2036, 4
        %v2038 = vadd.f32 %v2036, %v2037
        %v2039 = vrot.slane %v2038, 2
        %v2040 = vadd.f32 %v2038, %v2039
        %v2041 = vrot.slane %v2040, 1
        %v2042 = vadd.f32 %v2040, %v2041
        %v2043 = vmul.f32 %v1664, %v2030
        %v2044 = vmul.f32 %v1666, %v2031
        %v2045 = vadd.f32 %v2043, %v1861
        %v2046 = vadd.f32 %v2044, %v1862
        %v2047 = vmul.f32 %v2045, %v1937
        %v2048 = vmul.f32 %v2046, %v1941
        %v2049 = vsel %vm576, %v2047, 0.0
        %v2050 = vsel %vm576, %v2048, 0.0
        %v2051 = vadd.f32 %v2049, %v2050
        %v2052 = vrot.slane %v2051, 4
        %v2053 = vadd.f32 %v2051, %v2052
        %v2054 = vrot.slane %v2053, 2
        %v2055 = vadd.f32 %v2053, %v2054
        %v2056 = vrot.slane %v2055, 1
        %v2057 = vadd.f32 %v2055, %v2056
        %v2058 = vmul.f32 %v1668, %v2045
        %v2059 = vmul.f32 %v1670, %v2046
        %v2060 = vadd.f32 %v2058, %v1863
        %v2061 = vadd.f32 %v2059, %v1864
        %v2062 = vmul.f32 %v2060, %v1948
        %v2063 = vmul.f32 %v2061, %v1952
        %v2064 = vsel %vm576, %v2062, 0.0
        %v2065 = vsel %vm576, %v2063, 0.0
        %v2066 = vadd.f32 %v2064, %v2065
        %v2067 = vrot.slane %v2066, 4
        %v2068 = vadd.f32 %v2066, %v2067
        %v2069 = vrot.slane %v2068, 2
        %v2070 = vadd.f32 %v2068, %v2069
        %v2071 = vrot.slane %v2070, 1
        %v2072 = vadd.f32 %v2070, %v2071
        %v2073 = vsel %vm1509, %v1967, %v1982
        %v2074 = vsel %vm1511, %v2073, %v1997
        %v2075 = vsel %vm1513, %v2074, %v2012
        %v2076 = vsel %vm1515, %v2075, %v2027
        %v2077 = vsel %vm1517, %v2076, %v2042
        %v2078 = vsel %vm1519, %v2077, %v2057
        %v2079 = vsel %vm1521, %v2078, %v2072
        %s2080 = scalar_lea.vmem [#allocation7], 8
        %2081 = vst.msk [vmem:[%s2080] sm:$0xff] %vm576, %v2079
        %2082 = vst.msk [vmem:[#allocation8] sm:$0xff] %vm576, %v2060
        %2083 = vst.msk [vmem:[#allocation8 + $0x8] sm:$0xff] %vm576, %v2061
        %v2084 = vld [vmem:[#allocation7] sm:$0xff]
        %v2085 = vld [vmem:[#allocation7 + $0x8] sm:$0xff]
        %v2086 = vld [vmem:[#allocation3] sm:$0xff]
        %v2087 = vld [vmem:[#allocation3 + $0x8] sm:$0xff]
        %v2088 = vld [vmem:[#allocation17] sm:$0x1]
        %v2090 = vlaneseq
        %v2091 = vshrl.u32 %v2090, 7
        %v2092 = vsub.s32 0, %v2091
        %v2093 = vrot.slane %v2088, %v2092
        %v2095 = vmul.f32 %v2086, %v2093
        %v2096 = vmul.f32 %v2087, %v2093
        %v2097 = vadd.f32 %v2084, %v2095
        %v2098 = vadd.f32 %v2085, %v2096
        %v2099 = vsub.f32 0.0, %v570
        %v2100 = vsub.f32 0.0, %v573
        %v2101 = vmul.f32 %v2099, 1.442695
        %v2102 = vpow.pop %v2101
        %v2103 = vmul.f32 %v2100, 1.442695
        %v2104 = vpow.pop %v2103
        %v2105 = vadd.f32 %v2102, 1.0
        %v2106 = vadd.f32 %v2104, 1.0
        %v2107 = vrcp.pop %v2105
        %v2108 = vrcp.pop %v2106
        %v2109 = vmul.f32 %v570, %v2107
        %v2110 = vmul.f32 %v573, %v2108
        %2113 = vrot.lane.b32.xlu0 %v2109, 64
        %v2114 = vpop.permute.xlu0 %2113
        %2115 = vrot.lane.b32.xlu0 %v2110, 64
        %v2116 = vpop.permute.xlu0 %2115
        %v2119 = vmul.f32 %v2097, %v2114
        %v2120 = vmul.f32 %v2098, %v2116
        %v2121 = vpack.c.bf16 %v2120, %v2119
        %v2122 = vld [vmem:[%s10] sm:$0xf]
        %v2123 = vld [vmem:[%s10 + $0x4] sm:$0xf]
        %v2124 = vld [vmem:[%s10 + $0x8] sm:$0xf]
        %v2125 = vld [vmem:[%s10 + $0xc] sm:$0xf]
        %v2126 = vld [vmem:[%s10 + $0x10] sm:$0xf]
        %v2127 = vld [vmem:[%s10 + $0x14] sm:$0xf]
        %v2128 = vld [vmem:[%s10 + $0x18] sm:$0xf]
        %v2129 = vld [vmem:[%s10 + $0x1c] sm:$0xf]
        %v2138 = vunpack.c.l.b16 %v2122
        %v2139 = vunpack.c.l.b16 %v2123
        %v2140 = vunpack.c.l.b16 %v2124
        %v2141 = vunpack.c.l.b16 %v2125
        %v2142 = vunpack.c.l.b16 %v2126
        %v2143 = vunpack.c.l.b16 %v2127
        %v2144 = vunpack.c.l.b16 %v2128
        %v2145 = vunpack.c.l.b16 %v2129
        %v2146 = vpack.c.b16 %v2139, %v2138
        %v2147 = vpack.c.b16 %v2141, %v2140
        %v2148 = vpack.c.b16 %v2143, %v2142
        %v2149 = vpack.c.b16 %v2145, %v2144
        %v2155 = vsel %vm576, %v2121, 0
        %2157 = vmatprep.subr.bf16.mxu0 0
        %2158 = vmatpush1.bf16.msra.mxu0 0
        %2159 = vmatprep.subr.bf16.mxu0 0
        %2160 = vmatpush1.bf16.msra.mxu0 0
        %2161 = vmatprep.subr.bf16.mxu0 0
        %2162 = vmatpush1.bf16.msra.mxu0 0
        %2163 = vmatprep.subr.bf16.mxu0 0
        %2164 = vmatpush1.bf16.msra.mxu0 0
        %2165 = vmatprep.subr.bf16.mxu0 0
        %2166 = vmatpush1.bf16.msra.mxu0 %v2149
        %2167 = vmatprep.subr.bf16.mxu0 0
        %2168 = vmatpush1.bf16.msra.mxu0 %v2148
        %2169 = vmatprep.subr.bf16.mxu0 0
        %2170 = vmatpush1.bf16.msra.mxu0 %v2147
        %2171 = vmatprep.subr.bf16.mxu0 0
        %2172 = vmatpush1.bf16.msra.mxu0 %v2146
        %2173 = vmatprep.subr.bf16.mxu0 0
        %2174 = vmatpush2.bf16.msra.mxu0 0
        %2175 = vmatprep.subr.bf16.mxu0 0
        %2176 = vmatpush2.bf16.msra.mxu0 0
        %2177 = vmatprep.subr.bf16.mxu0 0
        %2178 = vmatpush2.bf16.msra.mxu0 0
        %2179 = vmatprep.subr.bf16.mxu0 0
        %2180 = vmatpush2.bf16.msra.mxu0 0
        %2181 = vmatprep.subr.bf16.mxu0 0
        %2182 = vmatpush2.bf16.msra.mxu0 0
        %2183 = vmatprep.subr.bf16.mxu0 0
        %2184 = vmatpush2.bf16.msra.mxu0 0
        %2185 = vmatprep.subr.bf16.mxu0 0
        %2186 = vmatpush2.bf16.msra.mxu0 0
        %2187 = vmatprep.subr.bf16.mxu0 0
        %2188 = vmatpush2.bf16.msra.mxu0 0
        %2189 = vmatprep.mubr.bf16.mxu0 0
        %2190 = vmatmul.mubr.bf16.gmra.mxu0 %v2155
        %v2191 = vpop.f32.mrf.mxu0
        %v2192 = vadd.f32 %v486, %v2191
        %v2193 = vpop.f32.mrf.mxu0
        %v2194 = vpop.f32.mrf.mxu0
        %v2195 = vadd.f32 %v487, %v2194
        %v2196 = vpop.f32.mrf.mxu0
        %2197 = vdwg.mxu0
        %2198 = vst.msk [vmem:[%s474] sm:$0xff] %vm490, %v2192
        %2199 = vst.msk [vmem:[%s474 + $0x8] sm:$0xff] %vm490, %v2195
        %s2200 = sand.u32 %s290, 1
        %s2201 = scalar_lea.sflag [#allocation11], %s2200
        %s2202 = sand.u32 %s290, 1
        %s2203 = smul.addr %s2202, 16
        %s2204 = scalar_lea.vmem [#allocation18], %s2203
        // Predicated region
        $region89: #{tpu_custom_call.1} parent=63 // pred_check
          %p2205 = pneg %p300
        $region90: #{tpu_custom_call.1} parent=63 // pred_check_branch
          %2207 = sbr.rel (%p2205) target = $region92
        $region91: #{tpu_custom_call.1} parent=63 // pred_region
          %s2208 = smul.u32 2, %s35
          %s2210 = ssub.s32 256, 256
          %2211 = vsyncadd %s2201, %s2210
          %s2212 = smul.addr %s34, 4
          %s2213 = sadd.s32 %s2208, %s2212
          %s2214 = smul.addr %s2213, 128
          %s2215 = scalar_lea.hbm %s11, %s2214
          %s2216 = sshll.u32 %s2204, 4
          %s2217 = int_to_ptr.vmem [resolvable:$true] %s2216
          %2222 = dma.vmem_to_hbm [thread:$0]  %s2217, 256, %s2215, %s2201, 128, 128, 8
        $region92: #{tpu_custom_call.1} parent=63 // pred_fallthru
          _
      $region64: #{tpu_custom_call.1} parent=5 // pred_fallthru
        _
      %p2223 = scmp.le.s32.totalorder 2, %s25
      // Predicated region
      $region93: #{tpu_custom_call.1} parent=5 // pred_check
        %p2224 = pneg %p2223
      $region94: #{tpu_custom_call.1} parent=5 // pred_check_branch
        %2226 = sbr.rel (%p2224) target = $region96
      $region95: #{tpu_custom_call.1} parent=5 // pred_region
        %s2227 = ssub.s32 %s25, 2
        // Predicated region
        $region97: #{tpu_custom_call.1} parent=95 // pred_check
          %p2228 = pneg %p306
        $region98: #{tpu_custom_call.1} parent=95 // pred_check_branch
          %2230 = sbr.rel (%p2228) target = $region100
        $region99: #{tpu_custom_call.1} parent=95 // pred_region
          %s2231 = sand.u32 %s291, 1
          %s2232 = scalar_lea.sflag [#allocation11], %s2231
          %s2233 = sand.u32 %s291, 1
          %s2234 = smul.addr %s2233, 16
          %s2235 = scalar_lea.vmem [#allocation18], %s2234
          %2236 = dma.done %s2232, 256
        $region100: #{tpu_custom_call.1} parent=95 // pred_fallthru
          _
      $region96: #{tpu_custom_call.1} parent=5 // pred_fallthru
        _
    $region6: #{tpu_custom_call.1} parent=1 // loop_footer
      %s29 = sadd.s32 1, %s25
    $region7: #{tpu_custom_call.1} parent=1 // loop_footer_branch
      %24 = sbr.rel target = $region3
    $region8: #{tpu_custom_call.1} parent=1 // loop_exit
      _
    %2237 = vsyncpa [#allocation10], 1
    %s2238 = scalar_lea.sflag [#allocation10], 1
    %2239 = vsyncpa %s2238, 1
    %2240 = vsyncpa [#allocation13], 1
    %2241 = vsyncpa [#allocation16], 1
    %2242 = vsyncpa [#allocation11], 1
    %s2243 = scalar_lea.sflag [#allocation11], 1
    %2244 = vsyncpa %s2243, 1

// kernel: tpu_custom_call.1
$region0: #{tpu_custom_call.1}
  #allocation0 [shape = 'u32[]', space=smem, size = 0x4, offset = 0x4, fixed_abs, tag = 'smem constant byte address 0x4 - core index']
  #allocation1 [shape = 'u32[144,128]{1,0:T(1,128)}', space=vmem, size = 0x12000, scoped, tag = 'internal scratch']
  #allocation2 [shape = 'f32[24,64]{1,0:T(8,128)}', space=vmem, size = 0x3000, scoped, tag = 'scratch operand']
  #allocation3 [shape = 'f32[16,64]{1,0:T(8,128)}', space=vmem, size = 0x2000, scoped, tag = 'scratch operand']
  #allocation4 [shape = 'f32[16,64]{1,0:T(8,128)}', space=vmem, size = 0x2000, scoped, tag = 'scratch operand']
  #allocation5 [shape = 'f32[16,64]{1,0:T(8,128)}', space=vmem, size = 0x2000, scoped, tag = 'scratch operand']
  #allocation6 [shape = 'f32[16,256]{1,0:T(8,128)}', space=vmem, size = 0x4000, scoped, tag = 'scratch operand']
  #allocation7 [shape = 'f32[16,64]{1,0:T(8,128)}', space=vmem, size = 0x2000, scoped, tag = 'scratch operand']
  #allocation8 [shape = 'f32[16,64]{1,0:T(8,128)}', space=vmem, size = 0x2000, scoped, tag = 'scratch operand']
  %s0 = inlined_call_operand.hbm [shape: f32[2,32,32], index: 0, kind: input, shape index: {}]
  %s1 = inlined_call_operand.vmem [shape: f32[1,32], index: 1, kind: input, shape index: {}]
  %s2 = inlined_call_operand.vmem [shape: bf16[32,128], index: 2, kind: input, shape index: {}]
  %s3 = inlined_call_operand.hbm [shape: f32[4,64], index: 3, kind: input, shape index: {}]
  %s4 = inlined_call_operand.vmem [shape: f32[1,64], index: 4, kind: input, shape index: {}]
  %s5 = inlined_call_operand.vmem [shape: bf16[64,384], index: 5, kind: input, shape index: {}]
  %s6 = inlined_call_operand.vmem [shape: bf16[128,64], index: 6, kind: input, shape index: {}]
  %s7 = inlined_call_operand.hbm [shape: f32[1,64], index: 7, kind: input, shape index: {}]
  %s8 = inlined_call_operand.hbm [shape: f32[16,64], index: 8, kind: input, shape index: {}]
  %s9 = inlined_call_operand.hbm [shape: f32[1,64], index: 9, kind: input, shape index: {}]
  %s10 = inlined_call_operand.vmem [shape: bf16[64,32], index: 10, kind: input, shape index: {}]
  %s11 = inlined_call_operand.hbm [shape: f32[2,32,32], index: 11, kind: output, shape index: {}]
  %s12 = sld [smem:[#allocation0]]
  $region101: #{tpu_custom_call.1} parent=0
    _
  %s14 = ssub.s32 1, %s12
  %s15 = scalar_select 0, %s14, %s12
  $region1: #{tpu_custom_call.1} parent=0
    #allocation9 [shape = 'u8[16384]{0}', space=vmem, size = 0x4000, scoped, tag = 'input window, operand 0']
    #allocation10 [shape = 's32[2]{0}', space=sflag, size = 0x8, scoped, tag = 'scoped memory for tpu_custom_call.1']
    #allocation11 [shape = 's32[2]{0}', space=sflag, size = 0x8, scoped, tag = 'scoped memory for tpu_custom_call.1']
    #allocation12 [shape = 'u8[2048]{0}', space=vmem, size = 0x800, scoped, tag = 'input window, operand 3, single buffered']
    #allocation13 [shape = 's32[1]{0}', space=sflag, size = 0x4, scoped, tag = 'scoped memory for tpu_custom_call.1']
    #allocation14 [shape = 'u8[512]{0}', space=vmem, size = 0x400, scoped, tag = 'input window, operand 7, single buffered']
    #allocation15 [shape = 'u8[8192]{0}', space=vmem, size = 0x2000, scoped, tag = 'input window, operand 8, single buffered']
    #allocation16 [shape = 's32[1]{0}', space=sflag, size = 0x4, scoped, tag = 'scoped memory for tpu_custom_call.1']
    #allocation17 [shape = 'u8[512]{0}', space=vmem, size = 0x400, scoped, tag = 'input window, operand 9, single buffered']
    #allocation18 [shape = 'u8[16384]{0}', space=vmem, size = 0x4000, scoped, tag = 'output window, operand 0']
    %16 = vsyncpa [#allocation10], 0
    %s17 = scalar_lea.sflag [#allocation10], 1
    %18 = vsyncpa %s17, 0
    %19 = vsyncpa [#allocation13], 0
    %20 = vsyncpa [#allocation16], 0
    %21 = vsyncpa [#allocation11], 0
    %s22 = scalar_lea.sflag [#allocation11], 1
    %23 = vsyncpa %s22, 0
    loop: start=0, step=1, limit=6
    $region2: #{tpu_custom_call.1} parent=1 // loop_pre_header
      _
    $region3: #{tpu_custom_call.1} parent=1 // loop_header
      %s25 = sphi 0, %s29
      %p26 = scmp.ge.s32.totalorder %s25, 6
      %s32 = sphi 0, %s44
      %s33 = sphi 0, %s40
      %s34 = sphi 0, %s32
      %s35 = sphi 0, %s33
      %s36 = sphi 0, %s34
      %s37 = sphi 0, %s35
      %s49 = sphi 0, %s51
      %s52 = sphi 0, %s49
      %s53 = sphi 0, %s52
      %s69 = sphi 0, %s53
      %s73 = sphi 0, %s73
      %s75 = sphi 0, %s73
      %s76 = sphi 0, %s75
      %s90 = sphi 0, %s76
      %s94 = sphi 0, %s94
      %s96 = sphi 0, %s94
      %s97 = sphi 0, %s96
      %s111 = sphi 0, %s97
      %s115 = sphi 0, %s115
      %s117 = sphi 0, %s115
      %s118 = sphi 0, %s117
      %s132 = sphi 0, %s118
      %s136 = sphi 0, %s136
      %s138 = sphi 0, %s136
      %s139 = sphi 0, %s138
      %s153 = sphi 0, %s139
      %s157 = sphi 0, %s157
      %s159 = sphi 0, %s157
      %s160 = sphi 0, %s159
      %s174 = sphi 0, %s160
      %s178 = sphi 0, %s178
      %s180 = sphi 0, %s178
      %s181 = sphi 0, %s180
      %s195 = sphi 0, %s181
      %s199 = sphi 0, %s199
      %s201 = sphi 0, %s199
      %s202 = sphi 0, %s201
      %s216 = sphi 0, %s202
      %s220 = sphi 0, %s220
      %s222 = sphi 0, %s220
      %s223 = sphi 0, %s222
      %s237 = sphi 0, %s223
      %s241 = sphi 0, %s241
      %s243 = sphi 0, %s241
      %s244 = sphi 0, %s243
      %s258 = sphi 0, %s244
      %s262 = sphi 0, %s262
      %s264 = sphi 0, %s262
      %s265 = sphi 0, %s264
      %s279 = sphi 0, %s265
      %s287 = sphi 0, %s289
      %s290 = sphi 0, %s287
      %s291 = sphi 0, %s290
      %s307 = sphi 0, %s291
    $region4: #{tpu_custom_call.1} parent=1 // loop_header_branch
      %28 = sbr.rel (%p26) target = $region8
    $region5: #{tpu_custom_call.1} parent=1 // loop_body
      %s30 = ssub.s32 %s25, 1
      %s31 = ssub.s32 %s25, 2
      %s38 = sadd.s32 1, %s33
      %p39 = scmp.ge.s32.totalorder %s38, 2
      %s40 = scalar_select %p39, 0, %s38
      %s41 = sadd.s32 1, %s32
      %s42 = scalar_select %p39, %s41, %s32
      %p43 = scmp.ge.s32.totalorder %s42, 2
      %s44 = scalar_select %p43, 0, %s42
      %s45 = ssub.s32 %s32, %s44
      %s46 = ssub.s32 %s33, %s40
      %s47 = sor.u32 %s45, %s46
      %p48 = scmp.eq.s32.totalorder %s47, 0
      %s50 = sadd.s32 %s49, 1
      %s51 = scalar_select %p48, %s49, %s50
      %p54 = pneg %p48
      %p55 = scmp.eq.s32.totalorder %s25, 3
      %p56 = por %p54, %p55
      %p57 = scmp.ne.s32.totalorder %s49, %s52
      %p58 = scmp.eq.s32.totalorder %s25, 0
      %p59 = por %p57, %p58
      %p60 = scmp.ne.s32.totalorder %s49, %s52
      %p61 = scmp.eq.s32.totalorder %s30, 3
      %p62 = por %p60, %p61
      %p63 = scmp.ne.s32.totalorder %s52, %s53
      %p64 = scmp.eq.s32.totalorder %s30, 0
      %p65 = por %p63, %p64
      %p66 = scmp.ne.s32.totalorder %s52, %s53
      %p67 = scmp.eq.s32.totalorder %s31, 3
      %p68 = por %p66, %p67
      %p70 = scmp.ne.s32.totalorder %s53, %s69
      %p71 = scmp.eq.s32.totalorder %s31, 0
      %p72 = por %p70, %p71
      %s74 = sadd.s32 %s73, 1
      %p77 = scmp.eq.s32.totalorder %s25, 3
      %p78 = scmp.ne.s32.totalorder %s73, %s75
      %p79 = scmp.eq.s32.totalorder %s25, 0
      %p80 = por %p78, %p79
      %p81 = scmp.ne.s32.totalorder %s73, %s75
      %p82 = scmp.eq.s32.totalorder %s30, 3
      %p83 = por %p81, %p82
      %p84 = scmp.ne.s32.totalorder %s75, %s76
      %p85 = scmp.eq.s32.totalorder %s30, 0
      %p86 = por %p84, %p85
      %p87 = scmp.ne.s32.totalorder %s75, %s76
      %p88 = scmp.eq.s32.totalorder %s31, 3
      %p89 = por %p87, %p88
      %p91 = scmp.ne.s32.totalorder %s76, %s90
      %p92 = scmp.eq.s32.totalorder %s31, 0
      %p93 = por %p91, %p92
      %s95 = sadd.s32 %s94, 1
      %p98 = scmp.eq.s32.totalorder %s25, 3
      %p99 = scmp.ne.s32.totalorder %s94, %s96
      %p100 = scmp.eq.s32.totalorder %s25, 0
      %p101 = por %p99, %p100
      %p102 = scmp.ne.s32.totalorder %s94, %s96
      %p103 = scmp.eq.s32.totalorder %s30, 3
      %p104 = por %p102, %p103
      %p105 = scmp.ne.s32.totalorder %s96, %s97
      %p106 = scmp.eq.s32.totalorder %s30, 0
      %p107 = por %p105, %p106
      %p108 = scmp.ne.s32.totalorder %s96, %s97
      %p109 = scmp.eq.s32.totalorder %s31, 3
      %p110 = por %p108, %p109
      %p112 = scmp.ne.s32.totalorder %s97, %s111
      %p113 = scmp.eq.s32.totalorder %s31, 0
      %p114 = por %p112, %p113
      %s116 = sadd.s32 %s115, 1
      %p119 = scmp.eq.s32.totalorder %s25, 3
      %p120 = scmp.ne.s32.totalorder %s115, %s117
      %p121 = scmp.eq.s32.totalorder %s25, 0
      %p122 = por %p120, %p121
      %p123 = scmp.ne.s32.totalorder %s115, %s117
      %p124 = scmp.eq.s32.totalorder %s30, 3
      %p125 = por %p123, %p124
      %p126 = scmp.ne.s32.totalorder %s117, %s118
      %p127 = scmp.eq.s32.totalorder %s30, 0
      %p128 = por %p126, %p127
      %p129 = scmp.ne.s32.totalorder %s117, %s118
      %p130 = scmp.eq.s32.totalorder %s31, 3
      %p131 = por %p129, %p130
      %p133 = scmp.ne.s32.totalorder %s118, %s132
      %p134 = scmp.eq.s32.totalorder %s31, 0
      %p135 = por %p133, %p134
      %s137 = sadd.s32 %s136, 1
      %p140 = scmp.eq.s32.totalorder %s25, 3
      %p141 = scmp.ne.s32.totalorder %s136, %s138
      %p142 = scmp.eq.s32.totalorder %s25, 0
      %p143 = por %p141, %p142
      %p144 = scmp.ne.s32.totalorder %s136, %s138
      %p145 = scmp.eq.s32.totalorder %s30, 3
      %p146 = por %p144, %p145
      %p147 = scmp.ne.s32.totalorder %s138, %s139
      %p148 = scmp.eq.s32.totalorder %s30, 0
      %p149 = por %p147, %p148
      %p150 = scmp.ne.s32.totalorder %s138, %s139
      %p151 = scmp.eq.s32.totalorder %s31, 3
      %p152 = por %p150, %p151
      %p154 = scmp.ne.s32.totalorder %s139, %s153
      %p155 = scmp.eq.s32.totalorder %s31, 0
      %p156 = por %p154, %p155
      %s158 = sadd.s32 %s157, 1
      %p161 = scmp.eq.s32.totalorder %s25, 3
      %p162 = scmp.ne.s32.totalorder %s157, %s159
      %p163 = scmp.eq.s32.totalorder %s25, 0
      %p164 = por %p162, %p163
      %p165 = scmp.ne.s32.totalorder %s157, %s159
      %p166 = scmp.eq.s32.totalorder %s30, 3
      %p167 = por %p165, %p166
      %p168 = scmp.ne.s32.totalorder %s159, %s160
      %p169 = scmp.eq.s32.totalorder %s30, 0
      %p170 = por %p168, %p169
      %p171 = scmp.ne.s32.totalorder %s159, %s160
      %p172 = scmp.eq.s32.totalorder %s31, 3
      %p173 = por %p171, %p172
      %p175 = scmp.ne.s32.totalorder %s160, %s174
      %p176 = scmp.eq.s32.totalorder %s31, 0
      %p177 = por %p175, %p176
      %s179 = sadd.s32 %s178, 1
      %p182 = scmp.eq.s32.totalorder %s25, 3
      %p183 = scmp.ne.s32.totalorder %s178, %s180
      %p184 = scmp.eq.s32.totalorder %s25, 0
      %p185 = por %p183, %p184
      %p186 = scmp.ne.s32.totalorder %s178, %s180
      %p187 = scmp.eq.s32.totalorder %s30, 3
      %p188 = por %p186, %p187
      %p189 = scmp.ne.s32.totalorder %s180, %s181
      %p190 = scmp.eq.s32.totalorder %s30, 0
      %p191 = por %p189, %p190
      %p192 = scmp.ne.s32.totalorder %s180, %s181
      %p193 = scmp.eq.s32.totalorder %s31, 3
      %p194 = por %p192, %p193
      %p196 = scmp.ne.s32.totalorder %s181, %s195
      %p197 = scmp.eq.s32.totalorder %s31, 0
      %p198 = por %p196, %p197
      %s200 = sadd.s32 %s199, 1
      %p203 = scmp.eq.s32.totalorder %s25, 3
      %p204 = scmp.ne.s32.totalorder %s199, %s201
      %p205 = scmp.eq.s32.totalorder %s25, 0
      %p206 = por %p204, %p205
      %p207 = scmp.ne.s32.totalorder %s199, %s201
      %p208 = scmp.eq.s32.totalorder %s30, 3
      %p209 = por %p207, %p208
      %p210 = scmp.ne.s32.totalorder %s201, %s202
      %p211 = scmp.eq.s32.totalorder %s30, 0
      %p212 = por %p210, %p211
      %p213 = scmp.ne.s32.totalorder %s201, %s202
      %p214 = scmp.eq.s32.totalorder %s31, 3
      %p215 = por %p213, %p214
      %p217 = scmp.ne.s32.totalorder %s202, %s216
      %p218 = scmp.eq.s32.totalorder %s31, 0
      %p219 = por %p217, %p218
      %s221 = sadd.s32 %s220, 1
      %p224 = scmp.eq.s32.totalorder %s25, 3
      %p225 = scmp.ne.s32.totalorder %s220, %s222
      %p226 = scmp.eq.s32.totalorder %s25, 0
      %p227 = por %p225, %p226
      %p228 = scmp.ne.s32.totalorder %s220, %s222
      %p229 = scmp.eq.s32.totalorder %s30, 3
      %p230 = por %p228, %p229
      %p231 = scmp.ne.s32.totalorder %s222, %s223
      %p232 = scmp.eq.s32.totalorder %s30, 0
      %p233 = por %p231, %p232
      %p234 = scmp.ne.s32.totalorder %s222, %s223
      %p235 = scmp.eq.s32.totalorder %s31, 3
      %p236 = por %p234, %p235
      %p238 = scmp.ne.s32.totalorder %s223, %s237
      %p239 = scmp.eq.s32.totalorder %s31, 0
      %p240 = por %p238, %p239
      %s242 = sadd.s32 %s241, 1
      %p245 = scmp.eq.s32.totalorder %s25, 3
      %p246 = scmp.ne.s32.totalorder %s241, %s243
      %p247 = scmp.eq.s32.totalorder %s25, 0
      %p248 = por %p246, %p247
      %p249 = scmp.ne.s32.totalorder %s241, %s243
      %p250 = scmp.eq.s32.totalorder %s30, 3
      %p251 = por %p249, %p250
      %p252 = scmp.ne.s32.totalorder %s243, %s244
      %p253 = scmp.eq.s32.totalorder %s30, 0
      %p254 = por %p252, %p253
      %p255 = scmp.ne.s32.totalorder %s243, %s244
      %p256 = scmp.eq.s32.totalorder %s31, 3
      %p257 = por %p255, %p256
      %p259 = scmp.ne.s32.totalorder %s244, %s258
      %p260 = scmp.eq.s32.totalorder %s31, 0
      %p261 = por %p259, %p260
      %s263 = sadd.s32 %s262, 1
      %p266 = scmp.eq.s32.totalorder %s25, 3
      %p267 = scmp.ne.s32.totalorder %s262, %s264
      %p268 = scmp.eq.s32.totalorder %s25, 0
      %p269 = por %p267, %p268
      %p270 = scmp.ne.s32.totalorder %s262, %s264
      %p271 = scmp.eq.s32.totalorder %s30, 3
      %p272 = por %p270, %p271
      %p273 = scmp.ne.s32.totalorder %s264, %s265
      %p274 = scmp.eq.s32.totalorder %s30, 0
      %p275 = por %p273, %p274
      %p276 = scmp.ne.s32.totalorder %s264, %s265
      %p277 = scmp.eq.s32.totalorder %s31, 3
      %p278 = por %p276, %p277
      %p280 = scmp.ne.s32.totalorder %s265, %s279
      %p281 = scmp.eq.s32.totalorder %s31, 0
      %p282 = por %p280, %p281
      %s283 = ssub.s32 %s32, %s44
      %s284 = ssub.s32 %s33, %s40
      %s285 = sor.u32 %s283, %s284
      %p286 = scmp.eq.s32.totalorder %s285, 0
      %s288 = sadd.s32 %s287, 1
      %s289 = scalar_select %p286, %s287, %s288
      %p292 = pneg %p286
      %p293 = scmp.eq.s32.totalorder %s25, 3
      %p294 = por %p292, %p293
      %p295 = scmp.ne.s32.totalorder %s287, %s290
      %p296 = scmp.eq.s32.totalorder %s25, 0
      %p297 = por %p295, %p296
      %p298 = scmp.ne.s32.totalorder %s287, %s290
      %p299 = scmp.eq.s32.totalorder %s30, 3
      %p300 = por %p298, %p299
      %p301 = scmp.ne.s32.totalorder %s290, %s291
      %p302 = scmp.eq.s32.totalorder %s30, 0
      %p303 = por %p301, %p302
      %p304 = scmp.ne.s32.totalorder %s290, %s291
      %p305 = scmp.eq.s32.totalorder %s31, 3
      %p306 = por %p304, %p305
      %p308 = scmp.ne.s32.totalorder %s291, %s307
      %p309 = scmp.eq.s32.totalorder %s31, 0
      %p310 = por %p308, %p309
      %p311 = scmp.le.s32.totalorder 1, %s25
      %p312 = scmp.lt.s32.totalorder %s25, 5
      %p313 = pnand %p311, %p312
      %p314 = pneg %p313
      // Predicated region
      $region9: #{tpu_custom_call.1} parent=5 // pred_check
        _
      $region10: #{tpu_custom_call.1} parent=5 // pred_check_branch
        %316 = sbr.rel (%p313) target = $region12
      $region11: #{tpu_custom_call.1} parent=5 // pred_region
        %s317 = ssub.s32 %s25, 1
        // Predicated region
        $region13: #{tpu_custom_call.1} parent=11 // pred_check
          %p318 = pneg %p86
        $region14: #{tpu_custom_call.1} parent=11 // pred_check_branch
          %320 = sbr.rel (%p318) target = $region16
        $region15: #{tpu_custom_call.1} parent=11 // pred_region
          _
        $region16: #{tpu_custom_call.1} parent=11 // pred_fallthru
          _
        // Predicated region
        $region17: #{tpu_custom_call.1} parent=11 // pred_check
          %p321 = pneg %p107
        $region18: #{tpu_custom_call.1} parent=11 // pred_check_branch
          %323 = sbr.rel (%p321) target = $region20
        $region19: #{tpu_custom_call.1} parent=11 // pred_region
          _
        $region20: #{tpu_custom_call.1} parent=11 // pred_fallthru
          _
        // Predicated region
        $region21: #{tpu_custom_call.1} parent=11 // pred_check
          %p324 = pneg %p128
        $region22: #{tpu_custom_call.1} parent=11 // pred_check_branch
          %326 = sbr.rel (%p324) target = $region24
        $region23: #{tpu_custom_call.1} parent=11 // pred_region
          %s328 = ssub.s32 64, 64
          %329 = vsyncadd [#allocation13], %s328
          %s331 = sshll.u32 [#allocation12], 4
          %s332 = int_to_ptr.vmem [resolvable:$true] %s331
          %334 = dma.hbm_to_vmem [thread:$0]  %s3, 64, %s332, [#allocation13]
        $region24: #{tpu_custom_call.1} parent=11 // pred_fallthru
          _
        // Predicated region
        $region25: #{tpu_custom_call.1} parent=11 // pred_check
          %p335 = pneg %p149
        $region26: #{tpu_custom_call.1} parent=11 // pred_check_branch
          %337 = sbr.rel (%p335) target = $region28
        $region27: #{tpu_custom_call.1} parent=11 // pred_region
          _
        $region28: #{tpu_custom_call.1} parent=11 // pred_fallthru
          _
        // Predicated region
        $region29: #{tpu_custom_call.1} parent=11 // pred_check
          %p338 = pneg %p170
        $region30: #{tpu_custom_call.1} parent=11 // pred_check_branch
          %340 = sbr.rel (%p338) target = $region32
        $region31: #{tpu_custom_call.1} parent=11 // pred_region
          _
        $region32: #{tpu_custom_call.1} parent=11 // pred_fallthru
          _
        // Predicated region
        $region33: #{tpu_custom_call.1} parent=11 // pred_check
          %p341 = pneg %p191
        $region34: #{tpu_custom_call.1} parent=11 // pred_check_branch
          %343 = sbr.rel (%p341) target = $region36
        $region35: #{tpu_custom_call.1} parent=11 // pred_region
          _
        $region36: #{tpu_custom_call.1} parent=11 // pred_fallthru
          _
        // Predicated region
        $region37: #{tpu_custom_call.1} parent=11 // pred_check
          %p344 = pneg %p212
        $region38: #{tpu_custom_call.1} parent=11 // pred_check_branch
          %346 = sbr.rel (%p344) target = $region40
        $region39: #{tpu_custom_call.1} parent=11 // pred_region
          %s348 = ssub.s32 16, 16
          %349 = vsyncadd [#allocation13], %s348
          %s351 = sshll.u32 [#allocation14], 4
          %s352 = int_to_ptr.vmem [resolvable:$true] %s351
          %354 = dma.hbm_to_vmem [thread:$0]  %s7, 16, %s352, [#allocation13]
        $region40: #{tpu_custom_call.1} parent=11 // pred_fallthru
          _
        // Predicated region
        $region41: #{tpu_custom_call.1} parent=11 // pred_check
          %p355 = pneg %p233
        $region42: #{tpu_custom_call.1} parent=11 // pred_check_branch
          %357 = sbr.rel (%p355) target = $region44
        $region43: #{tpu_custom_call.1} parent=11 // pred_region
          %s359 = ssub.s32 256, 256
          %360 = vsyncadd [#allocation16], %s359
          %s361 = sshll.u32 [#allocation15], 4
          %s362 = int_to_ptr.vmem [resolvable:$true] %s361
          %367 = dma.hbm_to_vmem [thread:$0]  %s8, 256, %s362, [#allocation16], 128, 128, 8
        $region44: #{tpu_custom_call.1} parent=11 // pred_fallthru
          _
        // Predicated region
        $region45: #{tpu_custom_call.1} parent=11 // pred_check
          %p368 = pneg %p254
        $region46: #{tpu_custom_call.1} parent=11 // pred_check_branch
          %370 = sbr.rel (%p368) target = $region48
        $region47: #{tpu_custom_call.1} parent=11 // pred_region
          %s372 = ssub.s32 16, 16
          %373 = vsyncadd [#allocation16], %s372
          %s375 = sshll.u32 [#allocation17], 4
          %s376 = int_to_ptr.vmem [resolvable:$true] %s375
          %378 = dma.hbm_to_vmem [thread:$0]  %s9, 16, %s376, [#allocation16]
        $region48: #{tpu_custom_call.1} parent=11 // pred_fallthru
          _
        // Predicated region
        $region49: #{tpu_custom_call.1} parent=11 // pred_check
          %p379 = pneg %p275
        $region50: #{tpu_custom_call.1} parent=11 // pred_check_branch
          %381 = sbr.rel (%p379) target = $region52
        $region51: #{tpu_custom_call.1} parent=11 // pred_region
          _
        $region52: #{tpu_custom_call.1} parent=11 // pred_fallthru
          _
      $region12: #{tpu_custom_call.1} parent=5 // pred_fallthru
        _
      %p382 = scmp.lt.s32.totalorder %s25, 4
      // Predicated region
      $region53: #{tpu_custom_call.1} parent=5 // pred_check
        %p383 = pneg %p382
      $region54: #{tpu_custom_call.1} parent=5 // pred_check_branch
        %385 = sbr.rel (%p383) target = $region56
      $region55: #{tpu_custom_call.1} parent=5 // pred_region
        // Predicated region
        $region57: #{tpu_custom_call.1} parent=55 // pred_check
          %p386 = pneg %p59
        $region58: #{tpu_custom_call.1} parent=55 // pred_check_branch
          %388 = sbr.rel (%p386) target = $region60
        $region59: #{tpu_custom_call.1} parent=55 // pred_region
          %s389 = sand.u32 %s49, 1
          %s390 = scalar_lea.sflag [#allocation10], %s389
          %s391 = sand.u32 %s49, 1
          %s392 = smul.addr %s391, 16
          %s393 = scalar_lea.vmem [#allocation9], %s392
          %s394 = smul.u32 2, %s33
          %s396 = ssub.s32 256, 256
          %397 = vsyncadd %s390, %s396
          %s398 = smul.addr %s32, 4
          %s399 = sadd.s32 %s394, %s398
          %s400 = smul.addr %s399, 128
          %s401 = scalar_lea.hbm %s0, %s400
          %s402 = sshll.u32 %s393, 4
          %s403 = int_to_ptr.vmem [resolvable:$true] %s402
          %408 = dma.hbm_to_vmem [thread:$0]  %s401, 256, %s403, %s390, 128, 128, 8
        $region60: #{tpu_custom_call.1} parent=55 // pred_fallthru
          _
      $region56: #{tpu_custom_call.1} parent=5 // pred_fallthru
        _
      %p409 = scmp.le.s32.totalorder 1, %s25
      %p410 = scmp.lt.s32.totalorder %s25, 5
      %p411 = pnand %p409, %p410
      %p412 = pneg %p411
      // Predicated region
      $region61: #{tpu_custom_call.1} parent=5 // pred_check
        _
      $region62: #{tpu_custom_call.1} parent=5 // pred_check_branch
        %414 = sbr.rel (%p411) target = $region64
      $region63: #{tpu_custom_call.1} parent=5 // pred_region
        %s415 = ssub.s32 %s25, 1
        %s416 = sand.u32 %s52, 1
        %s417 = scalar_lea.sflag [#allocation10], %s416
        %s418 = sand.u32 %s52, 1
        %s419 = smul.addr %s418, 16
        %s420 = scalar_lea.vmem [#allocation9], %s419
        // Predicated region
        $region65: #{tpu_custom_call.1} parent=63 // pred_check
          %p421 = pneg %p65
        $region66: #{tpu_custom_call.1} parent=63 // pred_check_branch
          %423 = sbr.rel (%p421) target = $region68
        $region67: #{tpu_custom_call.1} parent=63 // pred_region
          %424 = dma.done %s417, 256
        $region68: #{tpu_custom_call.1} parent=63 // pred_fallthru
          _
        // Predicated region
        $region69: #{tpu_custom_call.1} parent=63 // pred_check
          %p425 = pneg %p128
        $region70: #{tpu_custom_call.1} parent=63 // pred_check_branch
          %427 = sbr.rel (%p425) target = $region72
        $region71: #{tpu_custom_call.1} parent=63 // pred_region
          %428 = dma.done [#allocation13], 64
        $region72: #{tpu_custom_call.1} parent=63 // pred_fallthru
          _
        // Predicated region
        $region73: #{tpu_custom_call.1} parent=63 // pred_check
          %p429 = pneg %p212
        $region74: #{tpu_custom_call.1} parent=63 // pred_check_branch
          %431 = sbr.rel (%p429) target = $region76
        $region75: #{tpu_custom_call.1} parent=63 // pred_region
          %432 = dma.done [#allocation13], 16
        $region76: #{tpu_custom_call.1} parent=63 // pred_fallthru
          _
        // Predicated region
        $region77: #{tpu_custom_call.1} parent=63 // pred_check
          %p433 = pneg %p233
        $region78: #{tpu_custom_call.1} parent=63 // pred_check_branch
          %435 = sbr.rel (%p433) target = $region80
        $region79: #{tpu_custom_call.1} parent=63 // pred_region
          %436 = dma.done [#allocation16], 256
        $region80: #{tpu_custom_call.1} parent=63 // pred_fallthru
          _
        // Predicated region
        $region81: #{tpu_custom_call.1} parent=63 // pred_check
          %p437 = pneg %p254
        $region82: #{tpu_custom_call.1} parent=63 // pred_check_branch
          %439 = sbr.rel (%p437) target = $region84
        $region83: #{tpu_custom_call.1} parent=63 // pred_region
          %440 = dma.done [#allocation16], 16
        $region84: #{tpu_custom_call.1} parent=63 // pred_fallthru
          _
        %s441 = sand.u32 %s52, 1
        %s442 = scalar_lea.sflag [#allocation10], %s441
        %s443 = sand.u32 %s52, 1
        %s444 = smul.addr %s443, 16
        %s445 = scalar_lea.vmem [#allocation9], %s444
        %p446 = pneg %p65
        %p447 = pneg %p62
        %p448 = pneg %p86
        %p449 = pneg %p83
        %p450 = pneg %p107
        %p451 = pneg %p104
        %p452 = pneg %p128
        %p453 = pneg %p125
        %p454 = pneg %p149
        %p455 = pneg %p146
        %p456 = pneg %p170
        %p457 = pneg %p167
        %p458 = pneg %p191
        %p459 = pneg %p188
        %p460 = pneg %p212
        %p461 = pneg %p209
        %p462 = pneg %p233
        %p463 = pneg %p230
        %p464 = pneg %p254
        %p465 = pneg %p251
        %p466 = pneg %p275
        %p467 = pneg %p272
        %p468 = pneg %p303
        %p469 = pneg %p300
        %s470 = sand.u32 %s290, 1
        %s471 = scalar_lea.sflag [#allocation11], %s470
        %s472 = sand.u32 %s290, 1
        %s473 = smul.addr %s472, 16
        %s474 = scalar_lea.vmem [#allocation18], %s473
        %s475 = smul.u32 2, %s35
        %s476 = smul.u32 2, %s35
        %p478 = scmp.eq.s32.totalorder %s35, 0
        // Predicated region
        $region85: #{tpu_custom_call.1} parent=63 // pred_check
          %p479 = pneg %p478
        $region86: #{tpu_custom_call.1} parent=63 // pred_check_branch
          %481 = sbr.rel (%p479) target = $region88
        $region87: #{tpu_custom_call.1} parent=63 // pred_region
          %vm482 = vcmask 523264
          %483 = vst.msk [vmem:[#allocation8] sm:$0xff] %vm482, 0.0
          %484 = vst.msk [vmem:[#allocation8 + $0x8] sm:$0xff] %vm482, 0.0
          %485 = vst.msk [vmem:[#allocation2] sm:$0xff] %vm482, 0.0
        $region88: #{tpu_custom_call.1} parent=63 // pred_fallthru
          _
        %v486 = vld [vmem:[%s420] sm:$0xff]
        %v487 = vld [vmem:[%s420 + $0x8] sm:$0xff]
        %v488 = vmul.f32 %v486, %v486
        %v489 = vmul.f32 %v487, %v487
        %vm490 = vcmask 261120
        %v491 = vsel %vm490, %v488, 0.0
        %492 = vadd.xlane.f32.xlu0 %v491
        %v493 = vpop.xlane.xlu0 %492
        %v494 = vsel %vm490, %v489, 0.0
        %495 = vadd.xlane.f32.xlu0 %v494
        %v496 = vpop.xlane.xlu0 %495
        %v497 = vrcp.pop 32.0
        %v498 = vmul.f32 %v493, %v497
        %v499 = vmul.f32 %v496, %v497
        %v500 = vadd.f32 %v498, 1e-05
        %v501 = vadd.f32 %v499, 1e-05
        %v502 = vrsqrt.pop %v500
        %v503 = vrsqrt.pop %v501
        %v504 = vmul.f32 %v486, %v502
        %v505 = vmul.f32 %v487, %v503
        %v506 = vld [vmem:[%s1] sm:$0x1]
        %v508 = vlaneseq
        %v509 = vshrl.u32 %v508, 7
        %v510 = vsub.s32 0, %v509
        %v511 = vrot.slane %v506, %v510
        %v513 = vmul.f32 %v504, %v511
        %v514 = vmul.f32 %v505, %v511
        %v515 = vpack.c.bf16 %v514, %v513
        %v516 = vld [vmem:[%s2] sm:$0xf]
        %v517 = vld [vmem:[%s2 + $0x4] sm:$0xf]
        %v518 = vld [vmem:[%s2 + $0x8] sm:$0xf]
        %v519 = vld [vmem:[%s2 + $0xc] sm:$0xf]
        %v524 = vunpack.c.l.b16 %v516
        %v525 = vunpack.c.l.b16 %v517
        %v526 = vunpack.c.l.b16 %v518
        %v527 = vunpack.c.l.b16 %v519
        %v528 = vpack.c.b16 %v525, %v524
        %v529 = vpack.c.b16 %v527, %v526
        %v533 = vsel %vm490, %v515, 0
        %535 = vmatprep.subr.bf16.mxu0 0
        %536 = vmatpush1.bf16.msra.mxu0 0
        %537 = vmatprep.subr.bf16.mxu0 0
        %538 = vmatpush1.bf16.msra.mxu0 0
        %539 = vmatprep.subr.bf16.mxu0 0
        %540 = vmatpush1.bf16.msra.mxu0 0
        %541 = vmatprep.subr.bf16.mxu0 0
        %542 = vmatpush1.bf16.msra.mxu0 0
        %543 = vmatprep.subr.bf16.mxu0 0
        %544 = vmatpush1.bf16.msra.mxu0 0
        %545 = vmatprep.subr.bf16.mxu0 0
        %546 = vmatpush1.bf16.msra.mxu0 0
        %547 = vmatprep.subr.bf16.mxu0 0
        %548 = vmatpush1.bf16.msra.mxu0 %v529
        %549 = vmatprep.subr.bf16.mxu0 0
        %550 = vmatpush1.bf16.msra.mxu0 %v528
        %551 = vmatprep.subr.bf16.mxu0 0
        %552 = vmatpush2.bf16.msra.mxu0 0
        %553 = vmatprep.subr.bf16.mxu0 0
        %554 = vmatpush2.bf16.msra.mxu0 0
        %555 = vmatprep.subr.bf16.mxu0 0
        %556 = vmatpush2.bf16.msra.mxu0 0
        %557 = vmatprep.subr.bf16.mxu0 0
        %558 = vmatpush2.bf16.msra.mxu0 0
        %559 = vmatprep.subr.bf16.mxu0 0
        %560 = vmatpush2.bf16.msra.mxu0 0
        %561 = vmatprep.subr.bf16.mxu0 0
        %562 = vmatpush2.bf16.msra.mxu0 0
        %563 = vmatprep.subr.bf16.mxu0 0
        %564 = vmatpush2.bf16.msra.mxu0 0
        %565 = vmatprep.subr.bf16.mxu0 0
        %566 = vmatpush2.bf16.msra.mxu0 0
        %567 = vmatprep.mubr.bf16.mxu0 0
        %568 = vmatmul.mubr.bf16.gmra.mxu0 %v533
        %v569 = vpop.f32.mrf.mxu0
        %v570 = vadd.f32 0.0, %v569
        %v571 = vpop.f32.mrf.mxu0
        %v572 = vpop.f32.mrf.mxu0
        %v573 = vadd.f32 0.0, %v572
        %v574 = vpop.f32.mrf.mxu0
        %575 = vdwg.mxu0
        %vm576 = vcmask 523264
        %577 = vst.msk [vmem:[#allocation2 + $0x8] sm:$0xff] %vm576, %v570
        %578 = vst.msk [vmem:[#allocation2 + $0x10] sm:$0xff] %vm576, %v573
        %v579 = vld [vmem:[#allocation2 + $0x5] sm:$0xff]
        %v580 = vld [vmem:[#allocation2 + $0xd] sm:$0xff]
        %v581 = vld [vmem:[#allocation12] sm:$0x1]
        %v582 = vlaneseq
        %v583 = vshrl.u32 %v582, 7
        %v584 = vsub.s32 0, %v583
        %v585 = vrot.slane %v581, %v584
        %v586 = vmul.f32 %v579, %v585
        %v587 = vmul.f32 %v580, %v585
        %v588 = vld [vmem:[#allocation2 + $0x6] sm:$0xff]
        %v589 = vld [vmem:[#allocation2 + $0xe] sm:$0xff]
        %v590 = vld [vmem:[#allocation12 + $0x1] sm:$0x1]
        %v591 = vlaneseq
        %v592 = vshrl.u32 %v591, 7
        %v593 = vsub.s32 0, %v592
        %v594 = vrot.slane %v590, %v593
        %v595 = vmul.f32 %v588, %v594
        %v596 = vmul.f32 %v589, %v594
        %v597 = vadd.f32 %v586, %v595
        %v598 = vadd.f32 %v587, %v596
        %v599 = vld [vmem:[#allocation2 + $0x7] sm:$0xff]
        %v600 = vld [vmem:[#allocation2 + $0xf] sm:$0xff]
        %v601 = vld [vmem:[#allocation12 + $0x2] sm:$0x1]
        %v602 = vlaneseq
        %v603 = vshrl.u32 %v602, 7
        %v604 = vsub.s32 0, %v603
        %v605 = vrot.slane %v601, %v604
        %v606 = vmul.f32 %v599, %v605
        %v607 = vmul.f32 %v600, %v605
        %v608 = vadd.f32 %v597, %v606
        %v609 = vadd.f32 %v598, %v607
        %v610 = vld [vmem:[#allocation2 + $0x8] sm:$0xff]
        %v611 = vld [vmem:[#allocation2 + $0x10] sm:$0xff]
        %v612 = vld [vmem:[#allocation12 + $0x3] sm:$0x1]
        %v613 = vlaneseq
        %v614 = vshrl.u32 %v613, 7
        %v615 = vsub.s32 0, %v614
        %v616 = vrot.slane %v612, %v615
        %v617 = vmul.f32 %v610, %v616
        %v618 = vmul.f32 %v611, %v616
        %v619 = vadd.f32 %v608, %v617
        %v620 = vadd.f32 %v609, %v618
        %v621 = vld [vmem:[%s4] sm:$0x1]
        %v623 = vlaneseq
        %v624 = vshrl.u32 %v623, 7
        %v625 = vsub.s32 0, %v624
        %v626 = vrot.slane %v621, %v625
        %v628 = vadd.f32 %v619, %v626
        %v629 = vadd.f32 %v620, %v626
        %v630 = vsub.f32 0.0, %v628
        %v631 = vsub.f32 0.0, %v629
        %v632 = vmul.f32 %v630, 1.442695
        %v633 = vpow.pop %v632
        %v634 = vmul.f32 %v631, 1.442695
        %v635 = vpow.pop %v634
        %v636 = vadd.f32 %v633, 1.0
        %v637 = vadd.f32 %v635, 1.0
        %v638 = vrcp.pop %v636
        %v639 = vrcp.pop %v637
        %v640 = vmul.f32 %v628, %v638
        %v641 = vmul.f32 %v629, %v639
        %642 = vst.msk [vmem:[#allocation3] sm:$0xff] %vm576, %v640
        %643 = vst.msk [vmem:[#allocation3 + $0x8] sm:$0xff] %vm576, %v641
        %v644 = vld [vmem:[#allocation2 + $0x15] sm:$0x7]
        %vm645 = vcmask 518144
        %646 = vst.msk [vmem:[#allocation2 + $0x5] sm:$0x7] %vm645, %v644
        %v647 = vpack.c.bf16 %v641, %v640
        %v648 = vld [vmem:[%s5] sm:$0xff]
        %v649 = vld [vmem:[%s5 + $0x8] sm:$0xf]
        %v650 = vld [vmem:[%s5 + $0xc] sm:$0xff]
        %v651 = vld [vmem:[%s5 + $0x14] sm:$0xf]
        %v652 = vld [vmem:[%s5 + $0x18] sm:$0xff]
        %v653 = vld [vmem:[%s5 + $0x20] sm:$0xf]
        %v654 = vld [vmem:[%s5 + $0x24] sm:$0xff]
        %v655 = vld [vmem:[%s5 + $0x2c] sm:$0xf]
        %v656 = vld [vmem:[%s5 + $0x30] sm:$0xff]
        %v657 = vld [vmem:[%s5 + $0x38] sm:$0xf]
        %v658 = vld [vmem:[%s5 + $0x3c] sm:$0xff]
        %v659 = vld [vmem:[%s5 + $0x44] sm:$0xf]
        %v660 = vld [vmem:[%s5 + $0x48] sm:$0xff]
        %v661 = vld [vmem:[%s5 + $0x50] sm:$0xf]
        %v662 = vld [vmem:[%s5 + $0x54] sm:$0xff]
        %v663 = vld [vmem:[%s5 + $0x5c] sm:$0xf]
        %v680 = vunpack.c.l.b16 %v648
        %v681 = vunpack.c.h.b16 %v648
        %v682 = vunpack.c.l.b16 %v649
        %v683 = vunpack.c.l.b16 %v650
        %v684 = vunpack.c.h.b16 %v650
        %v685 = vunpack.c.l.b16 %v651
        %v686 = vunpack.c.l.b16 %v652
        %v687 = vunpack.c.h.b16 %v652
        %v688 = vunpack.c.l.b16 %v653
        %v689 = vunpack.c.l.b16 %v654
        %v690 = vunpack.c.h.b16 %v654
        %v691 = vunpack.c.l.b16 %v655
        %v692 = vunpack.c.l.b16 %v656
        %v693 = vunpack.c.h.b16 %v656
        %v694 = vunpack.c.l.b16 %v657
        %v695 = vunpack.c.l.b16 %v658
        %v696 = vunpack.c.h.b16 %v658
        %v697 = vunpack.c.l.b16 %v659
        %v698 = vunpack.c.l.b16 %v660
        %v699 = vunpack.c.h.b16 %v660
        %v700 = vunpack.c.l.b16 %v661
        %v701 = vunpack.c.l.b16 %v662
        %v702 = vunpack.c.h.b16 %v662
        %v703 = vunpack.c.l.b16 %v663
        %v704 = vpack.c.b16 %v683, %v680
        %v705 = vpack.c.b16 %v684, %v681
        %v706 = vpack.c.b16 %v685, %v682
        %v707 = vpack.c.b16 %v689, %v686
        %v708 = vpack.c.b16 %v690, %v687
        %v709 = vpack.c.b16 %v691, %v688
        %v710 = vpack.c.b16 %v695, %v692
        %v711 = vpack.c.b16 %v696, %v693
        %v712 = vpack.c.b16 %v697, %v694
        %v713 = vpack.c.b16 %v701, %v698
        %v714 = vpack.c.b16 %v702, %v699
        %v715 = vpack.c.b16 %v703, %v700
        %v729 = vsel %vm576, %v647, 0
        %731 = vmatprep.subr.bf16.mxu0 0
        %732 = vmatpush1.bf16.msra.mxu0 0
        %733 = vmatprep.subr.bf16.mxu0 0
        %734 = vmatpush1.bf16.msra.mxu0 0
        %735 = vmatprep.subr.bf16.mxu0 0
        %736 = vmatpush1.bf16.msra.mxu0 0
        %737 = vmatprep.subr.bf16.mxu0 0
        %738 = vmatpush1.bf16.msra.mxu0 0
        %739 = vmatprep.subr.bf16.mxu0 %v714
        %740 = vmatpush1.bf16.msra.mxu0 %v713
        %741 = vmatprep.subr.bf16.mxu0 %v711
        %742 = vmatpush1.bf16.msra.mxu0 %v710
        %743 = vmatprep.subr.bf16.mxu0 %v708
        %744 = vmatpush1.bf16.msra.mxu0 %v707
        %745 = vmatprep.subr.bf16.mxu0 %v705
        %746 = vmatpush1.bf16.msra.mxu0 %v704
        %747 = vmatprep.subr.bf16.mxu0 0
        %748 = vmatpush2.bf16.msra.mxu0 0
        %749 = vmatprep.subr.bf16.mxu0 0
        %750 = vmatpush2.bf16.msra.mxu0 0
        %751 = vmatprep.subr.bf16.mxu0 0
        %752 = vmatpush2.bf16.msra.mxu0 0
        %753 = vmatprep.subr.bf16.mxu0 0
        %754 = vmatpush2.bf16.msra.mxu0 0
        %755 = vmatprep.subr.bf16.mxu0 0
        %756 = vmatpush2.bf16.msra.mxu0 0
        %757 = vmatprep.subr.bf16.mxu0 0
        %758 = vmatpush2.bf16.msra.mxu0 0
        %759 = vmatprep.subr.bf16.mxu0 0
        %760 = vmatpush2.bf16.msra.mxu0 0
        %761 = vmatprep.subr.bf16.mxu0 0
        %762 = vmatpush2.bf16.msra.mxu0 0
        %763 = vmatprep.mubr.bf16.mxu0 0
        %764 = vmatmul.mubr.bf16.gmra.mxu0 %v729
        %v765 = vpop.f32.mrf.mxu0
        %v766 = vadd.f32 0.0, %v765
        %v767 = vpop.f32.mrf.mxu0
        %v768 = vadd.f32 0.0, %v767
        %v769 = vpop.f32.mrf.mxu0
        %v770 = vadd.f32 0.0, %v769
        %v771 = vpop.f32.mrf.mxu0
        %v772 = vadd.f32 0.0, %v771
        %773 = vdwg.mxu0
        %774 = vmatprep.subr.bf16.mxu0 0
        %775 = vmatpush1.bf16.msra.mxu0 0
        %776 = vmatprep.subr.bf16.mxu0 0
        %777 = vmatpush1.bf16.msra.mxu0 0
        %778 = vmatprep.subr.bf16.mxu0 0
        %779 = vmatpush1.bf16.msra.mxu0 0
        %780 = vmatprep.subr.bf16.mxu0 0
        %781 = vmatpush1.bf16.msra.mxu0 0
        %782 = vmatprep.subr.bf16.mxu0 0
        %783 = vmatpush1.bf16.msra.mxu0 %v715
        %784 = vmatprep.subr.bf16.mxu0 0
        %785 = vmatpush1.bf16.msra.mxu0 %v712
        %786 = vmatprep.subr.bf16.mxu0 0
        %787 = vmatpush1.bf16.msra.mxu0 %v709
        %788 = vmatprep.subr.bf16.mxu0 0
        %789 = vmatpush1.bf16.msra.mxu0 %v706
        %790 = vmatprep.subr.bf16.mxu0 0
        %791 = vmatpush2.bf16.msra.mxu0 0
        %792 = vmatprep.subr.bf16.mxu0 0
        %793 = vmatpush2.bf16.msra.mxu0 0
        %794 = vmatprep.subr.bf16.mxu0 0
        %795 = vmatpush2.bf16.msra.mxu0 0
        %796 = vmatprep.subr.bf16.mxu0 0
        %797 = vmatpush2.bf16.msra.mxu0 0
        %798 = vmatprep.subr.bf16.mxu0 0
        %799 = vmatpush2.bf16.msra.mxu0 0
        %800 = vmatprep.subr.bf16.mxu0 0
        %801 = vmatpush2.bf16.msra.mxu0 0
        %802 = vmatprep.subr.bf16.mxu0 0
        %803 = vmatpush2.bf16.msra.mxu0 0
        %804 = vmatprep.subr.bf16.mxu0 0
        %805 = vmatpush2.bf16.msra.mxu0 0
        %806 = vmatprep.mubr.bf16.mxu0 0
        %807 = vmatmul.mubr.bf16.gmra.mxu0 %v729
        %v808 = vpop.f32.mrf.mxu0
        %v809 = vadd.f32 0.0, %v808
        %v810 = vpop.f32.mrf.mxu0
        %v811 = vpop.f32.mrf.mxu0
        %v812 = vadd.f32 0.0, %v811
        %v813 = vpop.f32.mrf.mxu0
        %814 = vdwg.mxu0
        %815 = vst [vmem:[#allocation6] sm:$0xff] %v768
        %816 = vst [vmem:[#allocation6 + $0x8] sm:$0xff] %v809
        %817 = vst [vmem:[#allocation6 + $0x10] sm:$0xff] %v772
        %818 = vst [vmem:[#allocation6 + $0x18] sm:$0xff] %v812
        %v819 = vpack.c.bf16 %v770, %v766
        %v820 = vld [vmem:[%s6] sm:$0xf]
        %v821 = vld [vmem:[%s6 + $0x4] sm:$0xf]
        %v822 = vld [vmem:[%s6 + $0x8] sm:$0xf]
        %v823 = vld [vmem:[%s6 + $0xc] sm:$0xf]
        %v824 = vld [vmem:[%s6 + $0x10] sm:$0xf]
        %v825 = vld [vmem:[%s6 + $0x14] sm:$0xf]
        %v826 = vld [vmem:[%s6 + $0x18] sm:$0xf]
        %v827 = vld [vmem:[%s6 + $0x1c] sm:$0xf]
        %v828 = vld [vmem:[%s6 + $0x20] sm:$0xf]
        %v829 = vld [vmem:[%s6 + $0x24] sm:$0xf]
        %v830 = vld [vmem:[%s6 + $0x28] sm:$0xf]
        %v831 = vld [vmem:[%s6 + $0x2c] sm:$0xf]
        %v832 = vld [vmem:[%s6 + $0x30] sm:$0xf]
        %v833 = vld [vmem:[%s6 + $0x34] sm:$0xf]
        %v834 = vld [vmem:[%s6 + $0x38] sm:$0xf]
        %v835 = vld [vmem:[%s6 + $0x3c] sm:$0xf]
        %v836 = vld [vmem:[#allocation14] sm:$0x1]
        %v838 = vlaneseq
        %v839 = vshrl.u32 %v838, 7
        %v840 = vsub.s32 0, %v839
        %v841 = vrot.slane %v836, %v840
        %v859 = vunpack.c.l.b16 %v820
        %v860 = vunpack.c.l.b16 %v821
        %v861 = vunpack.c.l.b16 %v822
        %v862 = vunpack.c.l.b16 %v823
        %v863 = vunpack.c.l.b16 %v824
        %v864 = vunpack.c.l.b16 %v825
        %v865 = vunpack.c.l.b16 %v826
        %v866 = vunpack.c.l.b16 %v827
        %v867 = vunpack.c.l.b16 %v828
        %v868 = vunpack.c.l.b16 %v829
        %v869 = vunpack.c.l.b16 %v830
        %v870 = vunpack.c.l.b16 %v831
        %v871 = vunpack.c.l.b16 %v832
        %v872 = vunpack.c.l.b16 %v833
        %v873 = vunpack.c.l.b16 %v834
        %v874 = vunpack.c.l.b16 %v835
        %v875 = vpack.c.b16 %v860, %v859
        %v876 = vpack.c.b16 %v862, %v861
        %v877 = vpack.c.b16 %v864, %v863
        %v878 = vpack.c.b16 %v866, %v865
        %v879 = vpack.c.b16 %v868, %v867
        %v880 = vpack.c.b16 %v870, %v869
        %v881 = vpack.c.b16 %v872, %v871
        %v882 = vpack.c.b16 %v874, %v873
        %891 = vmatprep.subr.bf16.mxu0 0
        %892 = vmatpush1.bf16.msra.mxu0 %v882
        %893 = vmatprep.subr.bf16.mxu0 0
        %894 = vmatpush1.bf16.msra.mxu0 %v881
        %895 = vmatprep.subr.bf16.mxu0 0
        %896 = vmatpush1.bf16.msra.mxu0 %v880
        %897 = vmatprep.subr.bf16.mxu0 0
        %898 = vmatpush1.bf16.msra.mxu0 %v879
        %899 = vmatprep.subr.bf16.mxu0 0
        %900 = vmatpush1.bf16.msra.mxu0 %v878
        %901 = vmatprep.subr.bf16.mxu0 0
        %902 = vmatpush1.bf16.msra.mxu0 %v877
        %903 = vmatprep.subr.bf16.mxu0 0
        %904 = vmatpush1.bf16.msra.mxu0 %v876
        %905 = vmatprep.subr.bf16.mxu0 0
        %906 = vmatpush1.bf16.msra.mxu0 %v875
        %907 = vmatprep.subr.bf16.mxu0 0
        %908 = vmatpush2.bf16.msra.mxu0 0
        %909 = vmatprep.subr.bf16.mxu0 0
        %910 = vmatpush2.bf16.msra.mxu0 0
        %911 = vmatprep.subr.bf16.mxu0 0
        %912 = vmatpush2.bf16.msra.mxu0 0
        %913 = vmatprep.subr.bf16.mxu0 0
        %914 = vmatpush2.bf16.msra.mxu0 0
        %915 = vmatprep.subr.bf16.mxu0 0
        %916 = vmatpush2.bf16.msra.mxu0 0
        %917 = vmatprep.subr.bf16.mxu0 0
        %918 = vmatpush2.bf16.msra.mxu0 0
        %919 = vmatprep.subr.bf16.mxu0 0
        %920 = vmatpush2.bf16.msra.mxu0 0
        %921 = vmatprep.subr.bf16.mxu0 0
        %922 = vmatpush2.bf16.msra.mxu0 0
        %923 = vmatprep.mubr.bf16.mxu0 0
        %924 = vmatmul.mubr.bf16.gmra.mxu0 %v819
        %v925 = vpop.f32.mrf.mxu0
        %v926 = vadd.f32 %v841, %v925
        %v927 = vpop.f32.mrf.mxu0
        %v928 = vpop.f32.mrf.mxu0
        %v929 = vadd.f32 %v841, %v928
        %v930 = vpop.f32.mrf.mxu0
        %931 = vdwg.mxu0
        %vm932 = vcmp.gt.f32.partialorder %v926, 20.0
        %vm933 = vcmp.gt.f32.partialorder %v929, 20.0
        %v934 = vmul.f32 %v926, 1.442695
        %v935 = vpow.pop %v934
        %v936 = vmul.f32 %v929, 1.442695
        %v937 = vpow.pop %v936
        %v938 = vadd.f32 %v935, 1.0
        %v939 = vadd.f32 %v937, 1.0
        %v940 = vlog2.pop %v938
        %v941 = vmul.f32 %v940, 0.6931472
        %v942 = vlog2.pop %v939
        %v943 = vmul.f32 %v942, 0.6931472
        %v944 = vsel %vm932, %v926, %v941
        %v945 = vsel %vm933, %v929, %v943
        %946 = vst.msk [vmem:[#allocation5] sm:$0xff] %vm576, %v944
        %947 = vst.msk [vmem:[#allocation5 + $0x8] sm:$0xff] %vm576, %v945
        %v948 = vmul.f32 %v944, %v640
        %v949 = vmul.f32 %v945, %v641
        %950 = vst.msk [vmem:[#allocation4] sm:$0xff] %vm576, %v948
        %951 = vst.msk [vmem:[#allocation4 + $0x8] sm:$0xff] %vm576, %v949
        %v952 = vld [vmem:[#allocation15] sm:$0xff]
        %v953 = vld [vmem:[#allocation15 + $0x8] sm:$0xff]
        %v954 = vmul.f32 %v952, 1.442695
        %v955 = vpow.pop %v954
        %v956 = vmul.f32 %v953, 1.442695
        %v957 = vpow.pop %v956
        %v958 = vsub.f32 0.0, %v955
        %v959 = vsub.f32 0.0, %v957
        %v960 = vld [vmem:[#allocation8] sm:$0xff]
        %v961 = vld [vmem:[#allocation8 + $0x8] sm:$0xff]
        %v962 = vld [vmem:[#allocation5] sm:$0xff]
        %v963 = vld [vmem:[#allocation4] sm:$0xff]
        %s964 = smul.u32 0, 2
        %s965 = smul.addr %s964, 8
        %s966 = scalar_lea.vmem [#allocation6], %s965
        %v967 = vld [vmem:[%s966] sm:$0xff]
        %v968 = vld [vmem:[%s966 + $0x8] sm:$0xff]
        %v970 = vcombine.high %v962, %v962
        %v972 = vunpack.c.l.s4 1966171168
        %v973 = vunpack.c.0.s8 %v972
        %v974 = vlaneseq
        %v975 = vshrl.u32 %v974, 7
        %v976 = vsub.s32 %v973, %v975
        %v977 = vrot.slane %v962, %v976
        %v979 = vunpack.c.l.s4 1966171168
        %v980 = vunpack.c.0.s8 %v979
        %v981 = vlaneseq
        %v982 = vshrl.u32 %v981, 7
        %v983 = vsub.s32 %v980, %v982
        %v984 = vrot.slane %v970, %v983
        %v985 = vcombine.high %v977, %v977
        %v986 = vcombine.high %v984, %v984
        %v988 = vunpack.c.l.s4 1966171168
        %v989 = vunpack.c.0.s8 %v988
        %v990 = vlaneseq
        %v991 = vshrl.u32 %v990, 7
        %v992 = vsub.s32 %v989, %v991
        %v993 = vrot.slane %v977, %v992
        %v995 = vunpack.c.l.s4 1966171168
        %v996 = vunpack.c.0.s8 %v995
        %v997 = vlaneseq
        %v998 = vshrl.u32 %v997, 7
        %v999 = vsub.s32 %v996, %v998
        %v1000 = vrot.slane %v984, %v999
        %v1002 = vunpack.c.l.s4 1966171168
        %v1003 = vunpack.c.0.s8 %v1002
        %v1004 = vlaneseq
        %v1005 = vshrl.u32 %v1004, 7
        %v1006 = vsub.s32 %v1003, %v1005
        %v1007 = vrot.slane %v985, %v1006
        %v1009 = vunpack.c.l.s4 1966171168
        %v1010 = vunpack.c.0.s8 %v1009
        %v1011 = vlaneseq
        %v1012 = vshrl.u32 %v1011, 7
        %v1013 = vsub.s32 %v1010, %v1012
        %v1014 = vrot.slane %v986, %v1013
        %v1015 = vcombine.high %v993, %v993
        %v1016 = vcombine.high %v1000, %v1000
        %v1017 = vcombine.high %v1007, %v1007
        %v1018 = vcombine.high %v1014, %v1014
        %v1019 = vlaneseq
        %v1020 = vshrl.u32 %v1019, 7
        %v1021 = vsub.s32 0, %v1020
        %v1022 = vrot.slane %v993, %v1021
        %v1023 = vlaneseq
        %v1024 = vshrl.u32 %v1023, 7
        %v1025 = vsub.s32 0, %v1024
        %v1026 = vrot.slane %v1007, %v1025
        %v1027 = vlaneseq
        %v1028 = vshrl.u32 %v1027, 7
        %v1029 = vsub.s32 0, %v1028
        %v1030 = vrot.slane %v1015, %v1029
        %v1031 = vlaneseq
        %v1032 = vshrl.u32 %v1031, 7
        %v1033 = vsub.s32 0, %v1032
        %v1034 = vrot.slane %v1017, %v1033
        %v1035 = vlaneseq
        %v1036 = vshrl.u32 %v1035, 7
        %v1037 = vsub.s32 0, %v1036
        %v1038 = vrot.slane %v1000, %v1037
        %v1039 = vlaneseq
        %v1040 = vshrl.u32 %v1039, 7
        %v1041 = vsub.s32 0, %v1040
        %v1042 = vrot.slane %v1014, %v1041
        %v1043 = vlaneseq
        %v1044 = vshrl.u32 %v1043, 7
        %v1045 = vsub.s32 0, %v1044
        %v1046 = vrot.slane %v1016, %v1045
        %v1047 = vlaneseq
        %v1048 = vshrl.u32 %v1047, 7
        %v1049 = vsub.s32 0, %v1048
        %v1050 = vrot.slane %v1018, %v1049
        %v1059 = vmul.f32 %v1022, %v958
        %v1060 = vmul.f32 %v1022, %v959
        %v1061 = vmul.f32 %v1026, %v958
        %v1062 = vmul.f32 %v1026, %v959
        %v1063 = vmul.f32 %v1030, %v958
        %v1064 = vmul.f32 %v1030, %v959
        %v1065 = vmul.f32 %v1034, %v958
        %v1066 = vmul.f32 %v1034, %v959
        %v1067 = vmul.f32 %v1038, %v958
        %v1068 = vmul.f32 %v1038, %v959
        %v1069 = vmul.f32 %v1042, %v958
        %v1070 = vmul.f32 %v1042, %v959
        %v1071 = vmul.f32 %v1046, %v958
        %v1072 = vmul.f32 %v1046, %v959
        %v1073 = vmul.f32 %v1050, %v958
        %v1074 = vmul.f32 %v1050, %v959
        %v1075 = vmul.f32 %v1059, 1.442695
        %v1076 = vpow.pop %v1075
        %v1077 = vmul.f32 %v1060, 1.442695
        %v1078 = vpow.pop %v1077
        %v1079 = vmul.f32 %v1061, 1.442695
        %v1080 = vpow.pop %v1079
        %v1081 = vmul.f32 %v1062, 1.442695
        %v1082 = vpow.pop %v1081
        %v1083 = vmul.f32 %v1063, 1.442695
        %v1084 = vpow.pop %v1083
        %v1085 = vmul.f32 %v1064, 1.442695
        %v1086 = vpow.pop %v1085
        %v1087 = vmul.f32 %v1065, 1.442695
        %v1088 = vpow.pop %v1087
        %v1089 = vmul.f32 %v1066, 1.442695
        %v1090 = vpow.pop %v1089
        %v1091 = vmul.f32 %v1067, 1.442695
        %v1092 = vpow.pop %v1091
        %v1093 = vmul.f32 %v1068, 1.442695
        %v1094 = vpow.pop %v1093
        %v1095 = vmul.f32 %v1069, 1.442695
        %v1096 = vpow.pop %v1095
        %v1097 = vmul.f32 %v1070, 1.442695
        %v1098 = vpow.pop %v1097
        %v1099 = vmul.f32 %v1071, 1.442695
        %v1100 = vpow.pop %v1099
        %v1101 = vmul.f32 %v1072, 1.442695
        %v1102 = vpow.pop %v1101
        %v1103 = vmul.f32 %v1073, 1.442695
        %v1104 = vpow.pop %v1103
        %v1105 = vmul.f32 %v1074, 1.442695
        %v1106 = vpow.pop %v1105
        %v1107 = vlaneseq
        %v1108 = vshrl.u32 %v1107, 7
        %v1109 = vsub.s32 0, %v1108
        %v1110 = vrot.slane %v967, %v1109
        %1112 = vbcast.lane.b32.xlu0 %v1110, 256
        %v1113 = vpop.permute.xlu0 %1112
        %s1115 = sor.u32 256, 8
        %1116 = vbcast.lane.b32.xlu0 %v1110, %s1115
        %v1117 = vpop.permute.xlu0 %1116
        %v1118 = vlaneseq
        %v1119 = vshrl.u32 %v1118, 7
        %v1120 = vsub.s32 1, %v1119
        %v1121 = vrot.slane %v967, %v1120
        %1123 = vbcast.lane.b32.xlu0 %v1121, 256
        %v1124 = vpop.permute.xlu0 %1123
        %s1126 = sor.u32 256, 8
        %1127 = vbcast.lane.b32.xlu0 %v1121, %s1126
        %v1128 = vpop.permute.xlu0 %1127
        %v1129 = vlaneseq
        %v1130 = vshrl.u32 %v1129, 7
        %v1131 = vsub.s32 2, %v1130
        %v1132 = vrot.slane %v967, %v1131
        %1134 = vbcast.lane.b32.xlu0 %v1132, 256
        %v1135 = vpop.permute.xlu0 %1134
        %s1137 = sor.u32 256, 8
        %1138 = vbcast.lane.b32.xlu0 %v1132, %s1137
        %v1139 = vpop.permute.xlu0 %1138
        %v1140 = vlaneseq
        %v1141 = vshrl.u32 %v1140, 7
        %v1142 = vsub.s32 3, %v1141
        %v1143 = vrot.slane %v967, %v1142
        %1145 = vbcast.lane.b32.xlu0 %v1143, 256
        %v1146 = vpop.permute.xlu0 %1145
        %s1148 = sor.u32 256, 8
        %1149 = vbcast.lane.b32.xlu0 %v1143, %s1148
        %v1150 = vpop.permute.xlu0 %1149
        %v1151 = vlaneseq
        %v1152 = vshrl.u32 %v1151, 7
        %v1153 = vsub.s32 4, %v1152
        %v1154 = vrot.slane %v967, %v1153
        %1156 = vbcast.lane.b32.xlu0 %v1154, 256
        %v1157 = vpop.permute.xlu0 %1156
        %s1159 = sor.u32 256, 8
        %1160 = vbcast.lane.b32.xlu0 %v1154, %s1159
        %v1161 = vpop.permute.xlu0 %1160
        %v1162 = vlaneseq
        %v1163 = vshrl.u32 %v1162, 7
        %v1164 = vsub.s32 5, %v1163
        %v1165 = vrot.slane %v967, %v1164
        %1167 = vbcast.lane.b32.xlu0 %v1165, 256
        %v1168 = vpop.permute.xlu0 %1167
        %s1170 = sor.u32 256, 8
        %1171 = vbcast.lane.b32.xlu0 %v1165, %s1170
        %v1172 = vpop.permute.xlu0 %1171
        %v1173 = vlaneseq
        %v1174 = vshrl.u32 %v1173, 7
        %v1175 = vsub.s32 6, %v1174
        %v1176 = vrot.slane %v967, %v1175
        %1178 = vbcast.lane.b32.xlu0 %v1176, 256
        %v1179 = vpop.permute.xlu0 %1178
        %s1181 = sor.u32 256, 8
        %1182 = vbcast.lane.b32.xlu0 %v1176, %s1181
        %v1183 = vpop.permute.xlu0 %1182
        %v1184 = vlaneseq
        %v1185 = vshrl.u32 %v1184, 7
        %v1186 = vsub.s32 7, %v1185
        %v1187 = vrot.slane %v967, %v1186
        %1189 = vbcast.lane.b32.xlu0 %v1187, 256
        %v1190 = vpop.permute.xlu0 %1189
        %s1192 = sor.u32 256, 8
        %1193 = vbcast.lane.b32.xlu0 %v1187, %s1192
        %v1194 = vpop.permute.xlu0 %1193
        %v1196 = vcombine.high %v963, %v963
        %v1198 = vunpack.c.l.s4 1966171168
        %v1199 = vunpack.c.0.s8 %v1198
        %v1200 = vlaneseq
        %v1201 = vshrl.u32 %v1200, 7
        %v1202 = vsub.s32 %v1199, %v1201
        %v1203 = vrot.slane %v963, %v1202
        %v1205 = vunpack.c.l.s4 1966171168
        %v1206 = vunpack.c.0.s8 %v1205
        %v1207 = vlaneseq
        %v1208 = vshrl.u32 %v1207, 7
        %v1209 = vsub.s32 %v1206, %v1208
        %v1210 = vrot.slane %v1196, %v1209
        %v1211 = vcombine.high %v1203, %v1203
        %v1212 = vcombine.high %v1210, %v1210
        %v1214 = vunpack.c.l.s4 1966171168
        %v1215 = vunpack.c.0.s8 %v1214
        %v1216 = vlaneseq
        %v1217 = vshrl.u32 %v1216, 7
        %v1218 = vsub.s32 %v1215, %v1217
        %v1219 = vrot.slane %v1203, %v1218
        %v1221 = vunpack.c.l.s4 1966171168
        %v1222 = vunpack.c.0.s8 %v1221
        %v1223 = vlaneseq
        %v1224 = vshrl.u32 %v1223, 7
        %v1225 = vsub.s32 %v1222, %v1224
        %v1226 = vrot.slane %v1210, %v1225
        %v1228 = vunpack.c.l.s4 1966171168
        %v1229 = vunpack.c.0.s8 %v1228
        %v1230 = vlaneseq
        %v1231 = vshrl.u32 %v1230, 7
        %v1232 = vsub.s32 %v1229, %v1231
        %v1233 = vrot.slane %v1211, %v1232
        %v1235 = vunpack.c.l.s4 1966171168
        %v1236 = vunpack.c.0.s8 %v1235
        %v1237 = vlaneseq
        %v1238 = vshrl.u32 %v1237, 7
        %v1239 = vsub.s32 %v1236, %v1238
        %v1240 = vrot.slane %v1212, %v1239
        %v1241 = vcombine.high %v1219, %v1219
        %v1242 = vcombine.high %v1226, %v1226
        %v1243 = vcombine.high %v1233, %v1233
        %v1244 = vcombine.high %v1240, %v1240
        %v1245 = vlaneseq
        %v1246 = vshrl.u32 %v1245, 7
        %v1247 = vsub.s32 0, %v1246
        %v1248 = vrot.slane %v1219, %v1247
        %v1249 = vlaneseq
        %v1250 = vshrl.u32 %v1249, 7
        %v1251 = vsub.s32 0, %v1250
        %v1252 = vrot.slane %v1233, %v1251
        %v1253 = vlaneseq
        %v1254 = vshrl.u32 %v1253, 7
        %v1255 = vsub.s32 0, %v1254
        %v1256 = vrot.slane %v1241, %v1255
        %v1257 = vlaneseq
        %v1258 = vshrl.u32 %v1257, 7
        %v1259 = vsub.s32 0, %v1258
        %v1260 = vrot.slane %v1243, %v1259
        %v1261 = vlaneseq
        %v1262 = vshrl.u32 %v1261, 7
        %v1263 = vsub.s32 0, %v1262
        %v1264 = vrot.slane %v1226, %v1263
        %v1265 = vlaneseq
        %v1266 = vshrl.u32 %v1265, 7
        %v1267 = vsub.s32 0, %v1266
        %v1268 = vrot.slane %v1240, %v1267
        %v1269 = vlaneseq
        %v1270 = vshrl.u32 %v1269, 7
        %v1271 = vsub.s32 0, %v1270
        %v1272 = vrot.slane %v1242, %v1271
        %v1273 = vlaneseq
        %v1274 = vshrl.u32 %v1273, 7
        %v1275 = vsub.s32 0, %v1274
        %v1276 = vrot.slane %v1244, %v1275
        %v1285 = vmul.f32 %v1113, %v1248
        %v1286 = vmul.f32 %v1117, %v1248
        %v1287 = vmul.f32 %v1124, %v1252
        %v1288 = vmul.f32 %v1128, %v1252
        %v1289 = vmul.f32 %v1135, %v1256
        %v1290 = vmul.f32 %v1139, %v1256
        %v1291 = vmul.f32 %v1146, %v1260
        %v1292 = vmul.f32 %v1150, %v1260
        %v1293 = vmul.f32 %v1157, %v1264
        %v1294 = vmul.f32 %v1161, %v1264
        %v1295 = vmul.f32 %v1168, %v1268
        %v1296 = vmul.f32 %v1172, %v1268
        %v1297 = vmul.f32 %v1179, %v1272
        %v1298 = vmul.f32 %v1183, %v1272
        %v1299 = vmul.f32 %v1190, %v1276
        %v1300 = vmul.f32 %v1194, %v1276
        %v1301 = vlaneseq
        %v1302 = vshrl.u32 %v1301, 7
        %v1303 = vsub.s32 0, %v1302
        %v1304 = vrot.slane %v968, %v1303
        %1306 = vbcast.lane.b32.xlu0 %v1304, 256
        %v1307 = vpop.permute.xlu0 %1306
        %s1309 = sor.u32 256, 8
        %1310 = vbcast.lane.b32.xlu0 %v1304, %s1309
        %v1311 = vpop.permute.xlu0 %1310
        %v1312 = vlaneseq
        %v1313 = vshrl.u32 %v1312, 7
        %v1314 = vsub.s32 1, %v1313
        %v1315 = vrot.slane %v968, %v1314
        %1317 = vbcast.lane.b32.xlu0 %v1315, 256
        %v1318 = vpop.permute.xlu0 %1317
        %s1320 = sor.u32 256, 8
        %1321 = vbcast.lane.b32.xlu0 %v1315, %s1320
        %v1322 = vpop.permute.xlu0 %1321
        %v1323 = vlaneseq
        %v1324 = vshrl.u32 %v1323, 7
        %v1325 = vsub.s32 2, %v1324
        %v1326 = vrot.slane %v968, %v1325
        %1328 = vbcast.lane.b32.xlu0 %v1326, 256
        %v1329 = vpop.permute.xlu0 %1328
        %s1331 = sor.u32 256, 8
        %1332 = vbcast.lane.b32.xlu0 %v1326, %s1331
        %v1333 = vpop.permute.xlu0 %1332
        %v1334 = vlaneseq
        %v1335 = vshrl.u32 %v1334, 7
        %v1336 = vsub.s32 3, %v1335
        %v1337 = vrot.slane %v968, %v1336
        %1339 = vbcast.lane.b32.xlu0 %v1337, 256
        %v1340 = vpop.permute.xlu0 %1339
        %s1342 = sor.u32 256, 8
        %1343 = vbcast.lane.b32.xlu0 %v1337, %s1342
        %v1344 = vpop.permute.xlu0 %1343
        %v1345 = vlaneseq
        %v1346 = vshrl.u32 %v1345, 7
        %v1347 = vsub.s32 4, %v1346
        %v1348 = vrot.slane %v968, %v1347
        %1350 = vbcast.lane.b32.xlu0 %v1348, 256
        %v1351 = vpop.permute.xlu0 %1350
        %s1353 = sor.u32 256, 8
        %1354 = vbcast.lane.b32.xlu0 %v1348, %s1353
        %v1355 = vpop.permute.xlu0 %1354
        %v1356 = vlaneseq
        %v1357 = vshrl.u32 %v1356, 7
        %v1358 = vsub.s32 5, %v1357
        %v1359 = vrot.slane %v968, %v1358
        %1361 = vbcast.lane.b32.xlu0 %v1359, 256
        %v1362 = vpop.permute.xlu0 %1361
        %s1364 = sor.u32 256, 8
        %1365 = vbcast.lane.b32.xlu0 %v1359, %s1364
        %v1366 = vpop.permute.xlu0 %1365
        %v1367 = vlaneseq
        %v1368 = vshrl.u32 %v1367, 7
        %v1369 = vsub.s32 6, %v1368
        %v1370 = vrot.slane %v968, %v1369
        %1372 = vbcast.lane.b32.xlu0 %v1370, 256
        %v1373 = vpop.permute.xlu0 %1372
        %s1375 = sor.u32 256, 8
        %1376 = vbcast.lane.b32.xlu0 %v1370, %s1375
        %v1377 = vpop.permute.xlu0 %1376
        %v1378 = vlaneseq
        %v1379 = vshrl.u32 %v1378, 7
        %v1380 = vsub.s32 7, %v1379
        %v1381 = vrot.slane %v968, %v1380
        %1383 = vbcast.lane.b32.xlu0 %v1381, 256
        %v1384 = vpop.permute.xlu0 %1383
        %s1386 = sor.u32 256, 8
        %1387 = vbcast.lane.b32.xlu0 %v1381, %s1386
        %v1388 = vpop.permute.xlu0 %1387
        %v1389 = vmul.f32 %v1076, %v960
        %v1390 = vmul.f32 %v1078, %v961
        %v1391 = vadd.f32 %v1389, %v1285
        %v1392 = vadd.f32 %v1390, %v1286
        %v1393 = vmul.f32 %v1391, %v1307
        %v1394 = vmul.f32 %v1392, %v1311
        %v1395 = vsel %vm576, %v1393, 0.0
        %v1396 = vsel %vm576, %v1394, 0.0
        %v1397 = vadd.f32 %v1395, %v1396
        %v1398 = vrot.slane %v1397, 4
        %v1399 = vadd.f32 %v1397, %v1398
        %v1400 = vrot.slane %v1399, 2
        %v1401 = vadd.f32 %v1399, %v1400
        %v1402 = vrot.slane %v1401, 1
        %v1403 = vadd.f32 %v1401, %v1402
        %v1404 = vmul.f32 %v1080, %v1391
        %v1405 = vmul.f32 %v1082, %v1392
        %v1406 = vadd.f32 %v1404, %v1287
        %v1407 = vadd.f32 %v1405, %v1288
        %v1408 = vmul.f32 %v1406, %v1318
        %v1409 = vmul.f32 %v1407, %v1322
        %v1410 = vsel %vm576, %v1408, 0.0
        %v1411 = vsel %vm576, %v1409, 0.0
        %v1412 = vadd.f32 %v1410, %v1411
        %v1413 = vrot.slane %v1412, 4
        %v1414 = vadd.f32 %v1412, %v1413
        %v1415 = vrot.slane %v1414, 2
        %v1416 = vadd.f32 %v1414, %v1415
        %v1417 = vrot.slane %v1416, 1
        %v1418 = vadd.f32 %v1416, %v1417
        %v1419 = vmul.f32 %v1084, %v1406
        %v1420 = vmul.f32 %v1086, %v1407
        %v1421 = vadd.f32 %v1419, %v1289
        %v1422 = vadd.f32 %v1420, %v1290
        %v1423 = vmul.f32 %v1421, %v1329
        %v1424 = vmul.f32 %v1422, %v1333
        %v1425 = vsel %vm576, %v1423, 0.0
        %v1426 = vsel %vm576, %v1424, 0.0
        %v1427 = vadd.f32 %v1425, %v1426
        %v1428 = vrot.slane %v1427, 4
        %v1429 = vadd.f32 %v1427, %v1428
        %v1430 = vrot.slane %v1429, 2
        %v1431 = vadd.f32 %v1429, %v1430
        %v1432 = vrot.slane %v1431, 1
        %v1433 = vadd.f32 %v1431, %v1432
        %v1434 = vmul.f32 %v1088, %v1421
        %v1435 = vmul.f32 %v1090, %v1422
        %v1436 = vadd.f32 %v1434, %v1291
        %v1437 = vadd.f32 %v1435, %v1292
        %v1438 = vmul.f32 %v1436, %v1340
        %v1439 = vmul.f32 %v1437, %v1344
        %v1440 = vsel %vm576, %v1438, 0.0
        %v1441 = vsel %vm576, %v1439, 0.0
        %v1442 = vadd.f32 %v1440, %v1441
        %v1443 = vrot.slane %v1442, 4
        %v1444 = vadd.f32 %v1442, %v1443
        %v1445 = vrot.slane %v1444, 2
        %v1446 = vadd.f32 %v1444, %v1445
        %v1447 = vrot.slane %v1446, 1
        %v1448 = vadd.f32 %v1446, %v1447
        %v1449 = vmul.f32 %v1092, %v1436
        %v1450 = vmul.f32 %v1094, %v1437
        %v1451 = vadd.f32 %v1449, %v1293
        %v1452 = vadd.f32 %v1450, %v1294
        %v1453 = vmul.f32 %v1451, %v1351
        %v1454 = vmul.f32 %v1452, %v1355
        %v1455 = vsel %vm576, %v1453, 0.0
        %v1456 = vsel %vm576, %v1454, 0.0
        %v1457 = vadd.f32 %v1455, %v1456
        %v1458 = vrot.slane %v1457, 4
        %v1459 = vadd.f32 %v1457, %v1458
        %v1460 = vrot.slane %v1459, 2
        %v1461 = vadd.f32 %v1459, %v1460
        %v1462 = vrot.slane %v1461, 1
        %v1463 = vadd.f32 %v1461, %v1462
        %v1464 = vmul.f32 %v1096, %v1451
        %v1465 = vmul.f32 %v1098, %v1452
        %v1466 = vadd.f32 %v1464, %v1295
        %v1467 = vadd.f32 %v1465, %v1296
        %v1468 = vmul.f32 %v1466, %v1362
        %v1469 = vmul.f32 %v1467, %v1366
        %v1470 = vsel %vm576, %v1468, 0.0
        %v1471 = vsel %vm576, %v1469, 0.0
        %v1472 = vadd.f32 %v1470, %v1471
        %v1473 = vrot.slane %v1472, 4
        %v1474 = vadd.f32 %v1472, %v1473
        %v1475 = vrot.slane %v1474, 2
        %v1476 = vadd.f32 %v1474, %v1475
        %v1477 = vrot.slane %v1476, 1
        %v1478 = vadd.f32 %v1476, %v1477
        %v1479 = vmul.f32 %v1100, %v1466
        %v1480 = vmul.f32 %v1102, %v1467
        %v1481 = vadd.f32 %v1479, %v1297
        %v1482 = vadd.f32 %v1480, %v1298
        %v1483 = vmul.f32 %v1481, %v1373
        %v1484 = vmul.f32 %v1482, %v1377
        %v1485 = vsel %vm576, %v1483, 0.0
        %v1486 = vsel %vm576, %v1484, 0.0
        %v1487 = vadd.f32 %v1485, %v1486
        %v1488 = vrot.slane %v1487, 4
        %v1489 = vadd.f32 %v1487, %v1488
        %v1490 = vrot.slane %v1489, 2
        %v1491 = vadd.f32 %v1489, %v1490
        %v1492 = vrot.slane %v1491, 1
        %v1493 = vadd.f32 %v1491, %v1492
        %v1494 = vmul.f32 %v1104, %v1481
        %v1495 = vmul.f32 %v1106, %v1482
        %v1496 = vadd.f32 %v1494, %v1299
        %v1497 = vadd.f32 %v1495, %v1300
        %v1498 = vmul.f32 %v1496, %v1384
        %v1499 = vmul.f32 %v1497, %v1388
        %v1500 = vsel %vm576, %v1498, 0.0
        %v1501 = vsel %vm576, %v1499, 0.0
        %v1502 = vadd.f32 %v1500, %v1501
        %v1503 = vrot.slane %v1502, 4
        %v1504 = vadd.f32 %v1502, %v1503
        %v1505 = vrot.slane %v1504, 2
        %v1506 = vadd.f32 %v1504, %v1505
        %v1507 = vrot.slane %v1506, 1
        %v1508 = vadd.f32 %v1506, %v1507
        %vm1509 = vcmask 1040384
        %v1510 = vsel %vm1509, %v1403, %v1418
        %vm1511 = vcmask 1041408
        %v1512 = vsel %vm1511, %v1510, %v1433
        %vm1513 = vcmask 1042432
        %v1514 = vsel %vm1513, %v1512, %v1448
        %vm1515 = vcmask 1043456
        %v1516 = vsel %vm1515, %v1514, %v1463
        %vm1517 = vcmask 1044480
        %v1518 = vsel %vm1517, %v1516, %v1478
        %vm1519 = vcmask 1045504
        %v1520 = vsel %vm1519, %v1518, %v1493
        %vm1521 = vcmask 1046528
        %v1522 = vsel %vm1521, %v1520, %v1508
        %1523 = vst.msk [vmem:[#allocation7] sm:$0xff] %vm576, %v1522
        %s1524 = scalar_lea.vmem [#allocation5], 8
        %v1525 = vld [vmem:[%s1524] sm:$0xff]
        %s1526 = scalar_lea.vmem [#allocation4], 8
        %v1527 = vld [vmem:[%s1526] sm:$0xff]
        %s1528 = smul.u32 1, 2
        %s1529 = smul.addr %s1528, 8
        %s1530 = scalar_lea.vmem [#allocation6], %s1529
        %v1531 = vld [vmem:[%s1530] sm:$0xff]
        %v1532 = vld [vmem:[%s1530 + $0x8] sm:$0xff]
        %v1534 = vcombine.high %v1525, %v1525
        %v1536 = vunpack.c.l.s4 1966171168
        %v1537 = vunpack.c.0.s8 %v1536
        %v1538 = vlaneseq
        %v1539 = vshrl.u32 %v1538, 7
        %v1540 = vsub.s32 %v1537, %v1539
        %v1541 = vrot.slane %v1525, %v1540
        %v1543 = vunpack.c.l.s4 1966171168
        %v1544 = vunpack.c.0.s8 %v1543
        %v1545 = vlaneseq
        %v1546 = vshrl.u32 %v1545, 7
        %v1547 = vsub.s32 %v1544, %v1546
        %v1548 = vrot.slane %v1534, %v1547
        %v1549 = vcombine.high %v1541, %v1541
        %v1550 = vcombine.high %v1548, %v1548
        %v1552 = vunpack.c.l.s4 1966171168
        %v1553 = vunpack.c.0.s8 %v1552
        %v1554 = vlaneseq
        %v1555 = vshrl.u32 %v1554, 7
        %v1556 = vsub.s32 %v1553, %v1555
        %v1557 = vrot.slane %v1541, %v1556
        %v1559 = vunpack.c.l.s4 1966171168
        %v1560 = vunpack.c.0.s8 %v1559
        %v1561 = vlaneseq
        %v1562 = vshrl.u32 %v1561, 7
        %v1563 = vsub.s32 %v1560, %v1562
        %v1564 = vrot.slane %v1548, %v1563
        %v1566 = vunpack.c.l.s4 1966171168
        %v1567 = vunpack.c.0.s8 %v1566
        %v1568 = vlaneseq
        %v1569 = vshrl.u32 %v1568, 7
        %v1570 = vsub.s32 %v1567, %v1569
        %v1571 = vrot.slane %v1549, %v1570
        %v1573 = vunpack.c.l.s4 1966171168
        %v1574 = vunpack.c.0.s8 %v1573
        %v1575 = vlaneseq
        %v1576 = vshrl.u32 %v1575, 7
        %v1577 = vsub.s32 %v1574, %v1576
        %v1578 = vrot.slane %v1550, %v1577
        %v1579 = vcombine.high %v1557, %v1557
        %v1580 = vcombine.high %v1564, %v1564
        %v1581 = vcombine.high %v1571, %v1571
        %v1582 = vcombine.high %v1578, %v1578
        %v1583 = vlaneseq
        %v1584 = vshrl.u32 %v1583, 7
        %v1585 = vsub.s32 0, %v1584
        %v1586 = vrot.slane %v1557, %v1585
        %v1587 = vlaneseq
        %v1588 = vshrl.u32 %v1587, 7
        %v1589 = vsub.s32 0, %v1588
        %v1590 = vrot.slane %v1571, %v1589
        %v1591 = vlaneseq
        %v1592 = vshrl.u32 %v1591, 7
        %v1593 = vsub.s32 0, %v1592
        %v1594 = vrot.slane %v1579, %v1593
        %v1595 = vlaneseq
        %v1596 = vshrl.u32 %v1595, 7
        %v1597 = vsub.s32 0, %v1596
        %v1598 = vrot.slane %v1581, %v1597
        %v1599 = vlaneseq
        %v1600 = vshrl.u32 %v1599, 7
        %v1601 = vsub.s32 0, %v1600
        %v1602 = vrot.slane %v1564, %v1601
        %v1603 = vlaneseq
        %v1604 = vshrl.u32 %v1603, 7
        %v1605 = vsub.s32 0, %v1604
        %v1606 = vrot.slane %v1578, %v1605
        %v1607 = vlaneseq
        %v1608 = vshrl.u32 %v1607, 7
        %v1609 = vsub.s32 0, %v1608
        %v1610 = vrot.slane %v1580, %v1609
        %v1611 = vlaneseq
        %v1612 = vshrl.u32 %v1611, 7
        %v1613 = vsub.s32 0, %v1612
        %v1614 = vrot.slane %v1582, %v1613
        %v1623 = vmul.f32 %v1586, %v958
        %v1624 = vmul.f32 %v1586, %v959
        %v1625 = vmul.f32 %v1590, %v958
        %v1626 = vmul.f32 %v1590, %v959
        %v1627 = vmul.f32 %v1594, %v958
        %v1628 = vmul.f32 %v1594, %v959
        %v1629 = vmul.f32 %v1598, %v958
        %v1630 = vmul.f32 %v1598, %v959
        %v1631 = vmul.f32 %v1602, %v958
        %v1632 = vmul.f32 %v1602, %v959
        %v1633 = vmul.f32 %v1606, %v958
        %v1634 = vmul.f32 %v1606, %v959
        %v1635 = vmul.f32 %v1610, %v958
        %v1636 = vmul.f32 %v1610, %v959
        %v1637 = vmul.f32 %v1614, %v958
        %v1638 = vmul.f32 %v1614, %v959
        %v1639 = vmul.f32 %v1623, 1.442695
        %v1640 = vpow.pop %v1639
        %v1641 = vmul.f32 %v1624, 1.442695
        %v1642 = vpow.pop %v1641
        %v1643 = vmul.f32 %v1625, 1.442695
        %v1644 = vpow.pop %v1643
        %v1645 = vmul.f32 %v1626, 1.442695
        %v1646 = vpow.pop %v1645
        %v1647 = vmul.f32 %v1627, 1.442695
        %v1648 = vpow.pop %v1647
        %v1649 = vmul.f32 %v1628, 1.442695
        %v1650 = vpow.pop %v1649
        %v1651 = vmul.f32 %v1629, 1.442695
        %v1652 = vpow.pop %v1651
        %v1653 = vmul.f32 %v1630, 1.442695
        %v1654 = vpow.pop %v1653
        %v1655 = vmul.f32 %v1631, 1.442695
        %v1656 = vpow.pop %v1655
        %v1657 = vmul.f32 %v1632, 1.442695
        %v1658 = vpow.pop %v1657
        %v1659 = vmul.f32 %v1633, 1.442695
        %v1660 = vpow.pop %v1659
        %v1661 = vmul.f32 %v1634, 1.442695
        %v1662 = vpow.pop %v1661
        %v1663 = vmul.f32 %v1635, 1.442695
        %v1664 = vpow.pop %v1663
        %v1665 = vmul.f32 %v1636, 1.442695
        %v1666 = vpow.pop %v1665
        %v1667 = vmul.f32 %v1637, 1.442695
        %v1668 = vpow.pop %v1667
        %v1669 = vmul.f32 %v1638, 1.442695
        %v1670 = vpow.pop %v1669
        %v1671 = vlaneseq
        %v1672 = vshrl.u32 %v1671, 7
        %v1673 = vsub.s32 0, %v1672
        %v1674 = vrot.slane %v1531, %v1673
        %1676 = vbcast.lane.b32.xlu0 %v1674, 256
        %v1677 = vpop.permute.xlu0 %1676
        %s1679 = sor.u32 256, 8
        %1680 = vbcast.lane.b32.xlu0 %v1674, %s1679
        %v1681 = vpop.permute.xlu0 %1680
        %v1682 = vlaneseq
        %v1683 = vshrl.u32 %v1682, 7
        %v1684 = vsub.s32 1, %v1683
        %v1685 = vrot.slane %v1531, %v1684
        %1687 = vbcast.lane.b32.xlu0 %v1685, 256
        %v1688 = vpop.permute.xlu0 %1687
        %s1690 = sor.u32 256, 8
        %1691 = vbcast.lane.b32.xlu0 %v1685, %s1690
        %v1692 = vpop.permute.xlu0 %1691
        %v1693 = vlaneseq
        %v1694 = vshrl.u32 %v1693, 7
        %v1695 = vsub.s32 2, %v1694
        %v1696 = vrot.slane %v1531, %v1695
        %1698 = vbcast.lane.b32.xlu0 %v1696, 256
        %v1699 = vpop.permute.xlu0 %1698
        %s1701 = sor.u32 256, 8
        %1702 = vbcast.lane.b32.xlu0 %v1696, %s1701
        %v1703 = vpop.permute.xlu0 %1702
        %v1704 = vlaneseq
        %v1705 = vshrl.u32 %v1704, 7
        %v1706 = vsub.s32 3, %v1705
        %v1707 = vrot.slane %v1531, %v1706
        %1709 = vbcast.lane.b32.xlu0 %v1707, 256
        %v1710 = vpop.permute.xlu0 %1709
        %s1712 = sor.u32 256, 8
        %1713 = vbcast.lane.b32.xlu0 %v1707, %s1712
        %v1714 = vpop.permute.xlu0 %1713
        %v1715 = vlaneseq
        %v1716 = vshrl.u32 %v1715, 7
        %v1717 = vsub.s32 4, %v1716
        %v1718 = vrot.slane %v1531, %v1717
        %1720 = vbcast.lane.b32.xlu0 %v1718, 256
        %v1721 = vpop.permute.xlu0 %1720
        %s1723 = sor.u32 256, 8
        %1724 = vbcast.lane.b32.xlu0 %v1718, %s1723
        %v1725 = vpop.permute.xlu0 %1724
        %v1726 = vlaneseq
        %v1727 = vshrl.u32 %v1726, 7
        %v1728 = vsub.s32 5, %v1727
        %v1729 = vrot.slane %v1531, %v1728
        %1731 = vbcast.lane.b32.xlu0 %v1729, 256
        %v1732 = vpop.permute.xlu0 %1731
        %s1734 = sor.u32 256, 8
        %1735 = vbcast.lane.b32.xlu0 %v1729, %s1734
        %v1736 = vpop.permute.xlu0 %1735
        %v1737 = vlaneseq
        %v1738 = vshrl.u32 %v1737, 7
        %v1739 = vsub.s32 6, %v1738
        %v1740 = vrot.slane %v1531, %v1739
        %1742 = vbcast.lane.b32.xlu0 %v1740, 256
        %v1743 = vpop.permute.xlu0 %1742
        %s1745 = sor.u32 256, 8
        %1746 = vbcast.lane.b32.xlu0 %v1740, %s1745
        %v1747 = vpop.permute.xlu0 %1746
        %v1748 = vlaneseq
        %v1749 = vshrl.u32 %v1748, 7
        %v1750 = vsub.s32 7, %v1749
        %v1751 = vrot.slane %v1531, %v1750
        %1753 = vbcast.lane.b32.xlu0 %v1751, 256
        %v1754 = vpop.permute.xlu0 %1753
        %s1756 = sor.u32 256, 8
        %1757 = vbcast.lane.b32.xlu0 %v1751, %s1756
        %v1758 = vpop.permute.xlu0 %1757
        %v1760 = vcombine.high %v1527, %v1527
        %v1762 = vunpack.c.l.s4 1966171168
        %v1763 = vunpack.c.0.s8 %v1762
        %v1764 = vlaneseq
        %v1765 = vshrl.u32 %v1764, 7
        %v1766 = vsub.s32 %v1763, %v1765
        %v1767 = vrot.slane %v1527, %v1766
        %v1769 = vunpack.c.l.s4 1966171168
        %v1770 = vunpack.c.0.s8 %v1769
        %v1771 = vlaneseq
        %v1772 = vshrl.u32 %v1771, 7
        %v1773 = vsub.s32 %v1770, %v1772
        %v1774 = vrot.slane %v1760, %v1773
        %v1775 = vcombine.high %v1767, %v1767
        %v1776 = vcombine.high %v1774, %v1774
        %v1778 = vunpack.c.l.s4 1966171168
        %v1779 = vunpack.c.0.s8 %v1778
        %v1780 = vlaneseq
        %v1781 = vshrl.u32 %v1780, 7
        %v1782 = vsub.s32 %v1779, %v1781
        %v1783 = vrot.slane %v1767, %v1782
        %v1785 = vunpack.c.l.s4 1966171168
        %v1786 = vunpack.c.0.s8 %v1785
        %v1787 = vlaneseq
        %v1788 = vshrl.u32 %v1787, 7
        %v1789 = vsub.s32 %v1786, %v1788
        %v1790 = vrot.slane %v1774, %v1789
        %v1792 = vunpack.c.l.s4 1966171168
        %v1793 = vunpack.c.0.s8 %v1792
        %v1794 = vlaneseq
        %v1795 = vshrl.u32 %v1794, 7
        %v1796 = vsub.s32 %v1793, %v1795
        %v1797 = vrot.slane %v1775, %v1796
        %v1799 = vunpack.c.l.s4 1966171168
        %v1800 = vunpack.c.0.s8 %v1799
        %v1801 = vlaneseq
        %v1802 = vshrl.u32 %v1801, 7
        %v1803 = vsub.s32 %v1800, %v1802
        %v1804 = vrot.slane %v1776, %v1803
        %v1805 = vcombine.high %v1783, %v1783
        %v1806 = vcombine.high %v1790, %v1790
        %v1807 = vcombine.high %v1797, %v1797
        %v1808 = vcombine.high %v1804, %v1804
        %v1809 = vlaneseq
        %v1810 = vshrl.u32 %v1809, 7
        %v1811 = vsub.s32 0, %v1810
        %v1812 = vrot.slane %v1783, %v1811
        %v1813 = vlaneseq
        %v1814 = vshrl.u32 %v1813, 7
        %v1815 = vsub.s32 0, %v1814
        %v1816 = vrot.slane %v1797, %v1815
        %v1817 = vlaneseq
        %v1818 = vshrl.u32 %v1817, 7
        %v1819 = vsub.s32 0, %v1818
        %v1820 = vrot.slane %v1805, %v1819
        %v1821 = vlaneseq
        %v1822 = vshrl.u32 %v1821, 7
        %v1823 = vsub.s32 0, %v1822
        %v1824 = vrot.slane %v1807, %v1823
        %v1825 = vlaneseq
        %v1826 = vshrl.u32 %v1825, 7
        %v1827 = vsub.s32 0, %v1826
        %v1828 = vrot.slane %v1790, %v1827
        %v1829 = vlaneseq
        %v1830 = vshrl.u32 %v1829, 7
        %v1831 = vsub.s32 0, %v1830
        %v1832 = vrot.slane %v1804, %v1831
        %v1833 = vlaneseq
        %v1834 = vshrl.u32 %v1833, 7
        %v1835 = vsub.s32 0, %v1834
        %v1836 = vrot.slane %v1806, %v1835
        %v1837 = vlaneseq
        %v1838 = vshrl.u32 %v1837, 7
        %v1839 = vsub.s32 0, %v1838
        %v1840 = vrot.slane %v1808, %v1839
        %v1849 = vmul.f32 %v1677, %v1812
        %v1850 = vmul.f32 %v1681, %v1812
        %v1851 = vmul.f32 %v1688, %v1816
        %v1852 = vmul.f32 %v1692, %v1816
        %v1853 = vmul.f32 %v1699, %v1820
        %v1854 = vmul.f32 %v1703, %v1820
        %v1855 = vmul.f32 %v1710, %v1824
        %v1856 = vmul.f32 %v1714, %v1824
        %v1857 = vmul.f32 %v1721, %v1828
        %v1858 = vmul.f32 %v1725, %v1828
        %v1859 = vmul.f32 %v1732, %v1832
        %v1860 = vmul.f32 %v1736, %v1832
        %v1861 = vmul.f32 %v1743, %v1836
        %v1862 = vmul.f32 %v1747, %v1836
        %v1863 = vmul.f32 %v1754, %v1840
        %v1864 = vmul.f32 %v1758, %v1840
        %v1865 = vlaneseq
        %v1866 = vshrl.u32 %v1865, 7
        %v1867 = vsub.s32 0, %v1866
        %v1868 = vrot.slane %v1532, %v1867
        %1870 = vbcast.lane.b32.xlu0 %v1868, 256
        %v1871 = vpop.permute.xlu0 %1870
        %s1873 = sor.u32 256, 8
        %1874 = vbcast.lane.b32.xlu0 %v1868, %s1873
        %v1875 = vpop.permute.xlu0 %1874
        %v1876 = vlaneseq
        %v1877 = vshrl.u32 %v1876, 7
        %v1878 = vsub.s32 1, %v1877
        %v1879 = vrot.slane %v1532, %v1878
        %1881 = vbcast.lane.b32.xlu0 %v1879, 256
        %v1882 = vpop.permute.xlu0 %1881
        %s1884 = sor.u32 256, 8
        %1885 = vbcast.lane.b32.xlu0 %v1879, %s1884
        %v1886 = vpop.permute.xlu0 %1885
        %v1887 = vlaneseq
        %v1888 = vshrl.u32 %v1887, 7
        %v1889 = vsub.s32 2, %v1888
        %v1890 = vrot.slane %v1532, %v1889
        %1892 = vbcast.lane.b32.xlu0 %v1890, 256
        %v1893 = vpop.permute.xlu0 %1892
        %s1895 = sor.u32 256, 8
        %1896 = vbcast.lane.b32.xlu0 %v1890, %s1895
        %v1897 = vpop.permute.xlu0 %1896
        %v1898 = vlaneseq
        %v1899 = vshrl.u32 %v1898, 7
        %v1900 = vsub.s32 3, %v1899
        %v1901 = vrot.slane %v1532, %v1900
        %1903 = vbcast.lane.b32.xlu0 %v1901, 256
        %v1904 = vpop.permute.xlu0 %1903
        %s1906 = sor.u32 256, 8
        %1907 = vbcast.lane.b32.xlu0 %v1901, %s1906
        %v1908 = vpop.permute.xlu0 %1907
        %v1909 = vlaneseq
        %v1910 = vshrl.u32 %v1909, 7
        %v1911 = vsub.s32 4, %v1910
        %v1912 = vrot.slane %v1532, %v1911
        %1914 = vbcast.lane.b32.xlu0 %v1912, 256
        %v1915 = vpop.permute.xlu0 %1914
        %s1917 = sor.u32 256, 8
        %1918 = vbcast.lane.b32.xlu0 %v1912, %s1917
        %v1919 = vpop.permute.xlu0 %1918
        %v1920 = vlaneseq
        %v1921 = vshrl.u32 %v1920, 7
        %v1922 = vsub.s32 5, %v1921
        %v1923 = vrot.slane %v1532, %v1922
        %1925 = vbcast.lane.b32.xlu0 %v1923, 256
        %v1926 = vpop.permute.xlu0 %1925
        %s1928 = sor.u32 256, 8
        %1929 = vbcast.lane.b32.xlu0 %v1923, %s1928
        %v1930 = vpop.permute.xlu0 %1929
        %v1931 = vlaneseq
        %v1932 = vshrl.u32 %v1931, 7
        %v1933 = vsub.s32 6, %v1932
        %v1934 = vrot.slane %v1532, %v1933
        %1936 = vbcast.lane.b32.xlu0 %v1934, 256
        %v1937 = vpop.permute.xlu0 %1936
        %s1939 = sor.u32 256, 8
        %1940 = vbcast.lane.b32.xlu0 %v1934, %s1939
        %v1941 = vpop.permute.xlu0 %1940
        %v1942 = vlaneseq
        %v1943 = vshrl.u32 %v1942, 7
        %v1944 = vsub.s32 7, %v1943
        %v1945 = vrot.slane %v1532, %v1944
        %1947 = vbcast.lane.b32.xlu0 %v1945, 256
        %v1948 = vpop.permute.xlu0 %1947
        %s1950 = sor.u32 256, 8
        %1951 = vbcast.lane.b32.xlu0 %v1945, %s1950
        %v1952 = vpop.permute.xlu0 %1951
        %v1953 = vmul.f32 %v1640, %v1496
        %v1954 = vmul.f32 %v1642, %v1497
        %v1955 = vadd.f32 %v1953, %v1849
        %v1956 = vadd.f32 %v1954, %v1850
        %v1957 = vmul.f32 %v1955, %v1871
        %v1958 = vmul.f32 %v1956, %v1875
        %v1959 = vsel %vm576, %v1957, 0.0
        %v1960 = vsel %vm576, %v1958, 0.0
        %v1961 = vadd.f32 %v1959, %v1960
        %v1962 = vrot.slane %v1961, 4
        %v1963 = vadd.f32 %v1961, %v1962
        %v1964 = vrot.slane %v1963, 2
        %v1965 = vadd.f32 %v1963, %v1964
        %v1966 = vrot.slane %v1965, 1
        %v1967 = vadd.f32 %v1965, %v1966
        %v1968 = vmul.f32 %v1644, %v1955
        %v1969 = vmul.f32 %v1646, %v1956
        %v1970 = vadd.f32 %v1968, %v1851
        %v1971 = vadd.f32 %v1969, %v1852
        %v1972 = vmul.f32 %v1970, %v1882
        %v1973 = vmul.f32 %v1971, %v1886
        %v1974 = vsel %vm576, %v1972, 0.0
        %v1975 = vsel %vm576, %v1973, 0.0
        %v1976 = vadd.f32 %v1974, %v1975
        %v1977 = vrot.slane %v1976, 4
        %v1978 = vadd.f32 %v1976, %v1977
        %v1979 = vrot.slane %v1978, 2
        %v1980 = vadd.f32 %v1978, %v1979
        %v1981 = vrot.slane %v1980, 1
        %v1982 = vadd.f32 %v1980, %v1981
        %v1983 = vmul.f32 %v1648, %v1970
        %v1984 = vmul.f32 %v1650, %v1971
        %v1985 = vadd.f32 %v1983, %v1853
        %v1986 = vadd.f32 %v1984, %v1854
        %v1987 = vmul.f32 %v1985, %v1893
        %v1988 = vmul.f32 %v1986, %v1897
        %v1989 = vsel %vm576, %v1987, 0.0
        %v1990 = vsel %vm576, %v1988, 0.0
        %v1991 = vadd.f32 %v1989, %v1990
        %v1992 = vrot.slane %v1991, 4
        %v1993 = vadd.f32 %v1991, %v1992
        %v1994 = vrot.slane %v1993, 2
        %v1995 = vadd.f32 %v1993, %v1994
        %v1996 = vrot.slane %v1995, 1
        %v1997 = vadd.f32 %v1995, %v1996
        %v1998 = vmul.f32 %v1652, %v1985
        %v1999 = vmul.f32 %v1654, %v1986
        %v2000 = vadd.f32 %v1998, %v1855
        %v2001 = vadd.f32 %v1999, %v1856
        %v2002 = vmul.f32 %v2000, %v1904
        %v2003 = vmul.f32 %v2001, %v1908
        %v2004 = vsel %vm576, %v2002, 0.0
        %v2005 = vsel %vm576, %v2003, 0.0
        %v2006 = vadd.f32 %v2004, %v2005
        %v2007 = vrot.slane %v2006, 4
        %v2008 = vadd.f32 %v2006, %v2007
        %v2009 = vrot.slane %v2008, 2
        %v2010 = vadd.f32 %v2008, %v2009
        %v2011 = vrot.slane %v2010, 1
        %v2012 = vadd.f32 %v2010, %v2011
        %v2013 = vmul.f32 %v1656, %v2000
        %v2014 = vmul.f32 %v1658, %v2001
        %v2015 = vadd.f32 %v2013, %v1857
        %v2016 = vadd.f32 %v2014, %v1858
        %v2017 = vmul.f32 %v2015, %v1915
        %v2018 = vmul.f32 %v2016, %v1919
        %v2019 = vsel %vm576, %v2017, 0.0
        %v2020 = vsel %vm576, %v2018, 0.0
        %v2021 = vadd.f32 %v2019, %v2020
        %v2022 = vrot.slane %v2021, 4
        %v2023 = vadd.f32 %v2021, %v2022
        %v2024 = vrot.slane %v2023, 2
        %v2025 = vadd.f32 %v2023, %v2024
        %v2026 = vrot.slane %v2025, 1
        %v2027 = vadd.f32 %v2025, %v2026
        %v2028 = vmul.f32 %v1660, %v2015
        %v2029 = vmul.f32 %v1662, %v2016
        %v2030 = vadd.f32 %v2028, %v1859
        %v2031 = vadd.f32 %v2029, %v1860
        %v2032 = vmul.f32 %v2030, %v1926
        %v2033 = vmul.f32 %v2031, %v1930
        %v2034 = vsel %vm576, %v2032, 0.0
        %v2035 = vsel %vm576, %v2033, 0.0
        %v2036 = vadd.f32 %v2034, %v2035
        %v2037 = vrot.slane %v2036, 4
        %v2038 = vadd.f32 %v2036, %v2037
        %v2039 = vrot.slane %v2038, 2
        %v2040 = vadd.f32 %v2038, %v2039
        %v2041 = vrot.slane %v2040, 1
        %v2042 = vadd.f32 %v2040, %v2041
        %v2043 = vmul.f32 %v1664, %v2030
        %v2044 = vmul.f32 %v1666, %v2031
        %v2045 = vadd.f32 %v2043, %v1861
        %v2046 = vadd.f32 %v2044, %v1862
        %v2047 = vmul.f32 %v2045, %v1937
        %v2048 = vmul.f32 %v2046, %v1941
        %v2049 = vsel %vm576, %v2047, 0.0
        %v2050 = vsel %vm576, %v2048, 0.0
        %v2051 = vadd.f32 %v2049, %v2050
        %v2052 = vrot.slane %v2051, 4
        %v2053 = vadd.f32 %v2051, %v2052
        %v2054 = vrot.slane %v2053, 2
        %v2055 = vadd.f32 %v2053, %v2054
        %v2056 = vrot.slane %v2055, 1
        %v2057 = vadd.f32 %v2055, %v2056
        %v2058 = vmul.f32 %v1668, %v2045
        %v2059 = vmul.f32 %v1670, %v2046
        %v2060 = vadd.f32 %v2058, %v1863
        %v2061 = vadd.f32 %v2059, %v1864
        %v2062 = vmul.f32 %v2060, %v1948
        %v2063 = vmul.f32 %v2061, %v1952
        %v2064 = vsel %vm576, %v2062, 0.0
        %v2065 = vsel %vm576, %v2063, 0.0
        %v2066 = vadd.f32 %v2064, %v2065
        %v2067 = vrot.slane %v2066, 4
        %v2068 = vadd.f32 %v2066, %v2067
        %v2069 = vrot.slane %v2068, 2
        %v2070 = vadd.f32 %v2068, %v2069
        %v2071 = vrot.slane %v2070, 1
        %v2072 = vadd.f32 %v2070, %v2071
        %v2073 = vsel %vm1509, %v1967, %v1982
        %v2074 = vsel %vm1511, %v2073, %v1997
        %v2075 = vsel %vm1513, %v2074, %v2012
        %v2076 = vsel %vm1515, %v2075, %v2027
        %v2077 = vsel %vm1517, %v2076, %v2042
        %v2078 = vsel %vm1519, %v2077, %v2057
        %v2079 = vsel %vm1521, %v2078, %v2072
        %s2080 = scalar_lea.vmem [#allocation7], 8
        %2081 = vst.msk [vmem:[%s2080] sm:$0xff] %vm576, %v2079
        %2082 = vst.msk [vmem:[#allocation8] sm:$0xff] %vm576, %v2060
        %2083 = vst.msk [vmem:[#allocation8 + $0x8] sm:$0xff] %vm576, %v2061
        %v2084 = vld [vmem:[#allocation7] sm:$0xff]
        %v2085 = vld [vmem:[#allocation7 + $0x8] sm:$0xff]
        %v2086 = vld [vmem:[#allocation3] sm:$0xff]
        %v2087 = vld [vmem:[#allocation3 + $0x8] sm:$0xff]
        %v2088 = vld [vmem:[#allocation17] sm:$0x1]
        %v2090 = vlaneseq
        %v2091 = vshrl.u32 %v2090, 7
        %v2092 = vsub.s32 0, %v2091
        %v2093 = vrot.slane %v2088, %v2092
        %v2095 = vmul.f32 %v2086, %v2093
        %v2096 = vmul.f32 %v2087, %v2093
        %v2097 = vadd.f32 %v2084, %v2095
        %v2098 = vadd.f32 %v2085, %v2096
        %v2099 = vsub.f32 0.0, %v570
        %v2100 = vsub.f32 0.0, %v573
        %v2101 = vmul.f32 %v2099, 1.442695
        %v2102 = vpow.pop %v2101
        %v2103 = vmul.f32 %v2100, 1.442695
        %v2104 = vpow.pop %v2103
        %v2105 = vadd.f32 %v2102, 1.0
        %v2106 = vadd.f32 %v2104, 1.0
        %v2107 = vrcp.pop %v2105
        %v2108 = vrcp.pop %v2106
        %v2109 = vmul.f32 %v570, %v2107
        %v2110 = vmul.f32 %v573, %v2108
        %2113 = vrot.lane.b32.xlu0 %v2109, 64
        %v2114 = vpop.permute.xlu0 %2113
        %2115 = vrot.lane.b32.xlu0 %v2110, 64
        %v2116 = vpop.permute.xlu0 %2115
        %v2119 = vmul.f32 %v2097, %v2114
        %v2120 = vmul.f32 %v2098, %v2116
        %v2121 = vpack.c.bf16 %v2120, %v2119
        %v2122 = vld [vmem:[%s10] sm:$0xf]
        %v2123 = vld [vmem:[%s10 + $0x4] sm:$0xf]
        %v2124 = vld [vmem:[%s10 + $0x8] sm:$0xf]
        %v2125 = vld [vmem:[%s10 + $0xc] sm:$0xf]
        %v2126 = vld [vmem:[%s10 + $0x10] sm:$0xf]
        %v2127 = vld [vmem:[%s10 + $0x14] sm:$0xf]
        %v2128 = vld [vmem:[%s10 + $0x18] sm:$0xf]
        %v2129 = vld [vmem:[%s10 + $0x1c] sm:$0xf]
        %v2138 = vunpack.c.l.b16 %v2122
        %v2139 = vunpack.c.l.b16 %v2123
        %v2140 = vunpack.c.l.b16 %v2124
        %v2141 = vunpack.c.l.b16 %v2125
        %v2142 = vunpack.c.l.b16 %v2126
        %v2143 = vunpack.c.l.b16 %v2127
        %v2144 = vunpack.c.l.b16 %v2128
        %v2145 = vunpack.c.l.b16 %v2129
        %v2146 = vpack.c.b16 %v2139, %v2138
        %v2147 = vpack.c.b16 %v2141, %v2140
        %v2148 = vpack.c.b16 %v2143, %v2142
        %v2149 = vpack.c.b16 %v2145, %v2144
        %v2155 = vsel %vm576, %v2121, 0
        %2157 = vmatprep.subr.bf16.mxu0 0
        %2158 = vmatpush1.bf16.msra.mxu0 0
        %2159 = vmatprep.subr.bf16.mxu0 0
        %2160 = vmatpush1.bf16.msra.mxu0 0
        %2161 = vmatprep.subr.bf16.mxu0 0
        %2162 = vmatpush1.bf16.msra.mxu0 0
        %2163 = vmatprep.subr.bf16.mxu0 0
        %2164 = vmatpush1.bf16.msra.mxu0 0
        %2165 = vmatprep.subr.bf16.mxu0 0
        %2166 = vmatpush1.bf16.msra.mxu0 %v2149
        %2167 = vmatprep.subr.bf16.mxu0 0
        %2168 = vmatpush1.bf16.msra.mxu0 %v2148
        %2169 = vmatprep.subr.bf16.mxu0 0
        %2170 = vmatpush1.bf16.msra.mxu0 %v2147
        %2171 = vmatprep.subr.bf16.mxu0 0
        %2172 = vmatpush1.bf16.msra.mxu0 %v2146
        %2173 = vmatprep.subr.bf16.mxu0 0
        %2174 = vmatpush2.bf16.msra.mxu0 0
        %2175 = vmatprep.subr.bf16.mxu0 0
        %2176 = vmatpush2.bf16.msra.mxu0 0
        %2177 = vmatprep.subr.bf16.mxu0 0
        %2178 = vmatpush2.bf16.msra.mxu0 0
        %2179 = vmatprep.subr.bf16.mxu0 0
        %2180 = vmatpush2.bf16.msra.mxu0 0
        %2181 = vmatprep.subr.bf16.mxu0 0
        %2182 = vmatpush2.bf16.msra.mxu0 0
        %2183 = vmatprep.subr.bf16.mxu0 0
        %2184 = vmatpush2.bf16.msra.mxu0 0
        %2185 = vmatprep.subr.bf16.mxu0 0
        %2186 = vmatpush2.bf16.msra.mxu0 0
        %2187 = vmatprep.subr.bf16.mxu0 0
        %2188 = vmatpush2.bf16.msra.mxu0 0
        %2189 = vmatprep.mubr.bf16.mxu0 0
        %2190 = vmatmul.mubr.bf16.gmra.mxu0 %v2155
        %v2191 = vpop.f32.mrf.mxu0
        %v2192 = vadd.f32 %v486, %v2191
        %v2193 = vpop.f32.mrf.mxu0
        %v2194 = vpop.f32.mrf.mxu0
        %v2195 = vadd.f32 %v487, %v2194
        %v2196 = vpop.f32.mrf.mxu0
        %2197 = vdwg.mxu0
        %2198 = vst.msk [vmem:[%s474] sm:$0xff] %vm490, %v2192
        %2199 = vst.msk [vmem:[%s474 + $0x8] sm:$0xff] %vm490, %v2195
        %s2200 = sand.u32 %s290, 1
        %s2201 = scalar_lea.sflag [#allocation11], %s2200
        %s2202 = sand.u32 %s290, 1
        %s2203 = smul.addr %s2202, 16
        %s2204 = scalar_lea.vmem [#allocation18], %s2203
        // Predicated region
        $region89: #{tpu_custom_call.1} parent=63 // pred_check
          %p2205 = pneg %p300
        $region90: #{tpu_custom_call.1} parent=63 // pred_check_branch
          %2207 = sbr.rel (%p2205) target = $region92
        $region91: #{tpu_custom_call.1} parent=63 // pred_region
          %s2208 = smul.u32 2, %s35
          %s2210 = ssub.s32 256, 256
          %2211 = vsyncadd %s2201, %s2210
          %s2212 = smul.addr %s34, 4
          %s2213 = sadd.s32 %s2208, %s2212
          %s2214 = smul.addr %s2213, 128
          %s2215 = scalar_lea.hbm %s11, %s2214
          %s2216 = sshll.u32 %s2204, 4
          %s2217 = int_to_ptr.vmem [resolvable:$true] %s2216
          %2222 = dma.vmem_to_hbm [thread:$0]  %s2217, 256, %s2215, %s2201, 128, 128, 8
        $region92: #{tpu_custom_call.1} parent=63 // pred_fallthru
          _
      $region64: #{tpu_custom_call.1} parent=5 // pred_fallthru
        _
      %p2223 = scmp.le.s32.totalorder 2, %s25
      // Predicated region
      $region93: #{tpu_custom_call.1} parent=5 // pred_check
        %p2224 = pneg %p2223
      $region94: #{tpu_custom_call.1} parent=5 // pred_check_branch
        %2226 = sbr.rel (%p2224) target = $region96
      $region95: #{tpu_custom_call.1} parent=5 // pred_region
        %s2227 = ssub.s32 %s25, 2
        // Predicated region
        $region97: #{tpu_custom_call.1} parent=95 // pred_check
          %p2228 = pneg %p306
        $region98: #{tpu_custom_call.1} parent=95 // pred_check_branch
          %2230 = sbr.rel (%p2228) target = $region100
        $region99: #{tpu_custom_call.1} parent=95 // pred_region
          %s2231 = sand.u32 %s291, 1
          %s2232 = scalar_lea.sflag [#allocation11], %s2231
          %s2233 = sand.u32 %s291, 1
          %s2234 = smul.addr %s2233, 16
          %s2235 = scalar_lea.vmem [#allocation18], %s2234
          %2236 = dma.done %s2232, 256
        $region100: #{tpu_custom_call.1} parent=95 // pred_fallthru
          _
      $region96: #{tpu_custom_call.1} parent=5 // pred_fallthru
        _
    $region6: #{tpu_custom_call.1} parent=1 // loop_footer
      %s29 = sadd.s32 1, %s25
    $region7: #{tpu_custom_call.1} parent=1 // loop_footer_branch
      %24 = sbr.rel target = $region3
    $region8: #{tpu_custom_call.1} parent=1 // loop_exit
      _
    %2237 = vsyncpa [#allocation10], 1
    %s2238 = scalar_lea.sflag [#allocation10], 1
    %2239 = vsyncpa %s2238, 1
    %2240 = vsyncpa [#allocation13], 1
    %2241 = vsyncpa [#allocation16], 1
    %2242 = vsyncpa [#allocation11], 1
    %s2243 = scalar_lea.sflag [#allocation11], 1
    %2244 = vsyncpa %s2243, 1

</llo_original>
